<compile_context>
chip_gen: v7x
topology: tpu7x:2x2x1
jax: 0.10.0
libtpu: 0.0.40
codegen_flags: <defaults>
</compile_context>

<pallas_src>
import functools
import numpy as np
import jax
import jax.numpy as jnp
from jax import lax
from jax.experimental import pallas as pl
from jax.experimental.pallas import tpu as pltpu

D_LATENT = 16
BN_EPS = 1e-5
_SQRT_2_OVER_PI = 0.7978845608028654


# ------------------------------ in-kernel math ------------------------------

def _gelu(x):
    # tanh-approximate GELU (EUP tanh); |err| vs exact erf GELU < ~3e-3 abs,
    # well inside the test tolerance.
    return 0.5 * x * (1.0 + jnp.tanh(_SQRT_2_OVER_PI * (x + 0.044715 * x * x * x)))


# ------------------------------- fused kernel -------------------------------

def _encoder_kernel(x_ref, m1_ref, b1_ref, m2_ref, b2_ref,
                    w3_ref, b3_ref, wmu_ref, bmu_ref, wsg_ref, bsg_ref,
                    mu_ref, sig_ref):
    f32 = jnp.float32
    bf16 = jnp.bfloat16

    # Hoist constant loads out of the tap loop (JAX does not CSE these).
    m1 = m1_ref[...]          # (101, 368) bf16: conv1 + AvgPool(2,2) folded; col = w*8+c
    b1 = b1_ref[...]          # (1, 368) f32

    # conv2 accumulated over its 5 H taps.  BN1 affine and AvgPool(1,2) are
    # folded into m2 (host-side), so each tap is one lane-dense matmul.
    z2 = None
    for h in range(5):                                   # static unroll, 5 taps
        xs = x_ref[2 * h] + x_ref[2 * h + 1]             # (bt,101): H-pair sum of pool1
        g = jnp.dot(xs, m1, preferred_element_type=f32) + b1   # conv1 + pool1
        a1 = _gelu(g).astype(bf16)                       # GELU (BN1 folded into m2)
        c = jnp.dot(a1, m2_ref[h], preferred_element_type=f32)  # pool2 + BN1 + conv2 tap h
        z2 = c if z2 is None else z2 + c
    z2 = z2 + b2_ref[...]                                # conv2 bias + folded BN1 shift
    a2 = _gelu(z2).astype(bf16)                          # GELU (BN2 folded into fc1)

    # fc1 padded to 256 cols -> h1 is 2 full 128-lane vreg groups.
    h1 = _gelu(jnp.dot(a2, w3_ref[...], preferred_element_type=f32) + b3_ref[...])
    # TODO(synk): nn.Dropout(0.2) is eval-mode identity here; training-mode masking not modeled.
    mu_ref[...] = jnp.dot(h1, wmu_ref[...], preferred_element_type=f32) + bmu_ref[...]
    sig_ref[...] = jnp.exp(jnp.dot(h1, wsg_ref[...],
                                   preferred_element_type=f32) + bsg_ref[...])


# ------------------------------ forward wrapper ------------------------------

def _pick_batch_tile(n):
    # Prefer a tile that yields >= 2 grid steps (v7x dual-TC sharding) and
    # fills the MXU M dimension; whole batch in one step when small.
    if n > 16:
        for c in (256, 128, 64, 32, 16):
            if n % c == 0 and n // c >= 2:
                return c
    return n


def encoder_forward(x, kp, d_latent):
    n = x.shape[0]
    assert x.shape[1:] == (1, 10, 101), "Encoder expects NCHW (N,1,10,101)"
    # Layout plumbing only: H-major so the kernel indexes the leading axis,
    # W (101) on lanes; bf16 halves the input DMA (MXU pass is bf16 anyway).
    xh = jnp.transpose(x.reshape(n, 10, 101), (1, 0, 2)).astype(jnp.bfloat16)

    bt = _pick_batch_tile(n)
    grid = (n // bt,)
    L = d_latent

    def const_spec(arr):
        zeros = (0,) * arr.ndim
        return pl.BlockSpec(arr.shape, lambda i: zeros)   # same block every step

    mu, sig = pl.pallas_call(
        _encoder_kernel,
        grid=grid,
        in_specs=[
            pl.BlockSpec((10, bt, 101), lambda i: (0, i, 0)),
            const_spec(kp["m1"]), const_spec(kp["b1"]),
            const_spec(kp["m2"]), const_spec(kp["b2"]),
            const_spec(kp["wfc1"]), const_spec(kp["bfc1"]),
            const_spec(kp["wmu"]), const_spec(kp["bmu"]),
            const_spec(kp["wsig"]), const_spec(kp["bsig"]),
        ],
        out_specs=(pl.BlockSpec((bt, L), lambda i: (i, 0)),
                   pl.BlockSpec((bt, L), lambda i: (i, 0))),
        out_shape=(jax.ShapeDtypeStruct((n, L), jnp.float32),
                   jax.ShapeDtypeStruct((n, L), jnp.float32)),
        compiler_params=pltpu.CompilerParams(
            dimension_semantics=("parallel",),
            vmem_limit_bytes=(64 << 20) if bt > 128 else None),
    )(xh, kp["m1"], kp["b1"], kp["m2"], kp["b2"], kp["wfc1"], kp["bfc1"],
      kp["wmu"], kp["bmu"], kp["wsig"], kp["bsig"])
    return mu, sig


# --------------------------- deterministic parameters ------------------------

def init_raw_params(key, d_latent):
    ks = jax.random.split(key, 16)
    f32 = jnp.float32
    return dict(
        conv1_w=0.2 * jax.random.normal(ks[0], (8, 1, 1, 10), f32),
        conv1_b=0.1 * jax.random.normal(ks[1], (8,), f32),
        bn1_gamma=1.0 + 0.1 * jax.random.normal(ks[2], (8,), f32),
        bn1_beta=0.1 * jax.random.normal(ks[3], (8,), f32),
        bn1_mean=0.1 * jax.random.normal(ks[4], (8,), f32),
        bn1_var=0.7 + jnp.abs(0.3 * jax.random.normal(ks[5], (8,), f32)),
        conv2_w=0.2 * jax.random.normal(ks[6], (16, 8, 5, 1), f32),
        conv2_b=0.1 * jax.random.normal(ks[7], (16,), f32),
        bn2_gamma=1.0 + 0.1 * jax.random.normal(ks[8], (16,), f32),
        bn2_beta=0.1 * jax.random.normal(ks[9], (16,), f32),
        bn2_mean=0.1 * jax.random.normal(ks[10], (16,), f32),
        bn2_var=0.7 + jnp.abs(0.3 * jax.random.normal(ks[11], (16,), f32)),
        fc1_w=0.05 * jax.random.normal(ks[12], (200, 16 * 1 * 23), f32),
        fc1_b=0.1 * jax.random.normal(ks[13], (200,), f32),
        fc2_w=0.05 * jax.random.normal(ks[14], (2 * d_latent, 200), f32),
        fc2_b=0.05 * jax.random.normal(ks[15], (2 * d_latent,), f32),
    )


def kernel_params(raw, d_latent):
    """Host-side, one-time weight transformation (exact in f32):
    fold conv1+pool1 -> M1; fold BN1 + AvgPool(1,2) + conv2 -> M2'; fold
    BN2 -> fc1; pad fc1/fc2 to 256; store the big matmul weights in bf16."""
    def bn_fold(gamma, beta, mean, var):
        g = np.asarray(gamma, np.float32); b = np.asarray(beta, np.float32)
        m = np.asarray(mean, np.float32); v = np.asarray(var, np.float32)
        s = g / np.sqrt(v + BN_EPS)
        return s, b - m * s

    w1 = np.asarray(raw["conv1_w"], np.float32).reshape(8, 10)       # (c, k)
    b1 = np.asarray(raw["conv1_b"], np.float32)
    w2 = np.asarray(raw["conv2_w"], np.float32)[:, :, :, 0]          # (co, ci, kh)
    b2 = np.asarray(raw["conv2_b"], np.float32)
    s1, t1 = bn_fold(raw["bn1_gamma"], raw["bn1_beta"], raw["bn1_mean"], raw["bn1_var"])
    s2, t2 = bn_fold(raw["bn2_gamma"], raw["bn2_beta"], raw["bn2_mean"], raw["bn2_var"])

    # M1: conv1 (1x10) + AvgPool(2,2) over W for one pooled H row.
    # Input: H-pair-summed row (101,); output column index = w*8 + c.
    M1 = np.zeros((101, 46 * 8), np.float32)
    for w in range(46):
        for dw in range(2):
            for k in range(10):
                M1[2 * w + dw + k, w * 8:(w + 1) * 8] += 0.25 * w1[:, k]

    # SP: AvgPool(1,2) over W (commutes with the width-1 conv2): (w*8+ci)->(w2*8+ci)
    SP = np.zeros((46 * 8, 23 * 8), np.float32)
    for w2i in range(23):
        for dw in range(2):
            for ci in range(8):
                SP[(2 * w2i + dw) * 8 + ci, w2i * 8 + ci] = 0.5

    # M2[kh]: conv2 channel/tap mixing, (w2*8+ci) -> (co*23+w2)
    # (output column order == torch's NCHW flatten of (N,16,1,23)).
    M2 = np.zeros((5, 23 * 8, 16 * 23), np.float32)
    cos = np.arange(16) * 23
    for kh in range(5):
        for w2i in range(23):
            for ci in range(8):
                M2[kh, w2i * 8 + ci, cos + w2i] = w2[:, ci, kh]

    # Fold BN1 affine (over columns w*8+c) and pool2 into conv2.
    s1_full = np.tile(s1, 46)                                 # (368,)
    t1_full = np.tile(t1, 46)
    M2p = np.einsum('i,ij,hjk->hik', s1_full, SP, M2)         # (5, 368, 368)
    b2_full = np.repeat(b2, 23) + np.einsum('i,ij,hjk->k', t1_full, SP, M2)

    # Fold BN2 (over columns co*23+w2) into fc1; pad fc1 to 256 output cols.
    s2_full = np.repeat(s2, 23)
    t2_full = np.repeat(t2, 23)
    fc1_wT = np.asarray(raw["fc1_w"], np.float32).T           # (368, 200)
    fc1_b = np.asarray(raw["fc1_b"], np.float32)
    W3 = np.zeros((368, 256), np.float32)
    W3[:, :200] = s2_full[:, None] * fc1_wT
    B3 = np.zeros((1, 256), np.float32)
    B3[0, :200] = fc1_b + t2_full @ fc1_wT

    # fc2 split into mu / log_var heads, contraction padded to 256 rows.
    L = d_latent
    fc2_w = np.asarray(raw["fc2_w"], np.float32)
    fc2_b = np.asarray(raw["fc2_b"], np.float32)
    Wmu = np.zeros((256, L), np.float32); Wmu[:200] = fc2_w[:L].T
    Wsg = np.zeros((256, L), np.float32); Wsg[:200] = fc2_w[L:].T

    f32, bf16 = jnp.float32, jnp.bfloat16
    return dict(
        m1=jnp.asarray(M1, bf16),
        b1=jnp.asarray(np.tile(b1, 46).reshape(1, 368), f32),
        m2=jnp.asarray(M2p, bf16),
        b2=jnp.asarray(b2_full.reshape(1, 368), f32),
        wfc1=jnp.asarray(W3, bf16),
        bfc1=jnp.asarray(B3, f32),
        wmu=jnp.asarray(Wmu, f32),
        bmu=jnp.asarray(fc2_b[:L].reshape(1, L), f32),
        wsig=jnp.asarray(Wsg, f32),
        bsig=jnp.asarray(fc2_b[L:].reshape(1, L), f32),
    )


# ---------------------------- plain-JAX reference ----------------------------

def encoder_reference(x, raw, d_latent):
    hi = lax.Precision.HIGHEST

    def gelu(v):  # exact erf-based GELU (torch F.gelu default)
        return 0.5 * v * (1.0 + jax.scipy.special.erf(v * 0.7071067811865476))

    def bn(v, g, b, m, var):
        return ((v - m[None, :, None, None]) /
                jnp.sqrt(var[None, :, None, None] + BN_EPS)
                * g[None, :, None, None] + b[None, :, None, None])

    dn = ("NCHW", "OIHW", "NCHW")
    y = lax.conv_general_dilated(x, raw["conv1_w"], (1, 1), "VALID",
                                 dimension_numbers=dn, precision=hi)
    y = y + raw["conv1_b"][None, :, None, None]
    y = lax.reduce_window(y, 0.0, lax.add, (1, 1, 2, 2), (1, 1, 2, 2), "VALID") / 4.0
    y = bn(gelu(y), raw["bn1_gamma"], raw["bn1_beta"], raw["bn1_mean"], raw["bn1_var"])
    y = lax.conv_general_dilated(y, raw["conv2_w"], (1, 1), "VALID",
                                 dimension_numbers=dn, precision=hi)
    y = y + raw["conv2_b"][None, :, None, None]
    y = lax.reduce_window(y, 0.0, lax.add, (1, 1, 1, 2), (1, 1, 1, 2), "VALID") / 2.0
    y = bn(gelu(y), raw["bn2_gamma"], raw["bn2_beta"], raw["bn2_mean"], raw["bn2_var"])
    flat = y.reshape(x.shape[0], -1)
    h = gelu(jnp.dot(flat, raw["fc1_w"].T, precision=hi) + raw["fc1_b"])
    h2 = jnp.dot(h, raw["fc2_w"].T, precision=hi) + raw["fc2_b"]
    return h2[:, :d_latent], jnp.exp(h2[:, d_latent:])


# ------------------------------------ main ------------------------------------

if __name__ == "__main__":
    key = jax.random.PRNGKey(0)
    k_x, k_p = jax.random.split(key)

    # Input shape is fixed by the module: fc1 expects 16*1*23 features after
    # the conv/pool stack, which implies an NCHW input of (N, 1, 10, 101).
    x = jax.random.normal(k_x, (2, 1, 10, 101), jnp.float32)

    raw = init_raw_params(k_p, D_LATENT)
    kp = kernel_params(raw, D_LATENT)

    fwd = jax.jit(functools.partial(encoder_forward, d_latent=D_LATENT))
    mu, sigma = fwd(x, kp)
    jax.block_until_ready((mu, sigma))

    mu_ref, sigma_ref = encoder_reference(x, raw, D_LATENT)
    # Tolerance covers bf16 MXU passes + tanh-approximate GELU vs the
    # HIGHEST-precision, exact-erf f32 reference.
    np.testing.assert_allclose(np.asarray(mu), np.asarray(mu_ref), rtol=2e-2, atol=2e-2)
    np.testing.assert_allclose(np.asarray(sigma), np.asarray(sigma_ref), rtol=2e-2, atol=2e-2)
    assert mu.shape == (2, D_LATENT) and sigma.shape == (2, D_LATENT)

    print("KERNEL_OK")
</pallas_src>

<mosaic_0001>
module attributes {stable_mosaic.version = 11 : i64} {
  func.func @_encoder_kernel(%arg0: i32, %arg1: memref<10x2x101xbf16, #tpu.memory_space<vmem>>, %arg2: memref<101x368xbf16, #tpu.memory_space<vmem>>, %arg3: memref<1x368xf32, #tpu.memory_space<vmem>>, %arg4: memref<5x368x368xbf16, #tpu.memory_space<vmem>>, %arg5: memref<1x368xf32, #tpu.memory_space<vmem>>, %arg6: memref<368x256xbf16, #tpu.memory_space<vmem>>, %arg7: memref<1x256xf32, #tpu.memory_space<vmem>>, %arg8: memref<256x16xf32, #tpu.memory_space<vmem>>, %arg9: memref<1x16xf32, #tpu.memory_space<vmem>>, %arg10: memref<256x16xf32, #tpu.memory_space<vmem>>, %arg11: memref<1x16xf32, #tpu.memory_space<vmem>>, %arg12: memref<2x16xf32, #tpu.memory_space<vmem>>, %arg13: memref<2x16xf32, #tpu.memory_space<vmem>>) attributes {dimension_semantics = [#tpu.dimension_semantics<parallel>], iteration_bounds = array<i64: 1>, scalar_prefetch = 0 : i64, scratch_operands = 0 : i64, tpu.core_type = #tpu.core_type<tc>, window_params = [{transform_indices = @transform_0, window_bounds = array<i64: 10, 2, 101>}, {pipeline_mode = #tpu.pipeline_mode<synchronous>, transform_indices = @transform_1, window_bounds = array<i64: 101, 368>}, {pipeline_mode = #tpu.pipeline_mode<synchronous>, transform_indices = @transform_2, window_bounds = array<i64: 1, 368>}, {pipeline_mode = #tpu.pipeline_mode<synchronous>, transform_indices = @transform_3, window_bounds = array<i64: 5, 368, 368>}, {pipeline_mode = #tpu.pipeline_mode<synchronous>, transform_indices = @transform_4, window_bounds = array<i64: 1, 368>}, {pipeline_mode = #tpu.pipeline_mode<synchronous>, transform_indices = @transform_5, window_bounds = array<i64: 368, 256>}, {pipeline_mode = #tpu.pipeline_mode<synchronous>, transform_indices = @transform_6, window_bounds = array<i64: 1, 256>}, {pipeline_mode = #tpu.pipeline_mode<synchronous>, transform_indices = @transform_7, window_bounds = array<i64: 256, 16>}, {pipeline_mode = #tpu.pipeline_mode<synchronous>, transform_indices = @transform_8, window_bounds = array<i64: 1, 16>}, {pipeline_mode = #tpu.pipeline_mode<synchronous>, transform_indices = @transform_9, window_bounds = array<i64: 256, 16>}, {pipeline_mode = #tpu.pipeline_mode<synchronous>, transform_indices = @transform_10, window_bounds = array<i64: 1, 16>}, {transform_indices = @transform_11, window_bounds = array<i64: 2, 16>}, {transform_indices = @transform_12, window_bounds = array<i64: 2, 16>}]} {
    %c0 = arith.constant 0 : index
    %c0_0 = arith.constant 0 : index
    %0 = vector.load %arg2[%c0, %c0_0] : memref<101x368xbf16, #tpu.memory_space<vmem>>, vector<101x368xbf16>
    %c0_1 = arith.constant 0 : index
    %c0_2 = arith.constant 0 : index
    %1 = vector.load %arg3[%c0_1, %c0_2] : memref<1x368xf32, #tpu.memory_space<vmem>>, vector<1x368xf32>
    %c0_3 = arith.constant 0 : index
    %c0_4 = arith.constant 0 : index
    %c0_5 = arith.constant 0 : index
    %2 = vector.load %arg1[%c0_3, %c0_4, %c0_5] : memref<10x2x101xbf16, #tpu.memory_space<vmem>>, vector<1x2x101xbf16>
    %3 = vector.shape_cast %2 : vector<1x2x101xbf16> to vector<2x101xbf16>
    %c1 = arith.constant 1 : index
    %c0_6 = arith.constant 0 : index
    %c0_7 = arith.constant 0 : index
    %4 = vector.load %arg1[%c1, %c0_6, %c0_7] : memref<10x2x101xbf16, #tpu.memory_space<vmem>>, vector<1x2x101xbf16>
    %5 = vector.shape_cast %4 : vector<1x2x101xbf16> to vector<2x101xbf16>
    %6 = arith.addf %3, %5 : vector<2x101xbf16>
    %cst = arith.constant dense<0.000000e+00> : vector<2x368xf32>
    %7 = tpu.matmul %6, %0, %cst {dimension_numbers = #tpu.dot_dimension_numbers<[1], [0], [0], [1], [0, 0, 1, 1], [], []>} : vector<2x101xbf16>, vector<101x368xbf16>, vector<2x368xf32> -> vector<2x368xf32>
    %8 = vector.broadcast %1 : vector<1x368xf32> to vector<2x368xf32>
    %9 = arith.addf %7, %8 : vector<2x368xf32>
    %cst_8 = arith.constant 5.000000e-01 : f32
    %10 = vector.broadcast %cst_8 : f32 to vector<2x368xf32>
    %11 = arith.mulf %10, %9 : vector<2x368xf32>
    %cst_9 = arith.constant 4.471500e-02 : f32
    %12 = vector.broadcast %cst_9 : f32 to vector<2x368xf32>
    %13 = arith.mulf %12, %9 : vector<2x368xf32>
    %14 = arith.mulf %13, %9 : vector<2x368xf32>
    %15 = arith.mulf %14, %9 : vector<2x368xf32>
    %16 = arith.addf %9, %15 : vector<2x368xf32>
    %cst_10 = arith.constant 0.797884583 : f32
    %17 = vector.broadcast %cst_10 : f32 to vector<2x368xf32>
    %18 = arith.mulf %17, %16 : vector<2x368xf32>
    %19 = math.tanh %18 : vector<2x368xf32>
    %cst_11 = arith.constant 1.000000e+00 : f32
    %20 = vector.broadcast %cst_11 : f32 to vector<2x368xf32>
    %21 = arith.addf %20, %19 : vector<2x368xf32>
    %22 = arith.mulf %11, %21 : vector<2x368xf32>
    %23 = arith.truncf %22 : vector<2x368xf32> to vector<2x368xbf16>
    %c0_12 = arith.constant 0 : index
    %c0_13 = arith.constant 0 : index
    %c0_14 = arith.constant 0 : index
    %24 = vector.load %arg4[%c0_12, %c0_13, %c0_14] : memref<5x368x368xbf16, #tpu.memory_space<vmem>>, vector<1x368x368xbf16>
    %25 = vector.shape_cast %24 : vector<1x368x368xbf16> to vector<368x368xbf16>
    %cst_15 = arith.constant dense<0.000000e+00> : vector<2x368xf32>
    %26 = tpu.matmul %23, %25, %cst_15 {dimension_numbers = #tpu.dot_dimension_numbers<[1], [0], [0], [1], [0, 0, 1, 1], [], []>} : vector<2x368xbf16>, vector<368x368xbf16>, vector<2x368xf32> -> vector<2x368xf32>
    %c2 = arith.constant 2 : index
    %c0_16 = arith.constant 0 : index
    %c0_17 = arith.constant 0 : index
    %27 = vector.load %arg1[%c2, %c0_16, %c0_17] : memref<10x2x101xbf16, #tpu.memory_space<vmem>>, vector<1x2x101xbf16>
    %28 = vector.shape_cast %27 : vector<1x2x101xbf16> to vector<2x101xbf16>
    %c3 = arith.constant 3 : index
    %c0_18 = arith.constant 0 : index
    %c0_19 = arith.constant 0 : index
    %29 = vector.load %arg1[%c3, %c0_18, %c0_19] : memref<10x2x101xbf16, #tpu.memory_space<vmem>>, vector<1x2x101xbf16>
    %30 = vector.shape_cast %29 : vector<1x2x101xbf16> to vector<2x101xbf16>
    %31 = arith.addf %28, %30 : vector<2x101xbf16>
    %cst_20 = arith.constant dense<0.000000e+00> : vector<2x368xf32>
    %32 = tpu.matmul %31, %0, %cst_20 {dimension_numbers = #tpu.dot_dimension_numbers<[1], [0], [0], [1], [0, 0, 1, 1], [], []>} : vector<2x101xbf16>, vector<101x368xbf16>, vector<2x368xf32> -> vector<2x368xf32>
    %33 = vector.broadcast %1 : vector<1x368xf32> to vector<2x368xf32>
    %34 = arith.addf %32, %33 : vector<2x368xf32>
    %cst_21 = arith.constant 5.000000e-01 : f32
    %35 = vector.broadcast %cst_21 : f32 to vector<2x368xf32>
    %36 = arith.mulf %35, %34 : vector<2x368xf32>
    %cst_22 = arith.constant 4.471500e-02 : f32
    %37 = vector.broadcast %cst_22 : f32 to vector<2x368xf32>
    %38 = arith.mulf %37, %34 : vector<2x368xf32>
    %39 = arith.mulf %38, %34 : vector<2x368xf32>
    %40 = arith.mulf %39, %34 : vector<2x368xf32>
    %41 = arith.addf %34, %40 : vector<2x368xf32>
    %cst_23 = arith.constant 0.797884583 : f32
    %42 = vector.broadcast %cst_23 : f32 to vector<2x368xf32>
    %43 = arith.mulf %42, %41 : vector<2x368xf32>
    %44 = math.tanh %43 : vector<2x368xf32>
    %cst_24 = arith.constant 1.000000e+00 : f32
    %45 = vector.broadcast %cst_24 : f32 to vector<2x368xf32>
    %46 = arith.addf %45, %44 : vector<2x368xf32>
    %47 = arith.mulf %36, %46 : vector<2x368xf32>
    %48 = arith.truncf %47 : vector<2x368xf32> to vector<2x368xbf16>
    %c1_25 = arith.constant 1 : index
    %c0_26 = arith.constant 0 : index
    %c0_27 = arith.constant 0 : index
    %49 = vector.load %arg4[%c1_25, %c0_26, %c0_27] : memref<5x368x368xbf16, #tpu.memory_space<vmem>>, vector<1x368x368xbf16>
    %50 = vector.shape_cast %49 : vector<1x368x368xbf16> to vector<368x368xbf16>
    %cst_28 = arith.constant dense<0.000000e+00> : vector<2x368xf32>
    %51 = tpu.matmul %48, %50, %cst_28 {dimension_numbers = #tpu.dot_dimension_numbers<[1], [0], [0], [1], [0, 0, 1, 1], [], []>} : vector<2x368xbf16>, vector<368x368xbf16>, vector<2x368xf32> -> vector<2x368xf32>
    %52 = arith.addf %26, %51 : vector<2x368xf32>
    %c4 = arith.constant 4 : index
    %c0_29 = arith.constant 0 : index
    %c0_30 = arith.constant 0 : index
    %53 = vector.load %arg1[%c4, %c0_29, %c0_30] : memref<10x2x101xbf16, #tpu.memory_space<vmem>>, vector<1x2x101xbf16>
    %54 = vector.shape_cast %53 : vector<1x2x101xbf16> to vector<2x101xbf16>
    %c5 = arith.constant 5 : index
    %c0_31 = arith.constant 0 : index
    %c0_32 = arith.constant 0 : index
    %55 = vector.load %arg1[%c5, %c0_31, %c0_32] : memref<10x2x101xbf16, #tpu.memory_space<vmem>>, vector<1x2x101xbf16>
    %56 = vector.shape_cast %55 : vector<1x2x101xbf16> to vector<2x101xbf16>
    %57 = arith.addf %54, %56 : vector<2x101xbf16>
    %cst_33 = arith.constant dense<0.000000e+00> : vector<2x368xf32>
    %58 = tpu.matmul %57, %0, %cst_33 {dimension_numbers = #tpu.dot_dimension_numbers<[1], [0], [0], [1], [0, 0, 1, 1], [], []>} : vector<2x101xbf16>, vector<101x368xbf16>, vector<2x368xf32> -> vector<2x368xf32>
    %59 = vector.broadcast %1 : vector<1x368xf32> to vector<2x368xf32>
    %60 = arith.addf %58, %59 : vector<2x368xf32>
    %cst_34 = arith.constant 5.000000e-01 : f32
    %61 = vector.broadcast %cst_34 : f32 to vector<2x368xf32>
    %62 = arith.mulf %61, %60 : vector<2x368xf32>
    %cst_35 = arith.constant 4.471500e-02 : f32
    %63 = vector.broadcast %cst_35 : f32 to vector<2x368xf32>
    %64 = arith.mulf %63, %60 : vector<2x368xf32>
    %65 = arith.mulf %64, %60 : vector<2x368xf32>
    %66 = arith.mulf %65, %60 : vector<2x368xf32>
    %67 = arith.addf %60, %66 : vector<2x368xf32>
    %cst_36 = arith.constant 0.797884583 : f32
    %68 = vector.broadcast %cst_36 : f32 to vector<2x368xf32>
    %69 = arith.mulf %68, %67 : vector<2x368xf32>
    %70 = math.tanh %69 : vector<2x368xf32>
    %cst_37 = arith.constant 1.000000e+00 : f32
    %71 = vector.broadcast %cst_37 : f32 to vector<2x368xf32>
    %72 = arith.addf %71, %70 : vector<2x368xf32>
    %73 = arith.mulf %62, %72 : vector<2x368xf32>
    %74 = arith.truncf %73 : vector<2x368xf32> to vector<2x368xbf16>
    %c2_38 = arith.constant 2 : index
    %c0_39 = arith.constant 0 : index
    %c0_40 = arith.constant 0 : index
    %75 = vector.load %arg4[%c2_38, %c0_39, %c0_40] : memref<5x368x368xbf16, #tpu.memory_space<vmem>>, vector<1x368x368xbf16>
    %76 = vector.shape_cast %75 : vector<1x368x368xbf16> to vector<368x368xbf16>
    %cst_41 = arith.constant dense<0.000000e+00> : vector<2x368xf32>
    %77 = tpu.matmul %74, %76, %cst_41 {dimension_numbers = #tpu.dot_dimension_numbers<[1], [0], [0], [1], [0, 0, 1, 1], [], []>} : vector<2x368xbf16>, vector<368x368xbf16>, vector<2x368xf32> -> vector<2x368xf32>
    %78 = arith.addf %52, %77 : vector<2x368xf32>
    %c6 = arith.constant 6 : index
    %c0_42 = arith.constant 0 : index
    %c0_43 = arith.constant 0 : index
    %79 = vector.load %arg1[%c6, %c0_42, %c0_43] : memref<10x2x101xbf16, #tpu.memory_space<vmem>>, vector<1x2x101xbf16>
    %80 = vector.shape_cast %79 : vector<1x2x101xbf16> to vector<2x101xbf16>
    %c7 = arith.constant 7 : index
    %c0_44 = arith.constant 0 : index
    %c0_45 = arith.constant 0 : index
    %81 = vector.load %arg1[%c7, %c0_44, %c0_45] : memref<10x2x101xbf16, #tpu.memory_space<vmem>>, vector<1x2x101xbf16>
    %82 = vector.shape_cast %81 : vector<1x2x101xbf16> to vector<2x101xbf16>
    %83 = arith.addf %80, %82 : vector<2x101xbf16>
    %cst_46 = arith.constant dense<0.000000e+00> : vector<2x368xf32>
    %84 = tpu.matmul %83, %0, %cst_46 {dimension_numbers = #tpu.dot_dimension_numbers<[1], [0], [0], [1], [0, 0, 1, 1], [], []>} : vector<2x101xbf16>, vector<101x368xbf16>, vector<2x368xf32> -> vector<2x368xf32>
    %85 = vector.broadcast %1 : vector<1x368xf32> to vector<2x368xf32>
    %86 = arith.addf %84, %85 : vector<2x368xf32>
    %cst_47 = arith.constant 5.000000e-01 : f32
    %87 = vector.broadcast %cst_47 : f32 to vector<2x368xf32>
    %88 = arith.mulf %87, %86 : vector<2x368xf32>
    %cst_48 = arith.constant 4.471500e-02 : f32
    %89 = vector.broadcast %cst_48 : f32 to vector<2x368xf32>
    %90 = arith.mulf %89, %86 : vector<2x368xf32>
    %91 = arith.mulf %90, %86 : vector<2x368xf32>
    %92 = arith.mulf %91, %86 : vector<2x368xf32>
    %93 = arith.addf %86, %92 : vector<2x368xf32>
    %cst_49 = arith.constant 0.797884583 : f32
    %94 = vector.broadcast %cst_49 : f32 to vector<2x368xf32>
    %95 = arith.mulf %94, %93 : vector<2x368xf32>
    %96 = math.tanh %95 : vector<2x368xf32>
    %cst_50 = arith.constant 1.000000e+00 : f32
    %97 = vector.broadcast %cst_50 : f32 to vector<2x368xf32>
    %98 = arith.addf %97, %96 : vector<2x368xf32>
    %99 = arith.mulf %88, %98 : vector<2x368xf32>
    %100 = arith.truncf %99 : vector<2x368xf32> to vector<2x368xbf16>
    %c3_51 = arith.constant 3 : index
    %c0_52 = arith.constant 0 : index
    %c0_53 = arith.constant 0 : index
    %101 = vector.load %arg4[%c3_51, %c0_52, %c0_53] : memref<5x368x368xbf16, #tpu.memory_space<vmem>>, vector<1x368x368xbf16>
    %102 = vector.shape_cast %101 : vector<1x368x368xbf16> to vector<368x368xbf16>
    %cst_54 = arith.constant dense<0.000000e+00> : vector<2x368xf32>
    %103 = tpu.matmul %100, %102, %cst_54 {dimension_numbers = #tpu.dot_dimension_numbers<[1], [0], [0], [1], [0, 0, 1, 1], [], []>} : vector<2x368xbf16>, vector<368x368xbf16>, vector<2x368xf32> -> vector<2x368xf32>
    %104 = arith.addf %78, %103 : vector<2x368xf32>
    %c8 = arith.constant 8 : index
    %c0_55 = arith.constant 0 : index
    %c0_56 = arith.constant 0 : index
    %105 = vector.load %arg1[%c8, %c0_55, %c0_56] : memref<10x2x101xbf16, #tpu.memory_space<vmem>>, vector<1x2x101xbf16>
    %106 = vector.shape_cast %105 : vector<1x2x101xbf16> to vector<2x101xbf16>
    %c9 = arith.constant 9 : index
    %c0_57 = arith.constant 0 : index
    %c0_58 = arith.constant 0 : index
    %107 = vector.load %arg1[%c9, %c0_57, %c0_58] : memref<10x2x101xbf16, #tpu.memory_space<vmem>>, vector<1x2x101xbf16>
    %108 = vector.shape_cast %107 : vector<1x2x101xbf16> to vector<2x101xbf16>
    %109 = arith.addf %106, %108 : vector<2x101xbf16>
    %cst_59 = arith.constant dense<0.000000e+00> : vector<2x368xf32>
    %110 = tpu.matmul %109, %0, %cst_59 {dimension_numbers = #tpu.dot_dimension_numbers<[1], [0], [0], [1], [0, 0, 1, 1], [], []>} : vector<2x101xbf16>, vector<101x368xbf16>, vector<2x368xf32> -> vector<2x368xf32>
    %111 = vector.broadcast %1 : vector<1x368xf32> to vector<2x368xf32>
    %112 = arith.addf %110, %111 : vector<2x368xf32>
    %cst_60 = arith.constant 5.000000e-01 : f32
    %113 = vector.broadcast %cst_60 : f32 to vector<2x368xf32>
    %114 = arith.mulf %113, %112 : vector<2x368xf32>
    %cst_61 = arith.constant 4.471500e-02 : f32
    %115 = vector.broadcast %cst_61 : f32 to vector<2x368xf32>
    %116 = arith.mulf %115, %112 : vector<2x368xf32>
    %117 = arith.mulf %116, %112 : vector<2x368xf32>
    %118 = arith.mulf %117, %112 : vector<2x368xf32>
    %119 = arith.addf %112, %118 : vector<2x368xf32>
    %cst_62 = arith.constant 0.797884583 : f32
    %120 = vector.broadcast %cst_62 : f32 to vector<2x368xf32>
    %121 = arith.mulf %120, %119 : vector<2x368xf32>
    %122 = math.tanh %121 : vector<2x368xf32>
    %cst_63 = arith.constant 1.000000e+00 : f32
    %123 = vector.broadcast %cst_63 : f32 to vector<2x368xf32>
    %124 = arith.addf %123, %122 : vector<2x368xf32>
    %125 = arith.mulf %114, %124 : vector<2x368xf32>
    %126 = arith.truncf %125 : vector<2x368xf32> to vector<2x368xbf16>
    %c4_64 = arith.constant 4 : index
    %c0_65 = arith.constant 0 : index
    %c0_66 = arith.constant 0 : index
    %127 = vector.load %arg4[%c4_64, %c0_65, %c0_66] : memref<5x368x368xbf16, #tpu.memory_space<vmem>>, vector<1x368x368xbf16>
    %128 = vector.shape_cast %127 : vector<1x368x368xbf16> to vector<368x368xbf16>
    %cst_67 = arith.constant dense<0.000000e+00> : vector<2x368xf32>
    %129 = tpu.matmul %126, %128, %cst_67 {dimension_numbers = #tpu.dot_dimension_numbers<[1], [0], [0], [1], [0, 0, 1, 1], [], []>} : vector<2x368xbf16>, vector<368x368xbf16>, vector<2x368xf32> -> vector<2x368xf32>
    %130 = arith.addf %104, %129 : vector<2x368xf32>
    %c0_68 = arith.constant 0 : index
    %c0_69 = arith.constant 0 : index
    %131 = vector.load %arg5[%c0_68, %c0_69] : memref<1x368xf32, #tpu.memory_space<vmem>>, vector<1x368xf32>
    %132 = vector.broadcast %131 : vector<1x368xf32> to vector<2x368xf32>
    %133 = arith.addf %130, %132 : vector<2x368xf32>
    %cst_70 = arith.constant 5.000000e-01 : f32
    %134 = vector.broadcast %cst_70 : f32 to vector<2x368xf32>
    %135 = arith.mulf %134, %133 : vector<2x368xf32>
    %cst_71 = arith.constant 4.471500e-02 : f32
    %136 = vector.broadcast %cst_71 : f32 to vector<2x368xf32>
    %137 = arith.mulf %136, %133 : vector<2x368xf32>
    %138 = arith.mulf %137, %133 : vector<2x368xf32>
    %139 = arith.mulf %138, %133 : vector<2x368xf32>
    %140 = arith.addf %133, %139 : vector<2x368xf32>
    %cst_72 = arith.constant 0.797884583 : f32
    %141 = vector.broadcast %cst_72 : f32 to vector<2x368xf32>
    %142 = arith.mulf %141, %140 : vector<2x368xf32>
    %143 = math.tanh %142 : vector<2x368xf32>
    %cst_73 = arith.constant 1.000000e+00 : f32
    %144 = vector.broadcast %cst_73 : f32 to vector<2x368xf32>
    %145 = arith.addf %144, %143 : vector<2x368xf32>
    %146 = arith.mulf %135, %145 : vector<2x368xf32>
    %147 = arith.truncf %146 : vector<2x368xf32> to vector<2x368xbf16>
    %c0_74 = arith.constant 0 : index
    %c0_75 = arith.constant 0 : index
    %148 = vector.load %arg6[%c0_74, %c0_75] : memref<368x256xbf16, #tpu.memory_space<vmem>>, vector<368x256xbf16>
    %cst_76 = arith.constant dense<0.000000e+00> : vector<2x256xf32>
    %149 = tpu.matmul %147, %148, %cst_76 {dimension_numbers = #tpu.dot_dimension_numbers<[1], [0], [0], [1], [0, 0, 1, 1], [], []>} : vector<2x368xbf16>, vector<368x256xbf16>, vector<2x256xf32> -> vector<2x256xf32>
    %c0_77 = arith.constant 0 : index
    %c0_78 = arith.constant 0 : index
    %150 = vector.load %arg7[%c0_77, %c0_78] : memref<1x256xf32, #tpu.memory_space<vmem>>, vector<1x256xf32>
    %151 = vector.broadcast %150 : vector<1x256xf32> to vector<2x256xf32>
    %152 = arith.addf %149, %151 : vector<2x256xf32>
    %cst_79 = arith.constant 5.000000e-01 : f32
    %153 = vector.broadcast %cst_79 : f32 to vector<2x256xf32>
    %154 = arith.mulf %153, %152 : vector<2x256xf32>
    %cst_80 = arith.constant 4.471500e-02 : f32
    %155 = vector.broadcast %cst_80 : f32 to vector<2x256xf32>
    %156 = arith.mulf %155, %152 : vector<2x256xf32>
    %157 = arith.mulf %156, %152 : vector<2x256xf32>
    %158 = arith.mulf %157, %152 : vector<2x256xf32>
    %159 = arith.addf %152, %158 : vector<2x256xf32>
    %cst_81 = arith.constant 0.797884583 : f32
    %160 = vector.broadcast %cst_81 : f32 to vector<2x256xf32>
    %161 = arith.mulf %160, %159 : vector<2x256xf32>
    %162 = math.tanh %161 : vector<2x256xf32>
    %cst_82 = arith.constant 1.000000e+00 : f32
    %163 = vector.broadcast %cst_82 : f32 to vector<2x256xf32>
    %164 = arith.addf %163, %162 : vector<2x256xf32>
    %165 = arith.mulf %154, %164 : vector<2x256xf32>
    %c0_83 = arith.constant 0 : index
    %c0_84 = arith.constant 0 : index
    %166 = vector.load %arg8[%c0_83, %c0_84] : memref<256x16xf32, #tpu.memory_space<vmem>>, vector<256x16xf32>
    %cst_85 = arith.constant dense<0.000000e+00> : vector<2x16xf32>
    %167 = tpu.matmul %165, %166, %cst_85 {dimension_numbers = #tpu.dot_dimension_numbers<[1], [0], [0], [1], [0, 0, 1, 1], [], []>} : vector<2x256xf32>, vector<256x16xf32>, vector<2x16xf32> -> vector<2x16xf32>
    %c0_86 = arith.constant 0 : index
    %c0_87 = arith.constant 0 : index
    %168 = vector.load %arg9[%c0_86, %c0_87] : memref<1x16xf32, #tpu.memory_space<vmem>>, vector<1x16xf32>
    %169 = vector.broadcast %168 : vector<1x16xf32> to vector<2x16xf32>
    %170 = arith.addf %167, %169 : vector<2x16xf32>
    %c0_88 = arith.constant 0 : index
    %c0_89 = arith.constant 0 : index
    %171 = vector.load %arg12[%c0_88, %c0_89] : memref<2x16xf32, #tpu.memory_space<vmem>>, vector<2x16xf32>
    tpu.vector_store %arg12[%c0_88, %c0_89], %170 {strides = array<i32>} : memref<2x16xf32, #tpu.memory_space<vmem>>, vector<2x16xf32>,
    %c0_90 = arith.constant 0 : index
    %c0_91 = arith.constant 0 : index
    %172 = vector.load %arg10[%c0_90, %c0_91] : memref<256x16xf32, #tpu.memory_space<vmem>>, vector<256x16xf32>
    %cst_92 = arith.constant dense<0.000000e+00> : vector<2x16xf32>
    %173 = tpu.matmul %165, %172, %cst_92 {dimension_numbers = #tpu.dot_dimension_numbers<[1], [0], [0], [1], [0, 0, 1, 1], [], []>} : vector<2x256xf32>, vector<256x16xf32>, vector<2x16xf32> -> vector<2x16xf32>
    %c0_93 = arith.constant 0 : index
    %c0_94 = arith.constant 0 : index
    %174 = vector.load %arg11[%c0_93, %c0_94] : memref<1x16xf32, #tpu.memory_space<vmem>>, vector<1x16xf32>
    %175 = vector.broadcast %174 : vector<1x16xf32> to vector<2x16xf32>
    %176 = arith.addf %173, %175 : vector<2x16xf32>
    %177 = math.exp %176 : vector<2x16xf32>
    %c0_95 = arith.constant 0 : index
    %c0_96 = arith.constant 0 : index
    %178 = vector.load %arg13[%c0_95, %c0_96] : memref<2x16xf32, #tpu.memory_space<vmem>>, vector<2x16xf32>
    tpu.vector_store %arg13[%c0_95, %c0_96], %177 {strides = array<i32>} : memref<2x16xf32, #tpu.memory_space<vmem>>, vector<2x16xf32>,
    return
  }
  func.func @transform_0(%arg0: i32) -> (i32, i32, i32) {
    %c0_i32 = arith.constant 0 : i32
    %c0_i32_0 = arith.constant 0 : i32
    %c0_i32_1 = arith.constant 0 : i32
    return %c0_i32, %arg0, %c0_i32_0 : i32, i32, i32
  }
  func.func @transform_1(%arg0: i32) -> (i32, i32) {
    %c0_i32 = arith.constant 0 : i32
    %c0_i32_0 = arith.constant 0 : i32
    %c0_i32_1 = arith.constant 0 : i32
    return %c0_i32, %c0_i32_0 : i32, i32
  }
  func.func @transform_2(%arg0: i32) -> (i32, i32) {
    %c0_i32 = arith.constant 0 : i32
    %c0_i32_0 = arith.constant 0 : i32
    %c0_i32_1 = arith.constant 0 : i32
    return %c0_i32, %c0_i32_0 : i32, i32
  }
  func.func @transform_3(%arg0: i32) -> (i32, i32, i32) {
    %c0_i32 = arith.constant 0 : i32
    %c0_i32_0 = arith.constant 0 : i32
    %c0_i32_1 = arith.constant 0 : i32
    %c0_i32_2 = arith.constant 0 : i32
    return %c0_i32, %c0_i32_0, %c0_i32_1 : i32, i32, i32
  }
  func.func @transform_4(%arg0: i32) -> (i32, i32) {
    %c0_i32 = arith.constant 0 : i32
    %c0_i32_0 = arith.constant 0 : i32
    %c0_i32_1 = arith.constant 0 : i32
    return %c0_i32, %c0_i32_0 : i32, i32
  }
  func.func @transform_5(%arg0: i32) -> (i32, i32) {
    %c0_i32 = arith.constant 0 : i32
    %c0_i32_0 = arith.constant 0 : i32
    %c0_i32_1 = arith.constant 0 : i32
    return %c0_i32, %c0_i32_0 : i32, i32
  }
  func.func @transform_6(%arg0: i32) -> (i32, i32) {
    %c0_i32 = arith.constant 0 : i32
    %c0_i32_0 = arith.constant 0 : i32
    %c0_i32_1 = arith.constant 0 : i32
    return %c0_i32, %c0_i32_0 : i32, i32
  }
  func.func @transform_7(%arg0: i32) -> (i32, i32) {
    %c0_i32 = arith.constant 0 : i32
    %c0_i32_0 = arith.constant 0 : i32
    %c0_i32_1 = arith.constant 0 : i32
    return %c0_i32, %c0_i32_0 : i32, i32
  }
  func.func @transform_8(%arg0: i32) -> (i32, i32) {
    %c0_i32 = arith.constant 0 : i32
    %c0_i32_0 = arith.constant 0 : i32
    %c0_i32_1 = arith.constant 0 : i32
    return %c0_i32, %c0_i32_0 : i32, i32
  }
  func.func @transform_9(%arg0: i32) -> (i32, i32) {
    %c0_i32 = arith.constant 0 : i32
    %c0_i32_0 = arith.constant 0 : i32
    %c0_i32_1 = arith.constant 0 : i32
    return %c0_i32, %c0_i32_0 : i32, i32
  }
  func.func @transform_10(%arg0: i32) -> (i32, i32) {
    %c0_i32 = arith.constant 0 : i32
    %c0_i32_0 = arith.constant 0 : i32
    %c0_i32_1 = arith.constant 0 : i32
    return %c0_i32, %c0_i32_0 : i32, i32
  }
  func.func @transform_11(%arg0: i32) -> (i32, i32) {
    %c0_i32 = arith.constant 0 : i32
    %c0_i32_0 = arith.constant 0 : i32
    return %arg0, %c0_i32 : i32, i32
  }
  func.func @transform_12(%arg0: i32) -> (i32, i32) {
    %c0_i32 = arith.constant 0 : i32
    %c0_i32_0 = arith.constant 0 : i32
    return %arg0, %c0_i32 : i32, i32
  }
}

</mosaic_0001>

<llo_original>
// kernel: encoder_forward.1
$region0: #{encoder_forward.1}
  #allocation0 [shape = 'u32[]', space=smem, size = 0x4, offset = 0x4, fixed_abs, tag = 'smem constant byte address 0x4 - core index']
  #allocation1 [shape = 'u32[144,128]{1,0:T(1,128)}', space=vmem, size = 0x12000, scoped, tag = 'internal scratch']
  %s0 = inlined_call_operand.vmem [shape: bf16[10,2,101], index: 0, kind: input, shape index: {}]
  %s1 = inlined_call_operand.hbm [shape: bf16[101,368], index: 1, kind: input, shape index: {}]
  %s2 = inlined_call_operand.hbm [shape: f32[1,368], index: 2, kind: input, shape index: {}]
  %s3 = inlined_call_operand.hbm [shape: bf16[5,368,368], index: 3, kind: input, shape index: {}]
  %s4 = inlined_call_operand.hbm [shape: f32[1,368], index: 4, kind: input, shape index: {}]
  %s5 = inlined_call_operand.hbm [shape: bf16[368,256], index: 5, kind: input, shape index: {}]
  %s6 = inlined_call_operand.hbm [shape: f32[1,256], index: 6, kind: input, shape index: {}]
  %s7 = inlined_call_operand.vmem [shape: f32[256,16], index: 7, kind: input, shape index: {}]
  %s8 = inlined_call_operand.hbm [shape: f32[1,16], index: 8, kind: input, shape index: {}]
  %s9 = inlined_call_operand.vmem [shape: f32[256,16], index: 9, kind: input, shape index: {}]
  %s10 = inlined_call_operand.hbm [shape: f32[1,16], index: 10, kind: input, shape index: {}]
  %s11 = inlined_call_operand.hbm [shape: f32[2,16], index: 11, kind: output, shape index: {0}]
  %s12 = inlined_call_operand.hbm [shape: f32[2,16], index: 12, kind: output, shape index: {1}]
  %13 = xla_tuple %s11, %s12
  %s14 = sld [smem:[#allocation0]]
  $region94: #{encoder_forward.1} parent=0
    _
  %s16 = ssub.s32 1, %s14
  %s17 = scalar_select 0, %s16, %s14
  $region1: #{encoder_forward.1} parent=0
    #allocation2 [shape = 'u8[79872]{0}', space=vmem, size = 0x13800, scoped, tag = 'input window, operand 1, single buffered']
    #allocation3 [shape = 's32[1]{0}', space=sflag, size = 0x4, scoped, tag = 'scoped memory for encoder_forward.1']
    #allocation4 [shape = 's32[1]{0}', space=sflag, size = 0x4, scoped, tag = 'scoped memory for encoder_forward.1']
    #allocation5 [shape = 'u8[1536]{0}', space=vmem, size = 0x800, scoped, tag = 'input window, operand 2, single buffered']
    #allocation6 [shape = 's32[1]{0}', space=sflag, size = 0x4, scoped, tag = 'scoped memory for encoder_forward.1']
    #allocation7 [shape = 'u8[1413120]{0}', space=vmem, size = 0x159000, scoped, tag = 'input window, operand 3, single buffered']
    #allocation8 [shape = 'u8[1536]{0}', space=vmem, size = 0x800, scoped, tag = 'input window, operand 4, single buffered']
    #allocation9 [shape = 's32[1]{0}', space=sflag, size = 0x4, scoped, tag = 'scoped memory for encoder_forward.1']
    #allocation10 [shape = 'u8[188416]{0}', space=vmem, size = 0x2e000, scoped, tag = 'input window, operand 5, single buffered']
    #allocation11 [shape = 'u8[1024]{0}', space=vmem, size = 0x400, scoped, tag = 'input window, operand 6, single buffered']
    #allocation12 [shape = 's32[1]{0}', space=sflag, size = 0x4, scoped, tag = 'scoped memory for encoder_forward.1']
    #allocation13 [shape = 'u8[512]{0}', space=vmem, size = 0x400, scoped, tag = 'input window, operand 8, single buffered']
    #allocation14 [shape = 'u8[512]{0}', space=vmem, size = 0x400, scoped, tag = 'input window, operand 10, single buffered']
    #allocation15 [shape = 's32[1]{0}', space=sflag, size = 0x4, scoped, tag = 'scoped memory for encoder_forward.1']
    #allocation16 [shape = 'u8[1024]{0}', space=vmem, size = 0x400, scoped, tag = 'output window, operand 0, single buffered']
    #allocation17 [shape = 'u8[1024]{0}', space=vmem, size = 0x400, scoped, tag = 'output window, operand 1, single buffered']
    #allocation18 [shape = 's32[1]{0}', space=sflag, size = 0x4, scoped, tag = 'scoped memory for encoder_forward.1']
    %18 = vsyncpa [#allocation3], 0
    %19 = vsyncpa [#allocation6], 0
    %20 = vsyncpa [#allocation9], 0
    %21 = vsyncpa [#allocation12], 0
    %22 = vsyncpa [#allocation15], 0
    %23 = vsyncpa [#allocation4], 0
    %24 = vsyncpa [#allocation18], 0
    // Predicated region
    $region2: #{encoder_forward.1} parent=1 // pred_check
      _
    $region3: #{encoder_forward.1} parent=1 // pred_check_branch
      %26 = sbr.rel (0) target = $region5
    $region4: #{encoder_forward.1} parent=1 // pred_region
      _
    $region5: #{encoder_forward.1} parent=1 // pred_fallthru
      _
    // Predicated region
    $region6: #{encoder_forward.1} parent=1 // pred_check
      _
    $region7: #{encoder_forward.1} parent=1 // pred_check_branch
      %28 = sbr.rel (0) target = $region9
    $region8: #{encoder_forward.1} parent=1 // pred_region
      %s30 = ssub.s32 2496, 2496
      %31 = vsyncadd [#allocation3], %s30
      %s32 = sshll.u32 [#allocation2], 4
      %s33 = int_to_ptr.vmem [resolvable:$true] %s32
      %38 = dma.hbm_to_vmem [thread:$0]  %s1, 2496, %s33, [#allocation3], 192, 192, 12
    $region9: #{encoder_forward.1} parent=1 // pred_fallthru
      _
    // Predicated region
    $region10: #{encoder_forward.1} parent=1 // pred_check
      _
    $region11: #{encoder_forward.1} parent=1 // pred_check_branch
      %40 = sbr.rel (0) target = $region13
    $region12: #{encoder_forward.1} parent=1 // pred_region
      %s42 = ssub.s32 48, 48
      %43 = vsyncadd [#allocation6], %s42
      %s45 = sshll.u32 [#allocation5], 4
      %s46 = int_to_ptr.vmem [resolvable:$true] %s45
      %48 = dma.hbm_to_vmem [thread:$0]  %s2, 48, %s46, [#allocation6]
    $region13: #{encoder_forward.1} parent=1 // pred_fallthru
      _
    // Predicated region
    $region14: #{encoder_forward.1} parent=1 // pred_check
      _
    $region15: #{encoder_forward.1} parent=1 // pred_check_branch
      %50 = sbr.rel (0) target = $region17
    $region16: #{encoder_forward.1} parent=1 // pred_region
      %s52 = ssub.s32 44160, 44160
      %53 = vsyncadd [#allocation6], %s52
      %s54 = sshll.u32 [#allocation7], 4
      %s55 = int_to_ptr.vmem [resolvable:$true] %s54
      %60 = dma.hbm_to_vmem [thread:$0]  %s3, 44160, %s55, [#allocation6], 192, 192, 12
    $region17: #{encoder_forward.1} parent=1 // pred_fallthru
      _
    // Predicated region
    $region18: #{encoder_forward.1} parent=1 // pred_check
      _
    $region19: #{encoder_forward.1} parent=1 // pred_check_branch
      %62 = sbr.rel (0) target = $region21
    $region20: #{encoder_forward.1} parent=1 // pred_region
      %s64 = ssub.s32 48, 48
      %65 = vsyncadd [#allocation9], %s64
      %s67 = sshll.u32 [#allocation8], 4
      %s68 = int_to_ptr.vmem [resolvable:$true] %s67
      %70 = dma.hbm_to_vmem [thread:$0]  %s4, 48, %s68, [#allocation9]
    $region21: #{encoder_forward.1} parent=1 // pred_fallthru
      _
    // Predicated region
    $region22: #{encoder_forward.1} parent=1 // pred_check
      _
    $region23: #{encoder_forward.1} parent=1 // pred_check_branch
      %72 = sbr.rel (0) target = $region25
    $region24: #{encoder_forward.1} parent=1 // pred_region
      %s74 = ssub.s32 5888, 5888
      %75 = vsyncadd [#allocation9], %s74
      %s76 = sshll.u32 [#allocation10], 4
      %s77 = int_to_ptr.vmem [resolvable:$true] %s76
      %82 = dma.hbm_to_vmem [thread:$0]  %s5, 5888, %s77, [#allocation9], 128, 128, 8
    $region25: #{encoder_forward.1} parent=1 // pred_fallthru
      _
    // Predicated region
    $region26: #{encoder_forward.1} parent=1 // pred_check
      _
    $region27: #{encoder_forward.1} parent=1 // pred_check_branch
      %84 = sbr.rel (0) target = $region29
    $region28: #{encoder_forward.1} parent=1 // pred_region
      %s86 = ssub.s32 32, 32
      %87 = vsyncadd [#allocation12], %s86
      %s89 = sshll.u32 [#allocation11], 4
      %s90 = int_to_ptr.vmem [resolvable:$true] %s89
      %92 = dma.hbm_to_vmem [thread:$0]  %s6, 32, %s90, [#allocation12]
    $region29: #{encoder_forward.1} parent=1 // pred_fallthru
      _
    // Predicated region
    $region30: #{encoder_forward.1} parent=1 // pred_check
      _
    $region31: #{encoder_forward.1} parent=1 // pred_check_branch
      %94 = sbr.rel (0) target = $region33
    $region32: #{encoder_forward.1} parent=1 // pred_region
      _
    $region33: #{encoder_forward.1} parent=1 // pred_fallthru
      _
    // Predicated region
    $region34: #{encoder_forward.1} parent=1 // pred_check
      _
    $region35: #{encoder_forward.1} parent=1 // pred_check_branch
      %96 = sbr.rel (0) target = $region37
    $region36: #{encoder_forward.1} parent=1 // pred_region
      %s98 = ssub.s32 16, 16
      %99 = vsyncadd [#allocation12], %s98
      %s101 = sshll.u32 [#allocation13], 4
      %s102 = int_to_ptr.vmem [resolvable:$true] %s101
      %104 = dma.hbm_to_vmem [thread:$0]  %s8, 16, %s102, [#allocation12]
    $region37: #{encoder_forward.1} parent=1 // pred_fallthru
      _
    // Predicated region
    $region38: #{encoder_forward.1} parent=1 // pred_check
      _
    $region39: #{encoder_forward.1} parent=1 // pred_check_branch
      %106 = sbr.rel (0) target = $region41
    $region40: #{encoder_forward.1} parent=1 // pred_region
      _
    $region41: #{encoder_forward.1} parent=1 // pred_fallthru
      _
    // Predicated region
    $region42: #{encoder_forward.1} parent=1 // pred_check
      _
    $region43: #{encoder_forward.1} parent=1 // pred_check_branch
      %108 = sbr.rel (0) target = $region45
    $region44: #{encoder_forward.1} parent=1 // pred_region
      %s110 = ssub.s32 16, 16
      %111 = vsyncadd [#allocation15], %s110
      %s113 = sshll.u32 [#allocation14], 4
      %s114 = int_to_ptr.vmem [resolvable:$true] %s113
      %116 = dma.hbm_to_vmem [thread:$0]  %s10, 16, %s114, [#allocation15]
    $region45: #{encoder_forward.1} parent=1 // pred_fallthru
      _
    // Predicated region
    $region46: #{encoder_forward.1} parent=1 // pred_check
      _
    $region47: #{encoder_forward.1} parent=1 // pred_check_branch
      %118 = sbr.rel (0) target = $region49
    $region48: #{encoder_forward.1} parent=1 // pred_region
      %119 = dma.done [#allocation3], 2496
    $region49: #{encoder_forward.1} parent=1 // pred_fallthru
      _
    // Predicated region
    $region50: #{encoder_forward.1} parent=1 // pred_check
      _
    $region51: #{encoder_forward.1} parent=1 // pred_check_branch
      %121 = sbr.rel (0) target = $region53
    $region52: #{encoder_forward.1} parent=1 // pred_region
      %122 = dma.done [#allocation6], 48
    $region53: #{encoder_forward.1} parent=1 // pred_fallthru
      _
    // Predicated region
    $region54: #{encoder_forward.1} parent=1 // pred_check
      _
    $region55: #{encoder_forward.1} parent=1 // pred_check_branch
      %124 = sbr.rel (0) target = $region57
    $region56: #{encoder_forward.1} parent=1 // pred_region
      %125 = dma.done [#allocation6], 44160
    $region57: #{encoder_forward.1} parent=1 // pred_fallthru
      _
    // Predicated region
    $region58: #{encoder_forward.1} parent=1 // pred_check
      _
    $region59: #{encoder_forward.1} parent=1 // pred_check_branch
      %127 = sbr.rel (0) target = $region61
    $region60: #{encoder_forward.1} parent=1 // pred_region
      %128 = dma.done [#allocation9], 48
    $region61: #{encoder_forward.1} parent=1 // pred_fallthru
      _
    // Predicated region
    $region62: #{encoder_forward.1} parent=1 // pred_check
      _
    $region63: #{encoder_forward.1} parent=1 // pred_check_branch
      %130 = sbr.rel (0) target = $region65
    $region64: #{encoder_forward.1} parent=1 // pred_region
      %131 = dma.done [#allocation9], 5888
    $region65: #{encoder_forward.1} parent=1 // pred_fallthru
      _
    // Predicated region
    $region66: #{encoder_forward.1} parent=1 // pred_check
      _
    $region67: #{encoder_forward.1} parent=1 // pred_check_branch
      %133 = sbr.rel (0) target = $region69
    $region68: #{encoder_forward.1} parent=1 // pred_region
      %134 = dma.done [#allocation12], 32
    $region69: #{encoder_forward.1} parent=1 // pred_fallthru
      _
    // Predicated region
    $region70: #{encoder_forward.1} parent=1 // pred_check
      _
    $region71: #{encoder_forward.1} parent=1 // pred_check_branch
      %136 = sbr.rel (0) target = $region73
    $region72: #{encoder_forward.1} parent=1 // pred_region
      %137 = dma.done [#allocation12], 16
    $region73: #{encoder_forward.1} parent=1 // pred_fallthru
      _
    // Predicated region
    $region74: #{encoder_forward.1} parent=1 // pred_check
      _
    $region75: #{encoder_forward.1} parent=1 // pred_check_branch
      %139 = sbr.rel (0) target = $region77
    $region76: #{encoder_forward.1} parent=1 // pred_region
      %140 = dma.done [#allocation15], 16
    $region77: #{encoder_forward.1} parent=1 // pred_fallthru
      _
    %v142 = vld [vmem:[#allocation2] sm:$0xff]
    %v143 = vld [vmem:[#allocation2 + $0x8] sm:$0xf]
    %v144 = vld [vmem:[#allocation2 + $0xc] sm:$0xff]
    %v145 = vld [vmem:[#allocation2 + $0x14] sm:$0xf]
    %v146 = vld [vmem:[#allocation2 + $0x18] sm:$0xff]
    %v147 = vld [vmem:[#allocation2 + $0x20] sm:$0xf]
    %v148 = vld [vmem:[#allocation2 + $0x24] sm:$0xff]
    %v149 = vld [vmem:[#allocation2 + $0x2c] sm:$0xf]
    %v150 = vld [vmem:[#allocation2 + $0x30] sm:$0xff]
    %v151 = vld [vmem:[#allocation2 + $0x38] sm:$0xf]
    %v152 = vld [vmem:[#allocation2 + $0x3c] sm:$0xff]
    %v153 = vld [vmem:[#allocation2 + $0x44] sm:$0xf]
    %v154 = vld [vmem:[#allocation2 + $0x48] sm:$0xff]
    %v155 = vld [vmem:[#allocation2 + $0x50] sm:$0xf]
    %v156 = vld [vmem:[#allocation2 + $0x54] sm:$0xff]
    %v157 = vld [vmem:[#allocation2 + $0x5c] sm:$0xf]
    %v158 = vld [vmem:[#allocation2 + $0x60] sm:$0xff]
    %v159 = vld [vmem:[#allocation2 + $0x68] sm:$0xf]
    %v160 = vld [vmem:[#allocation2 + $0x6c] sm:$0xff]
    %v161 = vld [vmem:[#allocation2 + $0x74] sm:$0xf]
    %v162 = vld [vmem:[#allocation2 + $0x78] sm:$0xff]
    %v163 = vld [vmem:[#allocation2 + $0x80] sm:$0xf]
    %v164 = vld [vmem:[#allocation2 + $0x84] sm:$0xff]
    %v165 = vld [vmem:[#allocation2 + $0x8c] sm:$0xf]
    %v166 = vld [vmem:[#allocation2 + $0x90] sm:$0x77]
    %v167 = vld [vmem:[#allocation2 + $0x98] sm:$0x7]
    %v168 = vld [vmem:[#allocation5] sm:$0x7]
    %v169 = vld [vmem:[%s0] sm:$0x1]
    %s170 = scalar_lea.vmem %s0, 1
    %v171 = vld [vmem:[%s170] sm:$0x1]
    %v172 = vadd.bf16 %v169, %v171
    %v174 = vlaneseq
    %v175 = vshrl.u32 %v174, 7
    %v176 = vsub.s32 0, %v175
    %v177 = vrot.slane %v168, %v176
    %v178 = vlaneseq
    %v179 = vshrl.u32 %v178, 7
    %v180 = vsub.s32 1, %v179
    %v181 = vrot.slane %v168, %v180
    %v182 = vlaneseq
    %v183 = vshrl.u32 %v182, 7
    %v184 = vsub.s32 2, %v183
    %v185 = vrot.slane %v168, %v184
    %v215 = vunpack.c.l.b16 %v142
    %v216 = vunpack.c.h.b16 %v142
    %v217 = vunpack.c.l.b16 %v143
    %v218 = vunpack.c.l.b16 %v144
    %v219 = vunpack.c.h.b16 %v144
    %v220 = vunpack.c.l.b16 %v145
    %v221 = vunpack.c.l.b16 %v146
    %v222 = vunpack.c.h.b16 %v146
    %v223 = vunpack.c.l.b16 %v147
    %v224 = vunpack.c.l.b16 %v148
    %v225 = vunpack.c.h.b16 %v148
    %v226 = vunpack.c.l.b16 %v149
    %v227 = vunpack.c.l.b16 %v150
    %v228 = vunpack.c.h.b16 %v150
    %v229 = vunpack.c.l.b16 %v151
    %v230 = vunpack.c.l.b16 %v152
    %v231 = vunpack.c.h.b16 %v152
    %v232 = vunpack.c.l.b16 %v153
    %v233 = vunpack.c.l.b16 %v154
    %v234 = vunpack.c.h.b16 %v154
    %v235 = vunpack.c.l.b16 %v155
    %v236 = vunpack.c.l.b16 %v156
    %v237 = vunpack.c.h.b16 %v156
    %v238 = vunpack.c.l.b16 %v157
    %v239 = vunpack.c.l.b16 %v158
    %v240 = vunpack.c.h.b16 %v158
    %v241 = vunpack.c.l.b16 %v159
    %v242 = vunpack.c.l.b16 %v160
    %v243 = vunpack.c.h.b16 %v160
    %v244 = vunpack.c.l.b16 %v161
    %v245 = vunpack.c.l.b16 %v162
    %v246 = vunpack.c.h.b16 %v162
    %v247 = vunpack.c.l.b16 %v163
    %v248 = vunpack.c.l.b16 %v164
    %v249 = vunpack.c.h.b16 %v164
    %v250 = vunpack.c.l.b16 %v165
    %v251 = vunpack.c.l.b16 %v166
    %v252 = vunpack.c.h.b16 %v166
    %v253 = vunpack.c.l.b16 %v167
    %v254 = vpack.c.b16 %v218, %v215
    %v255 = vpack.c.b16 %v219, %v216
    %v256 = vpack.c.b16 %v220, %v217
    %v257 = vpack.c.b16 %v224, %v221
    %v258 = vpack.c.b16 %v225, %v222
    %v259 = vpack.c.b16 %v226, %v223
    %v260 = vpack.c.b16 %v230, %v227
    %v261 = vpack.c.b16 %v231, %v228
    %v262 = vpack.c.b16 %v232, %v229
    %v263 = vpack.c.b16 %v236, %v233
    %v264 = vpack.c.b16 %v237, %v234
    %v265 = vpack.c.b16 %v238, %v235
    %v266 = vpack.c.b16 %v242, %v239
    %v267 = vpack.c.b16 %v243, %v240
    %v268 = vpack.c.b16 %v244, %v241
    %v269 = vpack.c.b16 %v248, %v245
    %v270 = vpack.c.b16 %v249, %v246
    %v271 = vpack.c.b16 %v250, %v247
    %v272 = vpack.c.b16 %v251, %v251
    %v273 = vpack.c.b16 %v252, %v252
    %v274 = vpack.c.b16 %v253, %v253
    %vm293 = vcmask 826368
    %v295 = vsel %vm293, %v172, 0
    %vm297 = vcmask 1041408
    %vm298 = vcmask 1042432
    %v299 = vsel %vm297, 4294967295, 65535
    %v300 = vsel %vm298, %v299, 0
    %v302 = vand.u32 %v272, %v300
    %v305 = vand.u32 %v273, %v300
    %v308 = vand.u32 %v274, %v300
    %310 = vmatprep.subr.bf16.mxu0 %v255
    %311 = vmatpush1.bf16.msra.mxu0 %v254
    %312 = vmatprep.subr.bf16.mxu0 %v258
    %313 = vmatpush1.bf16.msra.mxu0 %v257
    %314 = vmatprep.subr.bf16.mxu0 %v261
    %315 = vmatpush1.bf16.msra.mxu0 %v260
    %316 = vmatprep.subr.bf16.mxu0 %v264
    %317 = vmatpush1.bf16.msra.mxu0 %v263
    %318 = vmatprep.subr.bf16.mxu0 %v267
    %319 = vmatpush1.bf16.msra.mxu0 %v266
    %320 = vmatprep.subr.bf16.mxu0 %v270
    %321 = vmatpush1.bf16.msra.mxu0 %v269
    %322 = vmatprep.subr.bf16.mxu0 %v305
    %323 = vmatpush1.bf16.msra.mxu0 %v302
    %324 = vmatprep.subr.bf16.mxu0 0
    %325 = vmatpush1.bf16.msra.mxu0 0
    %326 = vmatprep.subr.bf16.mxu0 0
    %327 = vmatpush1.bf16.msra.mxu0 0
    %328 = vmatprep.subr.bf16.mxu0 0
    %329 = vmatpush1.bf16.msra.mxu0 0
    %330 = vmatprep.subr.bf16.mxu0 0
    %331 = vmatpush1.bf16.msra.mxu0 0
    %332 = vmatprep.subr.bf16.mxu0 0
    %333 = vmatpush1.bf16.msra.mxu0 0
    %334 = vmatprep.subr.bf16.mxu0 0
    %335 = vmatpush1.bf16.msra.mxu0 0
    %336 = vmatprep.subr.bf16.mxu0 0
    %337 = vmatpush1.bf16.msra.mxu0 0
    %338 = vmatprep.subr.bf16.mxu0 0
    %339 = vmatpush1.bf16.msra.mxu0 0
    %340 = vmatprep.subr.bf16.mxu0 0
    %341 = vmatpush1.bf16.msra.mxu0 0
    %342 = vmatprep.mubr.bf16.mxu0 0
    %343 = vmatmul.mubr.bf16.gmra.mrb[0].mxu0 %v295
    %v344 = vpop.f32.mrb[0].mxu0
    %v345 = vadd.f32 %v177, %v344
    %v346 = vpop.f32.mrb[0].mxu0
    %v347 = vadd.f32 %v181, %v346
    %v348 = vpop.f32.mrb[0].mxu0
    %v349 = vpop.f32.mrb[0].mxu0
    %350 = vdwg.mxu0
    %351 = vmatprep.subr.bf16.mxu0 0
    %352 = vmatpush1.bf16.msra.mxu0 %v256
    %353 = vmatprep.subr.bf16.mxu0 0
    %354 = vmatpush1.bf16.msra.mxu0 %v259
    %355 = vmatprep.subr.bf16.mxu0 0
    %356 = vmatpush1.bf16.msra.mxu0 %v262
    %357 = vmatprep.subr.bf16.mxu0 0
    %358 = vmatpush1.bf16.msra.mxu0 %v265
    %359 = vmatprep.subr.bf16.mxu0 0
    %360 = vmatpush1.bf16.msra.mxu0 %v268
    %361 = vmatprep.subr.bf16.mxu0 0
    %362 = vmatpush1.bf16.msra.mxu0 %v271
    %363 = vmatprep.subr.bf16.mxu0 0
    %364 = vmatpush1.bf16.msra.mxu0 %v308
    %365 = vmatprep.subr.bf16.mxu0 0
    %366 = vmatpush1.bf16.msra.mxu0 0
    %367 = vmatprep.subr.bf16.mxu0 0
    %368 = vmatpush1.bf16.msra.mxu0 0
    %369 = vmatprep.subr.bf16.mxu0 0
    %370 = vmatpush1.bf16.msra.mxu0 0
    %371 = vmatprep.subr.bf16.mxu0 0
    %372 = vmatpush1.bf16.msra.mxu0 0
    %373 = vmatprep.subr.bf16.mxu0 0
    %374 = vmatpush1.bf16.msra.mxu0 0
    %375 = vmatprep.subr.bf16.mxu0 0
    %376 = vmatpush1.bf16.msra.mxu0 0
    %377 = vmatprep.subr.bf16.mxu0 0
    %378 = vmatpush1.bf16.msra.mxu0 0
    %379 = vmatprep.subr.bf16.mxu0 0
    %380 = vmatpush1.bf16.msra.mxu0 0
    %381 = vmatprep.subr.bf16.mxu0 0
    %382 = vmatpush1.bf16.msra.mxu0 0
    %383 = vmatprep.mubr.bf16.mxu0 0
    %384 = vmatmul.mubr.bf16.gmra.mrb[0].mxu0 %v295
    %v385 = vpop.f32.mrb[0].mxu0
    %v386 = vadd.f32 %v185, %v385
    %v387 = vpop.f32.mrb[0].mxu0
    %v388 = vpop.f32.mrb[0].mxu0
    %v389 = vpop.f32.mrb[0].mxu0
    %390 = vdwg.mxu0
    %v391 = vmul.f32 %v345, 0.5
    %v392 = vmul.f32 %v347, 0.5
    %v393 = vmul.f32 %v386, 0.5
    %v394 = vmul.f32 %v345, 0.044715
    %v395 = vmul.f32 %v347, 0.044715
    %v396 = vmul.f32 %v386, 0.044715
    %v397 = vmul.f32 %v394, %v345
    %v398 = vmul.f32 %v395, %v347
    %v399 = vmul.f32 %v396, %v386
    %v400 = vmul.f32 %v397, %v345
    %v401 = vmul.f32 %v398, %v347
    %v402 = vmul.f32 %v399, %v386
    %v403 = vadd.f32 %v345, %v400
    %v404 = vadd.f32 %v347, %v401
    %v405 = vadd.f32 %v386, %v402
    %v406 = vmul.f32 %v403, 0.7978846
    %v407 = vmul.f32 %v404, 0.7978846
    %v408 = vmul.f32 %v405, 0.7978846
    %v409 = vtanh.pop %v406
    %v410 = vtanh.pop %v407
    %v411 = vtanh.pop %v408
    %v412 = vadd.f32 %v409, 1.0
    %v413 = vadd.f32 %v410, 1.0
    %v414 = vadd.f32 %v411, 1.0
    %v415 = vmul.f32 %v391, %v412
    %v416 = vmul.f32 %v392, %v413
    %v417 = vmul.f32 %v393, %v414
    %v418 = vpack.c.bf16 %v415, %v415
    %v419 = vpack.c.bf16 %v416, %v416
    %v420 = vpack.c.bf16 %v417, %v417
    %v421 = vld [vmem:[#allocation7] sm:$0xff]
    %v422 = vld [vmem:[#allocation7 + $0x8] sm:$0xf]
    %v423 = vld [vmem:[#allocation7 + $0xc] sm:$0xff]
    %v424 = vld [vmem:[#allocation7 + $0x14] sm:$0xf]
    %v425 = vld [vmem:[#allocation7 + $0x18] sm:$0xff]
    %v426 = vld [vmem:[#allocation7 + $0x20] sm:$0xf]
    %v427 = vld [vmem:[#allocation7 + $0x24] sm:$0xff]
    %v428 = vld [vmem:[#allocation7 + $0x2c] sm:$0xf]
    %v429 = vld [vmem:[#allocation7 + $0x30] sm:$0xff]
    %v430 = vld [vmem:[#allocation7 + $0x38] sm:$0xf]
    %v431 = vld [vmem:[#allocation7 + $0x3c] sm:$0xff]
    %v432 = vld [vmem:[#allocation7 + $0x44] sm:$0xf]
    %v433 = vld [vmem:[#allocation7 + $0x48] sm:$0xff]
    %v434 = vld [vmem:[#allocation7 + $0x50] sm:$0xf]
    %v435 = vld [vmem:[#allocation7 + $0x54] sm:$0xff]
    %v436 = vld [vmem:[#allocation7 + $0x5c] sm:$0xf]
    %v437 = vld [vmem:[#allocation7 + $0x60] sm:$0xff]
    %v438 = vld [vmem:[#allocation7 + $0x68] sm:$0xf]
    %v439 = vld [vmem:[#allocation7 + $0x6c] sm:$0xff]
    %v440 = vld [vmem:[#allocation7 + $0x74] sm:$0xf]
    %v441 = vld [vmem:[#allocation7 + $0x78] sm:$0xff]
    %v442 = vld [vmem:[#allocation7 + $0x80] sm:$0xf]
    %v443 = vld [vmem:[#allocation7 + $0x84] sm:$0xff]
    %v444 = vld [vmem:[#allocation7 + $0x8c] sm:$0xf]
    %v445 = vld [vmem:[#allocation7 + $0x90] sm:$0xff]
    %v446 = vld [vmem:[#allocation7 + $0x98] sm:$0xf]
    %v447 = vld [vmem:[#allocation7 + $0x9c] sm:$0xff]
    %v448 = vld [vmem:[#allocation7 + $0xa4] sm:$0xf]
    %v449 = vld [vmem:[#allocation7 + $0xa8] sm:$0xff]
    %v450 = vld [vmem:[#allocation7 + $0xb0] sm:$0xf]
    %v451 = vld [vmem:[#allocation7 + $0xb4] sm:$0xff]
    %v452 = vld [vmem:[#allocation7 + $0xbc] sm:$0xf]
    %v453 = vld [vmem:[#allocation7 + $0xc0] sm:$0xff]
    %v454 = vld [vmem:[#allocation7 + $0xc8] sm:$0xf]
    %v455 = vld [vmem:[#allocation7 + $0xcc] sm:$0xff]
    %v456 = vld [vmem:[#allocation7 + $0xd4] sm:$0xf]
    %v457 = vld [vmem:[#allocation7 + $0xd8] sm:$0xff]
    %v458 = vld [vmem:[#allocation7 + $0xe0] sm:$0xf]
    %v459 = vld [vmem:[#allocation7 + $0xe4] sm:$0xff]
    %v460 = vld [vmem:[#allocation7 + $0xec] sm:$0xf]
    %v461 = vld [vmem:[#allocation7 + $0xf0] sm:$0xff]
    %v462 = vld [vmem:[#allocation7 + $0xf8] sm:$0xf]
    %v463 = vld [vmem:[#allocation7 + $0xfc] sm:$0xff]
    %v464 = vld [vmem:[#allocation7 + $0x104] sm:$0xf]
    %v465 = vld [vmem:[#allocation7 + $0x108] sm:$0xff]
    %v466 = vld [vmem:[#allocation7 + $0x110] sm:$0xf]
    %v467 = vld [vmem:[#allocation7 + $0x114] sm:$0xff]
    %v468 = vld [vmem:[#allocation7 + $0x11c] sm:$0xf]
    %v469 = vld [vmem:[#allocation7 + $0x120] sm:$0xff]
    %v470 = vld [vmem:[#allocation7 + $0x128] sm:$0xf]
    %v471 = vld [vmem:[#allocation7 + $0x12c] sm:$0xff]
    %v472 = vld [vmem:[#allocation7 + $0x134] sm:$0xf]
    %v473 = vld [vmem:[#allocation7 + $0x138] sm:$0xff]
    %v474 = vld [vmem:[#allocation7 + $0x140] sm:$0xf]
    %v475 = vld [vmem:[#allocation7 + $0x144] sm:$0xff]
    %v476 = vld [vmem:[#allocation7 + $0x14c] sm:$0xf]
    %v477 = vld [vmem:[#allocation7 + $0x150] sm:$0xff]
    %v478 = vld [vmem:[#allocation7 + $0x158] sm:$0xf]
    %v479 = vld [vmem:[#allocation7 + $0x15c] sm:$0xff]
    %v480 = vld [vmem:[#allocation7 + $0x164] sm:$0xf]
    %v481 = vld [vmem:[#allocation7 + $0x168] sm:$0xff]
    %v482 = vld [vmem:[#allocation7 + $0x170] sm:$0xf]
    %v483 = vld [vmem:[#allocation7 + $0x174] sm:$0xff]
    %v484 = vld [vmem:[#allocation7 + $0x17c] sm:$0xf]
    %v485 = vld [vmem:[#allocation7 + $0x180] sm:$0xff]
    %v486 = vld [vmem:[#allocation7 + $0x188] sm:$0xf]
    %v487 = vld [vmem:[#allocation7 + $0x18c] sm:$0xff]
    %v488 = vld [vmem:[#allocation7 + $0x194] sm:$0xf]
    %v489 = vld [vmem:[#allocation7 + $0x198] sm:$0xff]
    %v490 = vld [vmem:[#allocation7 + $0x1a0] sm:$0xf]
    %v491 = vld [vmem:[#allocation7 + $0x1a4] sm:$0xff]
    %v492 = vld [vmem:[#allocation7 + $0x1ac] sm:$0xf]
    %v493 = vld [vmem:[#allocation7 + $0x1b0] sm:$0xff]
    %v494 = vld [vmem:[#allocation7 + $0x1b8] sm:$0xf]
    %v495 = vld [vmem:[#allocation7 + $0x1bc] sm:$0xff]
    %v496 = vld [vmem:[#allocation7 + $0x1c4] sm:$0xf]
    %v497 = vld [vmem:[#allocation7 + $0x1c8] sm:$0xff]
    %v498 = vld [vmem:[#allocation7 + $0x1d0] sm:$0xf]
    %v499 = vld [vmem:[#allocation7 + $0x1d4] sm:$0xff]
    %v500 = vld [vmem:[#allocation7 + $0x1dc] sm:$0xf]
    %v501 = vld [vmem:[#allocation7 + $0x1e0] sm:$0xff]
    %v502 = vld [vmem:[#allocation7 + $0x1e8] sm:$0xf]
    %v503 = vld [vmem:[#allocation7 + $0x1ec] sm:$0xff]
    %v504 = vld [vmem:[#allocation7 + $0x1f4] sm:$0xf]
    %v505 = vld [vmem:[#allocation7 + $0x1f8] sm:$0xff]
    %v506 = vld [vmem:[#allocation7 + $0x200] sm:$0xf]
    %v507 = vld [vmem:[#allocation7 + $0x204] sm:$0xff]
    %v508 = vld [vmem:[#allocation7 + $0x20c] sm:$0xf]
    %v509 = vld [vmem:[#allocation7 + $0x210] sm:$0xff]
    %v510 = vld [vmem:[#allocation7 + $0x218] sm:$0xf]
    %v511 = vld [vmem:[#allocation7 + $0x21c] sm:$0xff]
    %v512 = vld [vmem:[#allocation7 + $0x224] sm:$0xf]
    %s513 = scalar_lea.vmem %s0, 2
    %v514 = vld [vmem:[%s513] sm:$0x1]
    %s515 = scalar_lea.vmem %s0, 3
    %v516 = vld [vmem:[%s515] sm:$0x1]
    %v517 = vadd.bf16 %v514, %v516
    %v519 = vsel %vm293, %v517, 0
    %521 = vmatprep.subr.bf16.mxu0 %v255
    %522 = vmatpush1.bf16.msra.mxu0 %v254
    %523 = vmatprep.subr.bf16.mxu0 %v258
    %524 = vmatpush1.bf16.msra.mxu0 %v257
    %525 = vmatprep.subr.bf16.mxu0 %v261
    %526 = vmatpush1.bf16.msra.mxu0 %v260
    %527 = vmatprep.subr.bf16.mxu0 %v264
    %528 = vmatpush1.bf16.msra.mxu0 %v263
    %529 = vmatprep.subr.bf16.mxu0 %v267
    %530 = vmatpush1.bf16.msra.mxu0 %v266
    %531 = vmatprep.subr.bf16.mxu0 %v270
    %532 = vmatpush1.bf16.msra.mxu0 %v269
    %533 = vmatprep.subr.bf16.mxu0 %v305
    %534 = vmatpush1.bf16.msra.mxu0 %v302
    %535 = vmatprep.subr.bf16.mxu0 0
    %536 = vmatpush1.bf16.msra.mxu0 0
    %537 = vmatprep.subr.bf16.mxu0 0
    %538 = vmatpush1.bf16.msra.mxu0 0
    %539 = vmatprep.subr.bf16.mxu0 0
    %540 = vmatpush1.bf16.msra.mxu0 0
    %541 = vmatprep.subr.bf16.mxu0 0
    %542 = vmatpush1.bf16.msra.mxu0 0
    %543 = vmatprep.subr.bf16.mxu0 0
    %544 = vmatpush1.bf16.msra.mxu0 0
    %545 = vmatprep.subr.bf16.mxu0 0
    %546 = vmatpush1.bf16.msra.mxu0 0
    %547 = vmatprep.subr.bf16.mxu0 0
    %548 = vmatpush1.bf16.msra.mxu0 0
    %549 = vmatprep.subr.bf16.mxu0 0
    %550 = vmatpush1.bf16.msra.mxu0 0
    %551 = vmatprep.subr.bf16.mxu0 0
    %552 = vmatpush1.bf16.msra.mxu0 0
    %553 = vmatprep.mubr.bf16.mxu0 0
    %554 = vmatmul.mubr.bf16.gmra.mrb[0].mxu0 %v519
    %v555 = vpop.f32.mrb[0].mxu0
    %v556 = vadd.f32 %v177, %v555
    %v557 = vpop.f32.mrb[0].mxu0
    %v558 = vadd.f32 %v181, %v557
    %v559 = vpop.f32.mrb[0].mxu0
    %v560 = vpop.f32.mrb[0].mxu0
    %561 = vdwg.mxu0
    %562 = vmatprep.subr.bf16.mxu0 0
    %563 = vmatpush1.bf16.msra.mxu0 %v256
    %564 = vmatprep.subr.bf16.mxu0 0
    %565 = vmatpush1.bf16.msra.mxu0 %v259
    %566 = vmatprep.subr.bf16.mxu0 0
    %567 = vmatpush1.bf16.msra.mxu0 %v262
    %568 = vmatprep.subr.bf16.mxu0 0
    %569 = vmatpush1.bf16.msra.mxu0 %v265
    %570 = vmatprep.subr.bf16.mxu0 0
    %571 = vmatpush1.bf16.msra.mxu0 %v268
    %572 = vmatprep.subr.bf16.mxu0 0
    %573 = vmatpush1.bf16.msra.mxu0 %v271
    %574 = vmatprep.subr.bf16.mxu0 0
    %575 = vmatpush1.bf16.msra.mxu0 %v308
    %576 = vmatprep.subr.bf16.mxu0 0
    %577 = vmatpush1.bf16.msra.mxu0 0
    %578 = vmatprep.subr.bf16.mxu0 0
    %579 = vmatpush1.bf16.msra.mxu0 0
    %580 = vmatprep.subr.bf16.mxu0 0
    %581 = vmatpush1.bf16.msra.mxu0 0
    %582 = vmatprep.subr.bf16.mxu0 0
    %583 = vmatpush1.bf16.msra.mxu0 0
    %584 = vmatprep.subr.bf16.mxu0 0
    %585 = vmatpush1.bf16.msra.mxu0 0
    %586 = vmatprep.subr.bf16.mxu0 0
    %587 = vmatpush1.bf16.msra.mxu0 0
    %588 = vmatprep.subr.bf16.mxu0 0
    %589 = vmatpush1.bf16.msra.mxu0 0
    %590 = vmatprep.subr.bf16.mxu0 0
    %591 = vmatpush1.bf16.msra.mxu0 0
    %592 = vmatprep.subr.bf16.mxu0 0
    %593 = vmatpush1.bf16.msra.mxu0 0
    %594 = vmatprep.mubr.bf16.mxu0 0
    %595 = vmatmul.mubr.bf16.gmra.mrb[0].mxu0 %v519
    %v596 = vpop.f32.mrb[0].mxu0
    %v597 = vadd.f32 %v185, %v596
    %v598 = vpop.f32.mrb[0].mxu0
    %v599 = vpop.f32.mrb[0].mxu0
    %v600 = vpop.f32.mrb[0].mxu0
    %601 = vdwg.mxu0
    %v602 = vmul.f32 %v556, 0.5
    %v603 = vmul.f32 %v558, 0.5
    %v604 = vmul.f32 %v597, 0.5
    %v605 = vmul.f32 %v556, 0.044715
    %v606 = vmul.f32 %v558, 0.044715
    %v607 = vmul.f32 %v597, 0.044715
    %v608 = vmul.f32 %v605, %v556
    %v609 = vmul.f32 %v606, %v558
    %v610 = vmul.f32 %v607, %v597
    %v611 = vmul.f32 %v608, %v556
    %v612 = vmul.f32 %v609, %v558
    %v613 = vmul.f32 %v610, %v597
    %v614 = vadd.f32 %v556, %v611
    %v615 = vadd.f32 %v558, %v612
    %v616 = vadd.f32 %v597, %v613
    %v617 = vmul.f32 %v614, 0.7978846
    %v618 = vmul.f32 %v615, 0.7978846
    %v619 = vmul.f32 %v616, 0.7978846
    %v620 = vtanh.pop %v617
    %v621 = vtanh.pop %v618
    %v622 = vtanh.pop %v619
    %v623 = vadd.f32 %v620, 1.0
    %v624 = vadd.f32 %v621, 1.0
    %v625 = vadd.f32 %v622, 1.0
    %v626 = vmul.f32 %v602, %v623
    %v627 = vmul.f32 %v603, %v624
    %v628 = vmul.f32 %v604, %v625
    %v629 = vpack.c.bf16 %v626, %v626
    %v630 = vpack.c.bf16 %v627, %v627
    %v631 = vpack.c.bf16 %v628, %v628
    %s632 = scalar_lea.vmem [#allocation7], 552
    %v633 = vld [vmem:[%s632] sm:$0xff]
    %v634 = vld [vmem:[%s632 + $0x8] sm:$0xf]
    %v635 = vld [vmem:[%s632 + $0xc] sm:$0xff]
    %v636 = vld [vmem:[%s632 + $0x14] sm:$0xf]
    %v637 = vld [vmem:[%s632 + $0x18] sm:$0xff]
    %v638 = vld [vmem:[%s632 + $0x20] sm:$0xf]
    %v639 = vld [vmem:[%s632 + $0x24] sm:$0xff]
    %v640 = vld [vmem:[%s632 + $0x2c] sm:$0xf]
    %v641 = vld [vmem:[%s632 + $0x30] sm:$0xff]
    %v642 = vld [vmem:[%s632 + $0x38] sm:$0xf]
    %v643 = vld [vmem:[%s632 + $0x3c] sm:$0xff]
    %v644 = vld [vmem:[%s632 + $0x44] sm:$0xf]
    %v645 = vld [vmem:[%s632 + $0x48] sm:$0xff]
    %v646 = vld [vmem:[%s632 + $0x50] sm:$0xf]
    %v647 = vld [vmem:[%s632 + $0x54] sm:$0xff]
    %v648 = vld [vmem:[%s632 + $0x5c] sm:$0xf]
    %v649 = vld [vmem:[%s632 + $0x60] sm:$0xff]
    %v650 = vld [vmem:[%s632 + $0x68] sm:$0xf]
    %v651 = vld [vmem:[%s632 + $0x6c] sm:$0xff]
    %v652 = vld [vmem:[%s632 + $0x74] sm:$0xf]
    %v653 = vld [vmem:[%s632 + $0x78] sm:$0xff]
    %v654 = vld [vmem:[%s632 + $0x80] sm:$0xf]
    %v655 = vld [vmem:[%s632 + $0x84] sm:$0xff]
    %v656 = vld [vmem:[%s632 + $0x8c] sm:$0xf]
    %v657 = vld [vmem:[%s632 + $0x90] sm:$0xff]
    %v658 = vld [vmem:[%s632 + $0x98] sm:$0xf]
    %v659 = vld [vmem:[%s632 + $0x9c] sm:$0xff]
    %v660 = vld [vmem:[%s632 + $0xa4] sm:$0xf]
    %v661 = vld [vmem:[%s632 + $0xa8] sm:$0xff]
    %v662 = vld [vmem:[%s632 + $0xb0] sm:$0xf]
    %v663 = vld [vmem:[%s632 + $0xb4] sm:$0xff]
    %v664 = vld [vmem:[%s632 + $0xbc] sm:$0xf]
    %v665 = vld [vmem:[%s632 + $0xc0] sm:$0xff]
    %v666 = vld [vmem:[%s632 + $0xc8] sm:$0xf]
    %v667 = vld [vmem:[%s632 + $0xcc] sm:$0xff]
    %v668 = vld [vmem:[%s632 + $0xd4] sm:$0xf]
    %v669 = vld [vmem:[%s632 + $0xd8] sm:$0xff]
    %v670 = vld [vmem:[%s632 + $0xe0] sm:$0xf]
    %v671 = vld [vmem:[%s632 + $0xe4] sm:$0xff]
    %v672 = vld [vmem:[%s632 + $0xec] sm:$0xf]
    %v673 = vld [vmem:[%s632 + $0xf0] sm:$0xff]
    %v674 = vld [vmem:[%s632 + $0xf8] sm:$0xf]
    %v675 = vld [vmem:[%s632 + $0xfc] sm:$0xff]
    %v676 = vld [vmem:[%s632 + $0x104] sm:$0xf]
    %v677 = vld [vmem:[%s632 + $0x108] sm:$0xff]
    %v678 = vld [vmem:[%s632 + $0x110] sm:$0xf]
    %v679 = vld [vmem:[%s632 + $0x114] sm:$0xff]
    %v680 = vld [vmem:[%s632 + $0x11c] sm:$0xf]
    %v681 = vld [vmem:[%s632 + $0x120] sm:$0xff]
    %v682 = vld [vmem:[%s632 + $0x128] sm:$0xf]
    %v683 = vld [vmem:[%s632 + $0x12c] sm:$0xff]
    %v684 = vld [vmem:[%s632 + $0x134] sm:$0xf]
    %v685 = vld [vmem:[%s632 + $0x138] sm:$0xff]
    %v686 = vld [vmem:[%s632 + $0x140] sm:$0xf]
    %v687 = vld [vmem:[%s632 + $0x144] sm:$0xff]
    %v688 = vld [vmem:[%s632 + $0x14c] sm:$0xf]
    %v689 = vld [vmem:[%s632 + $0x150] sm:$0xff]
    %v690 = vld [vmem:[%s632 + $0x158] sm:$0xf]
    %v691 = vld [vmem:[%s632 + $0x15c] sm:$0xff]
    %v692 = vld [vmem:[%s632 + $0x164] sm:$0xf]
    %v693 = vld [vmem:[%s632 + $0x168] sm:$0xff]
    %v694 = vld [vmem:[%s632 + $0x170] sm:$0xf]
    %v695 = vld [vmem:[%s632 + $0x174] sm:$0xff]
    %v696 = vld [vmem:[%s632 + $0x17c] sm:$0xf]
    %v697 = vld [vmem:[%s632 + $0x180] sm:$0xff]
    %v698 = vld [vmem:[%s632 + $0x188] sm:$0xf]
    %v699 = vld [vmem:[%s632 + $0x18c] sm:$0xff]
    %v700 = vld [vmem:[%s632 + $0x194] sm:$0xf]
    %v701 = vld [vmem:[%s632 + $0x198] sm:$0xff]
    %v702 = vld [vmem:[%s632 + $0x1a0] sm:$0xf]
    %v703 = vld [vmem:[%s632 + $0x1a4] sm:$0xff]
    %v704 = vld [vmem:[%s632 + $0x1ac] sm:$0xf]
    %v705 = vld [vmem:[%s632 + $0x1b0] sm:$0xff]
    %v706 = vld [vmem:[%s632 + $0x1b8] sm:$0xf]
    %v707 = vld [vmem:[%s632 + $0x1bc] sm:$0xff]
    %v708 = vld [vmem:[%s632 + $0x1c4] sm:$0xf]
    %v709 = vld [vmem:[%s632 + $0x1c8] sm:$0xff]
    %v710 = vld [vmem:[%s632 + $0x1d0] sm:$0xf]
    %v711 = vld [vmem:[%s632 + $0x1d4] sm:$0xff]
    %v712 = vld [vmem:[%s632 + $0x1dc] sm:$0xf]
    %v713 = vld [vmem:[%s632 + $0x1e0] sm:$0xff]
    %v714 = vld [vmem:[%s632 + $0x1e8] sm:$0xf]
    %v715 = vld [vmem:[%s632 + $0x1ec] sm:$0xff]
    %v716 = vld [vmem:[%s632 + $0x1f4] sm:$0xf]
    %v717 = vld [vmem:[%s632 + $0x1f8] sm:$0xff]
    %v718 = vld [vmem:[%s632 + $0x200] sm:$0xf]
    %v719 = vld [vmem:[%s632 + $0x204] sm:$0xff]
    %v720 = vld [vmem:[%s632 + $0x20c] sm:$0xf]
    %v721 = vld [vmem:[%s632 + $0x210] sm:$0xff]
    %v722 = vld [vmem:[%s632 + $0x218] sm:$0xf]
    %v723 = vld [vmem:[%s632 + $0x21c] sm:$0xff]
    %v724 = vld [vmem:[%s632 + $0x224] sm:$0xf]
    %v817 = vunpack.c.l.b16 %v633
    %v818 = vunpack.c.h.b16 %v633
    %v819 = vunpack.c.l.b16 %v634
    %v820 = vunpack.c.l.b16 %v635
    %v821 = vunpack.c.h.b16 %v635
    %v822 = vunpack.c.l.b16 %v636
    %v823 = vunpack.c.l.b16 %v637
    %v824 = vunpack.c.h.b16 %v637
    %v825 = vunpack.c.l.b16 %v638
    %v826 = vunpack.c.l.b16 %v639
    %v827 = vunpack.c.h.b16 %v639
    %v828 = vunpack.c.l.b16 %v640
    %v829 = vunpack.c.l.b16 %v641
    %v830 = vunpack.c.h.b16 %v641
    %v831 = vunpack.c.l.b16 %v642
    %v832 = vunpack.c.l.b16 %v643
    %v833 = vunpack.c.h.b16 %v643
    %v834 = vunpack.c.l.b16 %v644
    %v835 = vunpack.c.l.b16 %v645
    %v836 = vunpack.c.h.b16 %v645
    %v837 = vunpack.c.l.b16 %v646
    %v838 = vunpack.c.l.b16 %v647
    %v839 = vunpack.c.h.b16 %v647
    %v840 = vunpack.c.l.b16 %v648
    %v841 = vunpack.c.l.b16 %v649
    %v842 = vunpack.c.h.b16 %v649
    %v843 = vunpack.c.l.b16 %v650
    %v844 = vunpack.c.l.b16 %v651
    %v845 = vunpack.c.h.b16 %v651
    %v846 = vunpack.c.l.b16 %v652
    %v847 = vunpack.c.l.b16 %v653
    %v848 = vunpack.c.h.b16 %v653
    %v849 = vunpack.c.l.b16 %v654
    %v850 = vunpack.c.l.b16 %v655
    %v851 = vunpack.c.h.b16 %v655
    %v852 = vunpack.c.l.b16 %v656
    %v853 = vunpack.c.l.b16 %v657
    %v854 = vunpack.c.h.b16 %v657
    %v855 = vunpack.c.l.b16 %v658
    %v856 = vunpack.c.l.b16 %v659
    %v857 = vunpack.c.h.b16 %v659
    %v858 = vunpack.c.l.b16 %v660
    %v859 = vunpack.c.l.b16 %v661
    %v860 = vunpack.c.h.b16 %v661
    %v861 = vunpack.c.l.b16 %v662
    %v862 = vunpack.c.l.b16 %v663
    %v863 = vunpack.c.h.b16 %v663
    %v864 = vunpack.c.l.b16 %v664
    %v865 = vunpack.c.l.b16 %v665
    %v866 = vunpack.c.h.b16 %v665
    %v867 = vunpack.c.l.b16 %v666
    %v868 = vunpack.c.l.b16 %v667
    %v869 = vunpack.c.h.b16 %v667
    %v870 = vunpack.c.l.b16 %v668
    %v871 = vunpack.c.l.b16 %v669
    %v872 = vunpack.c.h.b16 %v669
    %v873 = vunpack.c.l.b16 %v670
    %v874 = vunpack.c.l.b16 %v671
    %v875 = vunpack.c.h.b16 %v671
    %v876 = vunpack.c.l.b16 %v672
    %v877 = vunpack.c.l.b16 %v673
    %v878 = vunpack.c.h.b16 %v673
    %v879 = vunpack.c.l.b16 %v674
    %v880 = vunpack.c.l.b16 %v675
    %v881 = vunpack.c.h.b16 %v675
    %v882 = vunpack.c.l.b16 %v676
    %v883 = vunpack.c.l.b16 %v677
    %v884 = vunpack.c.h.b16 %v677
    %v885 = vunpack.c.l.b16 %v678
    %v886 = vunpack.c.l.b16 %v679
    %v887 = vunpack.c.h.b16 %v679
    %v888 = vunpack.c.l.b16 %v680
    %v889 = vunpack.c.l.b16 %v681
    %v890 = vunpack.c.h.b16 %v681
    %v891 = vunpack.c.l.b16 %v682
    %v892 = vunpack.c.l.b16 %v683
    %v893 = vunpack.c.h.b16 %v683
    %v894 = vunpack.c.l.b16 %v684
    %v895 = vunpack.c.l.b16 %v685
    %v896 = vunpack.c.h.b16 %v685
    %v897 = vunpack.c.l.b16 %v686
    %v898 = vunpack.c.l.b16 %v687
    %v899 = vunpack.c.h.b16 %v687
    %v900 = vunpack.c.l.b16 %v688
    %v901 = vunpack.c.l.b16 %v689
    %v902 = vunpack.c.h.b16 %v689
    %v903 = vunpack.c.l.b16 %v690
    %v904 = vunpack.c.l.b16 %v691
    %v905 = vunpack.c.h.b16 %v691
    %v906 = vunpack.c.l.b16 %v692
    %v907 = vunpack.c.l.b16 %v693
    %v908 = vunpack.c.h.b16 %v693
    %v909 = vunpack.c.l.b16 %v694
    %v910 = vunpack.c.l.b16 %v695
    %v911 = vunpack.c.h.b16 %v695
    %v912 = vunpack.c.l.b16 %v696
    %v913 = vunpack.c.l.b16 %v697
    %v914 = vunpack.c.h.b16 %v697
    %v915 = vunpack.c.l.b16 %v698
    %v916 = vunpack.c.l.b16 %v699
    %v917 = vunpack.c.h.b16 %v699
    %v918 = vunpack.c.l.b16 %v700
    %v919 = vunpack.c.l.b16 %v701
    %v920 = vunpack.c.h.b16 %v701
    %v921 = vunpack.c.l.b16 %v702
    %v922 = vunpack.c.l.b16 %v703
    %v923 = vunpack.c.h.b16 %v703
    %v924 = vunpack.c.l.b16 %v704
    %v925 = vunpack.c.l.b16 %v705
    %v926 = vunpack.c.h.b16 %v705
    %v927 = vunpack.c.l.b16 %v706
    %v928 = vunpack.c.l.b16 %v707
    %v929 = vunpack.c.h.b16 %v707
    %v930 = vunpack.c.l.b16 %v708
    %v931 = vunpack.c.l.b16 %v709
    %v932 = vunpack.c.h.b16 %v709
    %v933 = vunpack.c.l.b16 %v710
    %v934 = vunpack.c.l.b16 %v711
    %v935 = vunpack.c.h.b16 %v711
    %v936 = vunpack.c.l.b16 %v712
    %v937 = vunpack.c.l.b16 %v713
    %v938 = vunpack.c.h.b16 %v713
    %v939 = vunpack.c.l.b16 %v714
    %v940 = vunpack.c.l.b16 %v715
    %v941 = vunpack.c.h.b16 %v715
    %v942 = vunpack.c.l.b16 %v716
    %v943 = vunpack.c.l.b16 %v717
    %v944 = vunpack.c.h.b16 %v717
    %v945 = vunpack.c.l.b16 %v718
    %v946 = vunpack.c.l.b16 %v719
    %v947 = vunpack.c.h.b16 %v719
    %v948 = vunpack.c.l.b16 %v720
    %v949 = vunpack.c.l.b16 %v721
    %v950 = vunpack.c.h.b16 %v721
    %v951 = vunpack.c.l.b16 %v722
    %v952 = vunpack.c.l.b16 %v723
    %v953 = vunpack.c.h.b16 %v723
    %v954 = vunpack.c.l.b16 %v724
    %v955 = vpack.c.b16 %v820, %v817
    %v956 = vpack.c.b16 %v821, %v818
    %v957 = vpack.c.b16 %v822, %v819
    %v958 = vpack.c.b16 %v826, %v823
    %v959 = vpack.c.b16 %v827, %v824
    %v960 = vpack.c.b16 %v828, %v825
    %v961 = vpack.c.b16 %v832, %v829
    %v962 = vpack.c.b16 %v833, %v830
    %v963 = vpack.c.b16 %v834, %v831
    %v964 = vpack.c.b16 %v838, %v835
    %v965 = vpack.c.b16 %v839, %v836
    %v966 = vpack.c.b16 %v840, %v837
    %v967 = vpack.c.b16 %v844, %v841
    %v968 = vpack.c.b16 %v845, %v842
    %v969 = vpack.c.b16 %v846, %v843
    %v970 = vpack.c.b16 %v850, %v847
    %v971 = vpack.c.b16 %v851, %v848
    %v972 = vpack.c.b16 %v852, %v849
    %v973 = vpack.c.b16 %v856, %v853
    %v974 = vpack.c.b16 %v857, %v854
    %v975 = vpack.c.b16 %v858, %v855
    %v976 = vpack.c.b16 %v862, %v859
    %v977 = vpack.c.b16 %v863, %v860
    %v978 = vpack.c.b16 %v864, %v861
    %v979 = vpack.c.b16 %v868, %v865
    %v980 = vpack.c.b16 %v869, %v866
    %v981 = vpack.c.b16 %v870, %v867
    %v982 = vpack.c.b16 %v874, %v871
    %v983 = vpack.c.b16 %v875, %v872
    %v984 = vpack.c.b16 %v876, %v873
    %v985 = vpack.c.b16 %v880, %v877
    %v986 = vpack.c.b16 %v881, %v878
    %v987 = vpack.c.b16 %v882, %v879
    %v988 = vpack.c.b16 %v886, %v883
    %v989 = vpack.c.b16 %v887, %v884
    %v990 = vpack.c.b16 %v888, %v885
    %v991 = vpack.c.b16 %v892, %v889
    %v992 = vpack.c.b16 %v893, %v890
    %v993 = vpack.c.b16 %v894, %v891
    %v994 = vpack.c.b16 %v898, %v895
    %v995 = vpack.c.b16 %v899, %v896
    %v996 = vpack.c.b16 %v900, %v897
    %v997 = vpack.c.b16 %v904, %v901
    %v998 = vpack.c.b16 %v905, %v902
    %v999 = vpack.c.b16 %v906, %v903
    %v1000 = vpack.c.b16 %v910, %v907
    %v1001 = vpack.c.b16 %v911, %v908
    %v1002 = vpack.c.b16 %v912, %v909
    %v1003 = vpack.c.b16 %v916, %v913
    %v1004 = vpack.c.b16 %v917, %v914
    %v1005 = vpack.c.b16 %v918, %v915
    %v1006 = vpack.c.b16 %v922, %v919
    %v1007 = vpack.c.b16 %v923, %v920
    %v1008 = vpack.c.b16 %v924, %v921
    %v1009 = vpack.c.b16 %v928, %v925
    %v1010 = vpack.c.b16 %v929, %v926
    %v1011 = vpack.c.b16 %v930, %v927
    %v1012 = vpack.c.b16 %v934, %v931
    %v1013 = vpack.c.b16 %v935, %v932
    %v1014 = vpack.c.b16 %v936, %v933
    %v1015 = vpack.c.b16 %v940, %v937
    %v1016 = vpack.c.b16 %v941, %v938
    %v1017 = vpack.c.b16 %v942, %v939
    %v1018 = vpack.c.b16 %v946, %v943
    %v1019 = vpack.c.b16 %v947, %v944
    %v1020 = vpack.c.b16 %v948, %v945
    %v1021 = vpack.c.b16 %v952, %v949
    %v1022 = vpack.c.b16 %v953, %v950
    %v1023 = vpack.c.b16 %v954, %v951
    %vm1093 = vcmask 916480
    %v1095 = vsel %vm1093, %v631, 0
    %1097 = vmatprep.subr.bf16.mxu0 %v956
    %1098 = vmatpush1.bf16.msra.mxu0 %v955
    %1099 = vmatprep.subr.bf16.mxu0 %v959
    %1100 = vmatpush1.bf16.msra.mxu0 %v958
    %1101 = vmatprep.subr.bf16.mxu0 %v962
    %1102 = vmatpush1.bf16.msra.mxu0 %v961
    %1103 = vmatprep.subr.bf16.mxu0 %v965
    %1104 = vmatpush1.bf16.msra.mxu0 %v964
    %1105 = vmatprep.subr.bf16.mxu0 %v968
    %1106 = vmatpush1.bf16.msra.mxu0 %v967
    %1107 = vmatprep.subr.bf16.mxu0 %v971
    %1108 = vmatpush1.bf16.msra.mxu0 %v970
    %1109 = vmatprep.subr.bf16.mxu0 %v974
    %1110 = vmatpush1.bf16.msra.mxu0 %v973
    %1111 = vmatprep.subr.bf16.mxu0 %v977
    %1112 = vmatpush1.bf16.msra.mxu0 %v976
    %1113 = vmatprep.subr.bf16.mxu0 %v980
    %1114 = vmatpush1.bf16.msra.mxu0 %v979
    %1115 = vmatprep.subr.bf16.mxu0 %v983
    %1116 = vmatpush1.bf16.msra.mxu0 %v982
    %1117 = vmatprep.subr.bf16.mxu0 %v986
    %1118 = vmatpush1.bf16.msra.mxu0 %v985
    %1119 = vmatprep.subr.bf16.mxu0 %v989
    %1120 = vmatpush1.bf16.msra.mxu0 %v988
    %1121 = vmatprep.subr.bf16.mxu0 %v992
    %1122 = vmatpush1.bf16.msra.mxu0 %v991
    %1123 = vmatprep.subr.bf16.mxu0 %v995
    %1124 = vmatpush1.bf16.msra.mxu0 %v994
    %1125 = vmatprep.subr.bf16.mxu0 %v998
    %1126 = vmatpush1.bf16.msra.mxu0 %v997
    %1127 = vmatprep.subr.bf16.mxu0 %v1001
    %1128 = vmatpush1.bf16.msra.mxu0 %v1000
    %1129 = vmatprep.mubr.bf16.mxu0 %v630
    %1130 = vmatmul.mubr.bf16.gmra.mrb[0].mxu0 %v629
    %v1131 = vpop.f32.mrb[0].mxu0
    %v1132 = vadd.f32 0.0, %v1131
    %v1133 = vpop.f32.mrb[0].mxu0
    %v1134 = vadd.f32 0.0, %v1133
    %v1135 = vpop.f32.mrb[0].mxu0
    %v1136 = vpop.f32.mrb[0].mxu0
    %1137 = vdwg.mxu0
    %1138 = vmatprep.subr.bf16.mxu0 %v1004
    %1139 = vmatpush1.bf16.msra.mxu0 %v1003
    %1140 = vmatprep.subr.bf16.mxu0 %v1007
    %1141 = vmatpush1.bf16.msra.mxu0 %v1006
    %1142 = vmatprep.subr.bf16.mxu0 %v1010
    %1143 = vmatpush1.bf16.msra.mxu0 %v1009
    %1144 = vmatprep.subr.bf16.mxu0 %v1013
    %1145 = vmatpush1.bf16.msra.mxu0 %v1012
    %1146 = vmatprep.subr.bf16.mxu0 %v1016
    %1147 = vmatpush1.bf16.msra.mxu0 %v1015
    %1148 = vmatprep.subr.bf16.mxu0 %v1019
    %1149 = vmatpush1.bf16.msra.mxu0 %v1018
    %1150 = vmatprep.subr.bf16.mxu0 %v1022
    %1151 = vmatpush1.bf16.msra.mxu0 %v1021
    %1152 = vmatprep.subr.bf16.mxu0 0
    %1153 = vmatpush1.bf16.msra.mxu0 0
    %1154 = vmatprep.subr.bf16.mxu0 0
    %1155 = vmatpush1.bf16.msra.mxu0 0
    %1156 = vmatprep.subr.bf16.mxu0 0
    %1157 = vmatpush1.bf16.msra.mxu0 0
    %1158 = vmatprep.subr.bf16.mxu0 0
    %1159 = vmatpush1.bf16.msra.mxu0 0
    %1160 = vmatprep.subr.bf16.mxu0 0
    %1161 = vmatpush1.bf16.msra.mxu0 0
    %1162 = vmatprep.subr.bf16.mxu0 0
    %1163 = vmatpush1.bf16.msra.mxu0 0
    %1164 = vmatprep.subr.bf16.mxu0 0
    %1165 = vmatpush1.bf16.msra.mxu0 0
    %1166 = vmatprep.subr.bf16.mxu0 0
    %1167 = vmatpush1.bf16.msra.mxu0 0
    %1168 = vmatprep.subr.bf16.mxu0 0
    %1169 = vmatpush1.bf16.msra.mxu0 0
    %1170 = vmatprep.mubr.bf16.mxu0 0
    %1171 = vmatmul.mubr.bf16.gmra.mrb[0].mxu0 %v1095
    %v1172 = vpop.f32.mrb[0].mxu0
    %v1173 = vadd.f32 %v1132, %v1172
    %v1174 = vpop.f32.mrb[0].mxu0
    %v1175 = vadd.f32 %v1134, %v1174
    %v1176 = vpop.f32.mrb[0].mxu0
    %v1177 = vpop.f32.mrb[0].mxu0
    %1178 = vdwg.mxu0
    %1179 = vmatprep.subr.bf16.mxu0 0
    %1180 = vmatpush1.bf16.msra.mxu0 %v957
    %1181 = vmatprep.subr.bf16.mxu0 0
    %1182 = vmatpush1.bf16.msra.mxu0 %v960
    %1183 = vmatprep.subr.bf16.mxu0 0
    %1184 = vmatpush1.bf16.msra.mxu0 %v963
    %1185 = vmatprep.subr.bf16.mxu0 0
    %1186 = vmatpush1.bf16.msra.mxu0 %v966
    %1187 = vmatprep.subr.bf16.mxu0 0
    %1188 = vmatpush1.bf16.msra.mxu0 %v969
    %1189 = vmatprep.subr.bf16.mxu0 0
    %1190 = vmatpush1.bf16.msra.mxu0 %v972
    %1191 = vmatprep.subr.bf16.mxu0 0
    %1192 = vmatpush1.bf16.msra.mxu0 %v975
    %1193 = vmatprep.subr.bf16.mxu0 0
    %1194 = vmatpush1.bf16.msra.mxu0 %v978
    %1195 = vmatprep.subr.bf16.mxu0 0
    %1196 = vmatpush1.bf16.msra.mxu0 %v981
    %1197 = vmatprep.subr.bf16.mxu0 0
    %1198 = vmatpush1.bf16.msra.mxu0 %v984
    %1199 = vmatprep.subr.bf16.mxu0 0
    %1200 = vmatpush1.bf16.msra.mxu0 %v987
    %1201 = vmatprep.subr.bf16.mxu0 0
    %1202 = vmatpush1.bf16.msra.mxu0 %v990
    %1203 = vmatprep.subr.bf16.mxu0 0
    %1204 = vmatpush1.bf16.msra.mxu0 %v993
    %1205 = vmatprep.subr.bf16.mxu0 0
    %1206 = vmatpush1.bf16.msra.mxu0 %v996
    %1207 = vmatprep.subr.bf16.mxu0 0
    %1208 = vmatpush1.bf16.msra.mxu0 %v999
    %1209 = vmatprep.subr.bf16.mxu0 0
    %1210 = vmatpush1.bf16.msra.mxu0 %v1002
    %1211 = vmatprep.mubr.bf16.mxu0 %v630
    %1212 = vmatmul.mubr.bf16.gmra.mrb[0].mxu0 %v629
    %v1213 = vpop.f32.mrb[0].mxu0
    %v1214 = vadd.f32 0.0, %v1213
    %v1215 = vpop.f32.mrb[0].mxu0
    %v1216 = vpop.f32.mrb[0].mxu0
    %v1217 = vpop.f32.mrb[0].mxu0
    %1218 = vdwg.mxu0
    %1219 = vmatprep.subr.bf16.mxu0 0
    %1220 = vmatpush1.bf16.msra.mxu0 %v1005
    %1221 = vmatprep.subr.bf16.mxu0 0
    %1222 = vmatpush1.bf16.msra.mxu0 %v1008
    %1223 = vmatprep.subr.bf16.mxu0 0
    %1224 = vmatpush1.bf16.msra.mxu0 %v1011
    %1225 = vmatprep.subr.bf16.mxu0 0
    %1226 = vmatpush1.bf16.msra.mxu0 %v1014
    %1227 = vmatprep.subr.bf16.mxu0 0
    %1228 = vmatpush1.bf16.msra.mxu0 %v1017
    %1229 = vmatprep.subr.bf16.mxu0 0
    %1230 = vmatpush1.bf16.msra.mxu0 %v1020
    %1231 = vmatprep.subr.bf16.mxu0 0
    %1232 = vmatpush1.bf16.msra.mxu0 %v1023
    %1233 = vmatprep.subr.bf16.mxu0 0
    %1234 = vmatpush1.bf16.msra.mxu0 0
    %1235 = vmatprep.subr.bf16.mxu0 0
    %1236 = vmatpush1.bf16.msra.mxu0 0
    %1237 = vmatprep.subr.bf16.mxu0 0
    %1238 = vmatpush1.bf16.msra.mxu0 0
    %1239 = vmatprep.subr.bf16.mxu0 0
    %1240 = vmatpush1.bf16.msra.mxu0 0
    %1241 = vmatprep.subr.bf16.mxu0 0
    %1242 = vmatpush1.bf16.msra.mxu0 0
    %1243 = vmatprep.subr.bf16.mxu0 0
    %1244 = vmatpush1.bf16.msra.mxu0 0
    %1245 = vmatprep.subr.bf16.mxu0 0
    %1246 = vmatpush1.bf16.msra.mxu0 0
    %1247 = vmatprep.subr.bf16.mxu0 0
    %1248 = vmatpush1.bf16.msra.mxu0 0
    %1249 = vmatprep.subr.bf16.mxu0 0
    %1250 = vmatpush1.bf16.msra.mxu0 0
    %1251 = vmatprep.mubr.bf16.mxu0 0
    %1252 = vmatmul.mubr.bf16.gmra.mrb[0].mxu0 %v1095
    %v1253 = vpop.f32.mrb[0].mxu0
    %v1254 = vadd.f32 %v1214, %v1253
    %v1255 = vpop.f32.mrb[0].mxu0
    %v1256 = vpop.f32.mrb[0].mxu0
    %v1257 = vpop.f32.mrb[0].mxu0
    %1258 = vdwg.mxu0
    %v1351 = vunpack.c.l.b16 %v421
    %v1352 = vunpack.c.h.b16 %v421
    %v1353 = vunpack.c.l.b16 %v422
    %v1354 = vunpack.c.l.b16 %v423
    %v1355 = vunpack.c.h.b16 %v423
    %v1356 = vunpack.c.l.b16 %v424
    %v1357 = vunpack.c.l.b16 %v425
    %v1358 = vunpack.c.h.b16 %v425
    %v1359 = vunpack.c.l.b16 %v426
    %v1360 = vunpack.c.l.b16 %v427
    %v1361 = vunpack.c.h.b16 %v427
    %v1362 = vunpack.c.l.b16 %v428
    %v1363 = vunpack.c.l.b16 %v429
    %v1364 = vunpack.c.h.b16 %v429
    %v1365 = vunpack.c.l.b16 %v430
    %v1366 = vunpack.c.l.b16 %v431
    %v1367 = vunpack.c.h.b16 %v431
    %v1368 = vunpack.c.l.b16 %v432
    %v1369 = vunpack.c.l.b16 %v433
    %v1370 = vunpack.c.h.b16 %v433
    %v1371 = vunpack.c.l.b16 %v434
    %v1372 = vunpack.c.l.b16 %v435
    %v1373 = vunpack.c.h.b16 %v435
    %v1374 = vunpack.c.l.b16 %v436
    %v1375 = vunpack.c.l.b16 %v437
    %v1376 = vunpack.c.h.b16 %v437
    %v1377 = vunpack.c.l.b16 %v438
    %v1378 = vunpack.c.l.b16 %v439
    %v1379 = vunpack.c.h.b16 %v439
    %v1380 = vunpack.c.l.b16 %v440
    %v1381 = vunpack.c.l.b16 %v441
    %v1382 = vunpack.c.h.b16 %v441
    %v1383 = vunpack.c.l.b16 %v442
    %v1384 = vunpack.c.l.b16 %v443
    %v1385 = vunpack.c.h.b16 %v443
    %v1386 = vunpack.c.l.b16 %v444
    %v1387 = vunpack.c.l.b16 %v445
    %v1388 = vunpack.c.h.b16 %v445
    %v1389 = vunpack.c.l.b16 %v446
    %v1390 = vunpack.c.l.b16 %v447
    %v1391 = vunpack.c.h.b16 %v447
    %v1392 = vunpack.c.l.b16 %v448
    %v1393 = vunpack.c.l.b16 %v449
    %v1394 = vunpack.c.h.b16 %v449
    %v1395 = vunpack.c.l.b16 %v450
    %v1396 = vunpack.c.l.b16 %v451
    %v1397 = vunpack.c.h.b16 %v451
    %v1398 = vunpack.c.l.b16 %v452
    %v1399 = vunpack.c.l.b16 %v453
    %v1400 = vunpack.c.h.b16 %v453
    %v1401 = vunpack.c.l.b16 %v454
    %v1402 = vunpack.c.l.b16 %v455
    %v1403 = vunpack.c.h.b16 %v455
    %v1404 = vunpack.c.l.b16 %v456
    %v1405 = vunpack.c.l.b16 %v457
    %v1406 = vunpack.c.h.b16 %v457
    %v1407 = vunpack.c.l.b16 %v458
    %v1408 = vunpack.c.l.b16 %v459
    %v1409 = vunpack.c.h.b16 %v459
    %v1410 = vunpack.c.l.b16 %v460
    %v1411 = vunpack.c.l.b16 %v461
    %v1412 = vunpack.c.h.b16 %v461
    %v1413 = vunpack.c.l.b16 %v462
    %v1414 = vunpack.c.l.b16 %v463
    %v1415 = vunpack.c.h.b16 %v463
    %v1416 = vunpack.c.l.b16 %v464
    %v1417 = vunpack.c.l.b16 %v465
    %v1418 = vunpack.c.h.b16 %v465
    %v1419 = vunpack.c.l.b16 %v466
    %v1420 = vunpack.c.l.b16 %v467
    %v1421 = vunpack.c.h.b16 %v467
    %v1422 = vunpack.c.l.b16 %v468
    %v1423 = vunpack.c.l.b16 %v469
    %v1424 = vunpack.c.h.b16 %v469
    %v1425 = vunpack.c.l.b16 %v470
    %v1426 = vunpack.c.l.b16 %v471
    %v1427 = vunpack.c.h.b16 %v471
    %v1428 = vunpack.c.l.b16 %v472
    %v1429 = vunpack.c.l.b16 %v473
    %v1430 = vunpack.c.h.b16 %v473
    %v1431 = vunpack.c.l.b16 %v474
    %v1432 = vunpack.c.l.b16 %v475
    %v1433 = vunpack.c.h.b16 %v475
    %v1434 = vunpack.c.l.b16 %v476
    %v1435 = vunpack.c.l.b16 %v477
    %v1436 = vunpack.c.h.b16 %v477
    %v1437 = vunpack.c.l.b16 %v478
    %v1438 = vunpack.c.l.b16 %v479
    %v1439 = vunpack.c.h.b16 %v479
    %v1440 = vunpack.c.l.b16 %v480
    %v1441 = vunpack.c.l.b16 %v481
    %v1442 = vunpack.c.h.b16 %v481
    %v1443 = vunpack.c.l.b16 %v482
    %v1444 = vunpack.c.l.b16 %v483
    %v1445 = vunpack.c.h.b16 %v483
    %v1446 = vunpack.c.l.b16 %v484
    %v1447 = vunpack.c.l.b16 %v485
    %v1448 = vunpack.c.h.b16 %v485
    %v1449 = vunpack.c.l.b16 %v486
    %v1450 = vunpack.c.l.b16 %v487
    %v1451 = vunpack.c.h.b16 %v487
    %v1452 = vunpack.c.l.b16 %v488
    %v1453 = vunpack.c.l.b16 %v489
    %v1454 = vunpack.c.h.b16 %v489
    %v1455 = vunpack.c.l.b16 %v490
    %v1456 = vunpack.c.l.b16 %v491
    %v1457 = vunpack.c.h.b16 %v491
    %v1458 = vunpack.c.l.b16 %v492
    %v1459 = vunpack.c.l.b16 %v493
    %v1460 = vunpack.c.h.b16 %v493
    %v1461 = vunpack.c.l.b16 %v494
    %v1462 = vunpack.c.l.b16 %v495
    %v1463 = vunpack.c.h.b16 %v495
    %v1464 = vunpack.c.l.b16 %v496
    %v1465 = vunpack.c.l.b16 %v497
    %v1466 = vunpack.c.h.b16 %v497
    %v1467 = vunpack.c.l.b16 %v498
    %v1468 = vunpack.c.l.b16 %v499
    %v1469 = vunpack.c.h.b16 %v499
    %v1470 = vunpack.c.l.b16 %v500
    %v1471 = vunpack.c.l.b16 %v501
    %v1472 = vunpack.c.h.b16 %v501
    %v1473 = vunpack.c.l.b16 %v502
    %v1474 = vunpack.c.l.b16 %v503
    %v1475 = vunpack.c.h.b16 %v503
    %v1476 = vunpack.c.l.b16 %v504
    %v1477 = vunpack.c.l.b16 %v505
    %v1478 = vunpack.c.h.b16 %v505
    %v1479 = vunpack.c.l.b16 %v506
    %v1480 = vunpack.c.l.b16 %v507
    %v1481 = vunpack.c.h.b16 %v507
    %v1482 = vunpack.c.l.b16 %v508
    %v1483 = vunpack.c.l.b16 %v509
    %v1484 = vunpack.c.h.b16 %v509
    %v1485 = vunpack.c.l.b16 %v510
    %v1486 = vunpack.c.l.b16 %v511
    %v1487 = vunpack.c.h.b16 %v511
    %v1488 = vunpack.c.l.b16 %v512
    %v1489 = vpack.c.b16 %v1354, %v1351
    %v1490 = vpack.c.b16 %v1355, %v1352
    %v1491 = vpack.c.b16 %v1356, %v1353
    %v1492 = vpack.c.b16 %v1360, %v1357
    %v1493 = vpack.c.b16 %v1361, %v1358
    %v1494 = vpack.c.b16 %v1362, %v1359
    %v1495 = vpack.c.b16 %v1366, %v1363
    %v1496 = vpack.c.b16 %v1367, %v1364
    %v1497 = vpack.c.b16 %v1368, %v1365
    %v1498 = vpack.c.b16 %v1372, %v1369
    %v1499 = vpack.c.b16 %v1373, %v1370
    %v1500 = vpack.c.b16 %v1374, %v1371
    %v1501 = vpack.c.b16 %v1378, %v1375
    %v1502 = vpack.c.b16 %v1379, %v1376
    %v1503 = vpack.c.b16 %v1380, %v1377
    %v1504 = vpack.c.b16 %v1384, %v1381
    %v1505 = vpack.c.b16 %v1385, %v1382
    %v1506 = vpack.c.b16 %v1386, %v1383
    %v1507 = vpack.c.b16 %v1390, %v1387
    %v1508 = vpack.c.b16 %v1391, %v1388
    %v1509 = vpack.c.b16 %v1392, %v1389
    %v1510 = vpack.c.b16 %v1396, %v1393
    %v1511 = vpack.c.b16 %v1397, %v1394
    %v1512 = vpack.c.b16 %v1398, %v1395
    %v1513 = vpack.c.b16 %v1402, %v1399
    %v1514 = vpack.c.b16 %v1403, %v1400
    %v1515 = vpack.c.b16 %v1404, %v1401
    %v1516 = vpack.c.b16 %v1408, %v1405
    %v1517 = vpack.c.b16 %v1409, %v1406
    %v1518 = vpack.c.b16 %v1410, %v1407
    %v1519 = vpack.c.b16 %v1414, %v1411
    %v1520 = vpack.c.b16 %v1415, %v1412
    %v1521 = vpack.c.b16 %v1416, %v1413
    %v1522 = vpack.c.b16 %v1420, %v1417
    %v1523 = vpack.c.b16 %v1421, %v1418
    %v1524 = vpack.c.b16 %v1422, %v1419
    %v1525 = vpack.c.b16 %v1426, %v1423
    %v1526 = vpack.c.b16 %v1427, %v1424
    %v1527 = vpack.c.b16 %v1428, %v1425
    %v1528 = vpack.c.b16 %v1432, %v1429
    %v1529 = vpack.c.b16 %v1433, %v1430
    %v1530 = vpack.c.b16 %v1434, %v1431
    %v1531 = vpack.c.b16 %v1438, %v1435
    %v1532 = vpack.c.b16 %v1439, %v1436
    %v1533 = vpack.c.b16 %v1440, %v1437
    %v1534 = vpack.c.b16 %v1444, %v1441
    %v1535 = vpack.c.b16 %v1445, %v1442
    %v1536 = vpack.c.b16 %v1446, %v1443
    %v1537 = vpack.c.b16 %v1450, %v1447
    %v1538 = vpack.c.b16 %v1451, %v1448
    %v1539 = vpack.c.b16 %v1452, %v1449
    %v1540 = vpack.c.b16 %v1456, %v1453
    %v1541 = vpack.c.b16 %v1457, %v1454
    %v1542 = vpack.c.b16 %v1458, %v1455
    %v1543 = vpack.c.b16 %v1462, %v1459
    %v1544 = vpack.c.b16 %v1463, %v1460
    %v1545 = vpack.c.b16 %v1464, %v1461
    %v1546 = vpack.c.b16 %v1468, %v1465
    %v1547 = vpack.c.b16 %v1469, %v1466
    %v1548 = vpack.c.b16 %v1470, %v1467
    %v1549 = vpack.c.b16 %v1474, %v1471
    %v1550 = vpack.c.b16 %v1475, %v1472
    %v1551 = vpack.c.b16 %v1476, %v1473
    %v1552 = vpack.c.b16 %v1480, %v1477
    %v1553 = vpack.c.b16 %v1481, %v1478
    %v1554 = vpack.c.b16 %v1482, %v1479
    %v1555 = vpack.c.b16 %v1486, %v1483
    %v1556 = vpack.c.b16 %v1487, %v1484
    %v1557 = vpack.c.b16 %v1488, %v1485
    %v1628 = vsel %vm1093, %v420, 0
    %1630 = vmatprep.subr.bf16.mxu0 %v1490
    %1631 = vmatpush1.bf16.msra.mxu0 %v1489
    %1632 = vmatprep.subr.bf16.mxu0 %v1493
    %1633 = vmatpush1.bf16.msra.mxu0 %v1492
    %1634 = vmatprep.subr.bf16.mxu0 %v1496
    %1635 = vmatpush1.bf16.msra.mxu0 %v1495
    %1636 = vmatprep.subr.bf16.mxu0 %v1499
    %1637 = vmatpush1.bf16.msra.mxu0 %v1498
    %1638 = vmatprep.subr.bf16.mxu0 %v1502
    %1639 = vmatpush1.bf16.msra.mxu0 %v1501
    %1640 = vmatprep.subr.bf16.mxu0 %v1505
    %1641 = vmatpush1.bf16.msra.mxu0 %v1504
    %1642 = vmatprep.subr.bf16.mxu0 %v1508
    %1643 = vmatpush1.bf16.msra.mxu0 %v1507
    %1644 = vmatprep.subr.bf16.mxu0 %v1511
    %1645 = vmatpush1.bf16.msra.mxu0 %v1510
    %1646 = vmatprep.subr.bf16.mxu0 %v1514
    %1647 = vmatpush1.bf16.msra.mxu0 %v1513
    %1648 = vmatprep.subr.bf16.mxu0 %v1517
    %1649 = vmatpush1.bf16.msra.mxu0 %v1516
    %1650 = vmatprep.subr.bf16.mxu0 %v1520
    %1651 = vmatpush1.bf16.msra.mxu0 %v1519
    %1652 = vmatprep.subr.bf16.mxu0 %v1523
    %1653 = vmatpush1.bf16.msra.mxu0 %v1522
    %1654 = vmatprep.subr.bf16.mxu0 %v1526
    %1655 = vmatpush1.bf16.msra.mxu0 %v1525
    %1656 = vmatprep.subr.bf16.mxu0 %v1529
    %1657 = vmatpush1.bf16.msra.mxu0 %v1528
    %1658 = vmatprep.subr.bf16.mxu0 %v1532
    %1659 = vmatpush1.bf16.msra.mxu0 %v1531
    %1660 = vmatprep.subr.bf16.mxu0 %v1535
    %1661 = vmatpush1.bf16.msra.mxu0 %v1534
    %1662 = vmatprep.mubr.bf16.mxu0 %v419
    %1663 = vmatmul.mubr.bf16.gmra.mrb[0].mxu0 %v418
    %v1664 = vpop.f32.mrb[0].mxu0
    %v1665 = vadd.f32 %v1173, %v1664
    %v1666 = vpop.f32.mrb[0].mxu0
    %v1667 = vadd.f32 %v1175, %v1666
    %v1668 = vpop.f32.mrb[0].mxu0
    %v1669 = vpop.f32.mrb[0].mxu0
    %1670 = vdwg.mxu0
    %1671 = vmatprep.subr.bf16.mxu0 %v1538
    %1672 = vmatpush1.bf16.msra.mxu0 %v1537
    %1673 = vmatprep.subr.bf16.mxu0 %v1541
    %1674 = vmatpush1.bf16.msra.mxu0 %v1540
    %1675 = vmatprep.subr.bf16.mxu0 %v1544
    %1676 = vmatpush1.bf16.msra.mxu0 %v1543
    %1677 = vmatprep.subr.bf16.mxu0 %v1547
    %1678 = vmatpush1.bf16.msra.mxu0 %v1546
    %1679 = vmatprep.subr.bf16.mxu0 %v1550
    %1680 = vmatpush1.bf16.msra.mxu0 %v1549
    %1681 = vmatprep.subr.bf16.mxu0 %v1553
    %1682 = vmatpush1.bf16.msra.mxu0 %v1552
    %1683 = vmatprep.subr.bf16.mxu0 %v1556
    %1684 = vmatpush1.bf16.msra.mxu0 %v1555
    %1685 = vmatprep.subr.bf16.mxu0 0
    %1686 = vmatpush1.bf16.msra.mxu0 0
    %1687 = vmatprep.subr.bf16.mxu0 0
    %1688 = vmatpush1.bf16.msra.mxu0 0
    %1689 = vmatprep.subr.bf16.mxu0 0
    %1690 = vmatpush1.bf16.msra.mxu0 0
    %1691 = vmatprep.subr.bf16.mxu0 0
    %1692 = vmatpush1.bf16.msra.mxu0 0
    %1693 = vmatprep.subr.bf16.mxu0 0
    %1694 = vmatpush1.bf16.msra.mxu0 0
    %1695 = vmatprep.subr.bf16.mxu0 0
    %1696 = vmatpush1.bf16.msra.mxu0 0
    %1697 = vmatprep.subr.bf16.mxu0 0
    %1698 = vmatpush1.bf16.msra.mxu0 0
    %1699 = vmatprep.subr.bf16.mxu0 0
    %1700 = vmatpush1.bf16.msra.mxu0 0
    %1701 = vmatprep.subr.bf16.mxu0 0
    %1702 = vmatpush1.bf16.msra.mxu0 0
    %1703 = vmatprep.mubr.bf16.mxu0 0
    %1704 = vmatmul.mubr.bf16.gmra.mrb[0].mxu0 %v1628
    %v1705 = vpop.f32.mrb[0].mxu0
    %v1706 = vadd.f32 %v1665, %v1705
    %v1707 = vpop.f32.mrb[0].mxu0
    %v1708 = vadd.f32 %v1667, %v1707
    %v1709 = vpop.f32.mrb[0].mxu0
    %v1710 = vpop.f32.mrb[0].mxu0
    %1711 = vdwg.mxu0
    %1712 = vmatprep.subr.bf16.mxu0 0
    %1713 = vmatpush1.bf16.msra.mxu0 %v1491
    %1714 = vmatprep.subr.bf16.mxu0 0
    %1715 = vmatpush1.bf16.msra.mxu0 %v1494
    %1716 = vmatprep.subr.bf16.mxu0 0
    %1717 = vmatpush1.bf16.msra.mxu0 %v1497
    %1718 = vmatprep.subr.bf16.mxu0 0
    %1719 = vmatpush1.bf16.msra.mxu0 %v1500
    %1720 = vmatprep.subr.bf16.mxu0 0
    %1721 = vmatpush1.bf16.msra.mxu0 %v1503
    %1722 = vmatprep.subr.bf16.mxu0 0
    %1723 = vmatpush1.bf16.msra.mxu0 %v1506
    %1724 = vmatprep.subr.bf16.mxu0 0
    %1725 = vmatpush1.bf16.msra.mxu0 %v1509
    %1726 = vmatprep.subr.bf16.mxu0 0
    %1727 = vmatpush1.bf16.msra.mxu0 %v1512
    %1728 = vmatprep.subr.bf16.mxu0 0
    %1729 = vmatpush1.bf16.msra.mxu0 %v1515
    %1730 = vmatprep.subr.bf16.mxu0 0
    %1731 = vmatpush1.bf16.msra.mxu0 %v1518
    %1732 = vmatprep.subr.bf16.mxu0 0
    %1733 = vmatpush1.bf16.msra.mxu0 %v1521
    %1734 = vmatprep.subr.bf16.mxu0 0
    %1735 = vmatpush1.bf16.msra.mxu0 %v1524
    %1736 = vmatprep.subr.bf16.mxu0 0
    %1737 = vmatpush1.bf16.msra.mxu0 %v1527
    %1738 = vmatprep.subr.bf16.mxu0 0
    %1739 = vmatpush1.bf16.msra.mxu0 %v1530
    %1740 = vmatprep.subr.bf16.mxu0 0
    %1741 = vmatpush1.bf16.msra.mxu0 %v1533
    %1742 = vmatprep.subr.bf16.mxu0 0
    %1743 = vmatpush1.bf16.msra.mxu0 %v1536
    %1744 = vmatprep.mubr.bf16.mxu0 %v419
    %1745 = vmatmul.mubr.bf16.gmra.mrb[0].mxu0 %v418
    %v1746 = vpop.f32.mrb[0].mxu0
    %v1747 = vadd.f32 %v1254, %v1746
    %v1748 = vpop.f32.mrb[0].mxu0
    %v1749 = vpop.f32.mrb[0].mxu0
    %v1750 = vpop.f32.mrb[0].mxu0
    %1751 = vdwg.mxu0
    %1752 = vmatprep.subr.bf16.mxu0 0
    %1753 = vmatpush1.bf16.msra.mxu0 %v1539
    %1754 = vmatprep.subr.bf16.mxu0 0
    %1755 = vmatpush1.bf16.msra.mxu0 %v1542
    %1756 = vmatprep.subr.bf16.mxu0 0
    %1757 = vmatpush1.bf16.msra.mxu0 %v1545
    %1758 = vmatprep.subr.bf16.mxu0 0
    %1759 = vmatpush1.bf16.msra.mxu0 %v1548
    %1760 = vmatprep.subr.bf16.mxu0 0
    %1761 = vmatpush1.bf16.msra.mxu0 %v1551
    %1762 = vmatprep.subr.bf16.mxu0 0
    %1763 = vmatpush1.bf16.msra.mxu0 %v1554
    %1764 = vmatprep.subr.bf16.mxu0 0
    %1765 = vmatpush1.bf16.msra.mxu0 %v1557
    %1766 = vmatprep.subr.bf16.mxu0 0
    %1767 = vmatpush1.bf16.msra.mxu0 0
    %1768 = vmatprep.subr.bf16.mxu0 0
    %1769 = vmatpush1.bf16.msra.mxu0 0
    %1770 = vmatprep.subr.bf16.mxu0 0
    %1771 = vmatpush1.bf16.msra.mxu0 0
    %1772 = vmatprep.subr.bf16.mxu0 0
    %1773 = vmatpush1.bf16.msra.mxu0 0
    %1774 = vmatprep.subr.bf16.mxu0 0
    %1775 = vmatpush1.bf16.msra.mxu0 0
    %1776 = vmatprep.subr.bf16.mxu0 0
    %1777 = vmatpush1.bf16.msra.mxu0 0
    %1778 = vmatprep.subr.bf16.mxu0 0
    %1779 = vmatpush1.bf16.msra.mxu0 0
    %1780 = vmatprep.subr.bf16.mxu0 0
    %1781 = vmatpush1.bf16.msra.mxu0 0
    %1782 = vmatprep.subr.bf16.mxu0 0
    %1783 = vmatpush1.bf16.msra.mxu0 0
    %1784 = vmatprep.mubr.bf16.mxu0 0
    %1785 = vmatmul.mubr.bf16.gmra.mrb[0].mxu0 %v1628
    %v1786 = vpop.f32.mrb[0].mxu0
    %v1787 = vadd.f32 %v1747, %v1786
    %v1788 = vpop.f32.mrb[0].mxu0
    %v1789 = vpop.f32.mrb[0].mxu0
    %v1790 = vpop.f32.mrb[0].mxu0
    %1791 = vdwg.mxu0
    %s1792 = scalar_lea.vmem %s0, 4
    %v1793 = vld [vmem:[%s1792] sm:$0x1]
    %s1794 = scalar_lea.vmem %s0, 5
    %v1795 = vld [vmem:[%s1794] sm:$0x1]
    %v1796 = vadd.bf16 %v1793, %v1795
    %v1798 = vsel %vm293, %v1796, 0
    %1800 = vmatprep.subr.bf16.mxu0 %v255
    %1801 = vmatpush1.bf16.msra.mxu0 %v254
    %1802 = vmatprep.subr.bf16.mxu0 %v258
    %1803 = vmatpush1.bf16.msra.mxu0 %v257
    %1804 = vmatprep.subr.bf16.mxu0 %v261
    %1805 = vmatpush1.bf16.msra.mxu0 %v260
    %1806 = vmatprep.subr.bf16.mxu0 %v264
    %1807 = vmatpush1.bf16.msra.mxu0 %v263
    %1808 = vmatprep.subr.bf16.mxu0 %v267
    %1809 = vmatpush1.bf16.msra.mxu0 %v266
    %1810 = vmatprep.subr.bf16.mxu0 %v270
    %1811 = vmatpush1.bf16.msra.mxu0 %v269
    %1812 = vmatprep.subr.bf16.mxu0 %v305
    %1813 = vmatpush1.bf16.msra.mxu0 %v302
    %1814 = vmatprep.subr.bf16.mxu0 0
    %1815 = vmatpush1.bf16.msra.mxu0 0
    %1816 = vmatprep.subr.bf16.mxu0 0
    %1817 = vmatpush1.bf16.msra.mxu0 0
    %1818 = vmatprep.subr.bf16.mxu0 0
    %1819 = vmatpush1.bf16.msra.mxu0 0
    %1820 = vmatprep.subr.bf16.mxu0 0
    %1821 = vmatpush1.bf16.msra.mxu0 0
    %1822 = vmatprep.subr.bf16.mxu0 0
    %1823 = vmatpush1.bf16.msra.mxu0 0
    %1824 = vmatprep.subr.bf16.mxu0 0
    %1825 = vmatpush1.bf16.msra.mxu0 0
    %1826 = vmatprep.subr.bf16.mxu0 0
    %1827 = vmatpush1.bf16.msra.mxu0 0
    %1828 = vmatprep.subr.bf16.mxu0 0
    %1829 = vmatpush1.bf16.msra.mxu0 0
    %1830 = vmatprep.subr.bf16.mxu0 0
    %1831 = vmatpush1.bf16.msra.mxu0 0
    %1832 = vmatprep.mubr.bf16.mxu0 0
    %1833 = vmatmul.mubr.bf16.gmra.mrb[0].mxu0 %v1798
    %v1834 = vpop.f32.mrb[0].mxu0
    %v1835 = vadd.f32 %v177, %v1834
    %v1836 = vpop.f32.mrb[0].mxu0
    %v1837 = vadd.f32 %v181, %v1836
    %v1838 = vpop.f32.mrb[0].mxu0
    %v1839 = vpop.f32.mrb[0].mxu0
    %1840 = vdwg.mxu0
    %1841 = vmatprep.subr.bf16.mxu0 0
    %1842 = vmatpush1.bf16.msra.mxu0 %v256
    %1843 = vmatprep.subr.bf16.mxu0 0
    %1844 = vmatpush1.bf16.msra.mxu0 %v259
    %1845 = vmatprep.subr.bf16.mxu0 0
    %1846 = vmatpush1.bf16.msra.mxu0 %v262
    %1847 = vmatprep.subr.bf16.mxu0 0
    %1848 = vmatpush1.bf16.msra.mxu0 %v265
    %1849 = vmatprep.subr.bf16.mxu0 0
    %1850 = vmatpush1.bf16.msra.mxu0 %v268
    %1851 = vmatprep.subr.bf16.mxu0 0
    %1852 = vmatpush1.bf16.msra.mxu0 %v271
    %1853 = vmatprep.subr.bf16.mxu0 0
    %1854 = vmatpush1.bf16.msra.mxu0 %v308
    %1855 = vmatprep.subr.bf16.mxu0 0
    %1856 = vmatpush1.bf16.msra.mxu0 0
    %1857 = vmatprep.subr.bf16.mxu0 0
    %1858 = vmatpush1.bf16.msra.mxu0 0
    %1859 = vmatprep.subr.bf16.mxu0 0
    %1860 = vmatpush1.bf16.msra.mxu0 0
    %1861 = vmatprep.subr.bf16.mxu0 0
    %1862 = vmatpush1.bf16.msra.mxu0 0
    %1863 = vmatprep.subr.bf16.mxu0 0
    %1864 = vmatpush1.bf16.msra.mxu0 0
    %1865 = vmatprep.subr.bf16.mxu0 0
    %1866 = vmatpush1.bf16.msra.mxu0 0
    %1867 = vmatprep.subr.bf16.mxu0 0
    %1868 = vmatpush1.bf16.msra.mxu0 0
    %1869 = vmatprep.subr.bf16.mxu0 0
    %1870 = vmatpush1.bf16.msra.mxu0 0
    %1871 = vmatprep.subr.bf16.mxu0 0
    %1872 = vmatpush1.bf16.msra.mxu0 0
    %1873 = vmatprep.mubr.bf16.mxu0 0
    %1874 = vmatmul.mubr.bf16.gmra.mrb[0].mxu0 %v1798
    %v1875 = vpop.f32.mrb[0].mxu0
    %v1876 = vadd.f32 %v185, %v1875
    %v1877 = vpop.f32.mrb[0].mxu0
    %v1878 = vpop.f32.mrb[0].mxu0
    %v1879 = vpop.f32.mrb[0].mxu0
    %1880 = vdwg.mxu0
    %v1881 = vmul.f32 %v1835, 0.5
    %v1882 = vmul.f32 %v1837, 0.5
    %v1883 = vmul.f32 %v1876, 0.5
    %v1884 = vmul.f32 %v1835, 0.044715
    %v1885 = vmul.f32 %v1837, 0.044715
    %v1886 = vmul.f32 %v1876, 0.044715
    %v1887 = vmul.f32 %v1884, %v1835
    %v1888 = vmul.f32 %v1885, %v1837
    %v1889 = vmul.f32 %v1886, %v1876
    %v1890 = vmul.f32 %v1887, %v1835
    %v1891 = vmul.f32 %v1888, %v1837
    %v1892 = vmul.f32 %v1889, %v1876
    %v1893 = vadd.f32 %v1835, %v1890
    %v1894 = vadd.f32 %v1837, %v1891
    %v1895 = vadd.f32 %v1876, %v1892
    %v1896 = vmul.f32 %v1893, 0.7978846
    %v1897 = vmul.f32 %v1894, 0.7978846
    %v1898 = vmul.f32 %v1895, 0.7978846
    %v1899 = vtanh.pop %v1896
    %v1900 = vtanh.pop %v1897
    %v1901 = vtanh.pop %v1898
    %v1902 = vadd.f32 %v1899, 1.0
    %v1903 = vadd.f32 %v1900, 1.0
    %v1904 = vadd.f32 %v1901, 1.0
    %v1905 = vmul.f32 %v1881, %v1902
    %v1906 = vmul.f32 %v1882, %v1903
    %v1907 = vmul.f32 %v1883, %v1904
    %v1908 = vpack.c.bf16 %v1905, %v1905
    %v1909 = vpack.c.bf16 %v1906, %v1906
    %v1910 = vpack.c.bf16 %v1907, %v1907
    %s1911 = scalar_lea.vmem [#allocation7], 1104
    %v1912 = vld [vmem:[%s1911] sm:$0xff]
    %v1913 = vld [vmem:[%s1911 + $0x8] sm:$0xf]
    %v1914 = vld [vmem:[%s1911 + $0xc] sm:$0xff]
    %v1915 = vld [vmem:[%s1911 + $0x14] sm:$0xf]
    %v1916 = vld [vmem:[%s1911 + $0x18] sm:$0xff]
    %v1917 = vld [vmem:[%s1911 + $0x20] sm:$0xf]
    %v1918 = vld [vmem:[%s1911 + $0x24] sm:$0xff]
    %v1919 = vld [vmem:[%s1911 + $0x2c] sm:$0xf]
    %v1920 = vld [vmem:[%s1911 + $0x30] sm:$0xff]
    %v1921 = vld [vmem:[%s1911 + $0x38] sm:$0xf]
    %v1922 = vld [vmem:[%s1911 + $0x3c] sm:$0xff]
    %v1923 = vld [vmem:[%s1911 + $0x44] sm:$0xf]
    %v1924 = vld [vmem:[%s1911 + $0x48] sm:$0xff]
    %v1925 = vld [vmem:[%s1911 + $0x50] sm:$0xf]
    %v1926 = vld [vmem:[%s1911 + $0x54] sm:$0xff]
    %v1927 = vld [vmem:[%s1911 + $0x5c] sm:$0xf]
    %v1928 = vld [vmem:[%s1911 + $0x60] sm:$0xff]
    %v1929 = vld [vmem:[%s1911 + $0x68] sm:$0xf]
    %v1930 = vld [vmem:[%s1911 + $0x6c] sm:$0xff]
    %v1931 = vld [vmem:[%s1911 + $0x74] sm:$0xf]
    %v1932 = vld [vmem:[%s1911 + $0x78] sm:$0xff]
    %v1933 = vld [vmem:[%s1911 + $0x80] sm:$0xf]
    %v1934 = vld [vmem:[%s1911 + $0x84] sm:$0xff]
    %v1935 = vld [vmem:[%s1911 + $0x8c] sm:$0xf]
    %v1936 = vld [vmem:[%s1911 + $0x90] sm:$0xff]
    %v1937 = vld [vmem:[%s1911 + $0x98] sm:$0xf]
    %v1938 = vld [vmem:[%s1911 + $0x9c] sm:$0xff]
    %v1939 = vld [vmem:[%s1911 + $0xa4] sm:$0xf]
    %v1940 = vld [vmem:[%s1911 + $0xa8] sm:$0xff]
    %v1941 = vld [vmem:[%s1911 + $0xb0] sm:$0xf]
    %v1942 = vld [vmem:[%s1911 + $0xb4] sm:$0xff]
    %v1943 = vld [vmem:[%s1911 + $0xbc] sm:$0xf]
    %v1944 = vld [vmem:[%s1911 + $0xc0] sm:$0xff]
    %v1945 = vld [vmem:[%s1911 + $0xc8] sm:$0xf]
    %v1946 = vld [vmem:[%s1911 + $0xcc] sm:$0xff]
    %v1947 = vld [vmem:[%s1911 + $0xd4] sm:$0xf]
    %v1948 = vld [vmem:[%s1911 + $0xd8] sm:$0xff]
    %v1949 = vld [vmem:[%s1911 + $0xe0] sm:$0xf]
    %v1950 = vld [vmem:[%s1911 + $0xe4] sm:$0xff]
    %v1951 = vld [vmem:[%s1911 + $0xec] sm:$0xf]
    %v1952 = vld [vmem:[%s1911 + $0xf0] sm:$0xff]
    %v1953 = vld [vmem:[%s1911 + $0xf8] sm:$0xf]
    %v1954 = vld [vmem:[%s1911 + $0xfc] sm:$0xff]
    %v1955 = vld [vmem:[%s1911 + $0x104] sm:$0xf]
    %v1956 = vld [vmem:[%s1911 + $0x108] sm:$0xff]
    %v1957 = vld [vmem:[%s1911 + $0x110] sm:$0xf]
    %v1958 = vld [vmem:[%s1911 + $0x114] sm:$0xff]
    %v1959 = vld [vmem:[%s1911 + $0x11c] sm:$0xf]
    %v1960 = vld [vmem:[%s1911 + $0x120] sm:$0xff]
    %v1961 = vld [vmem:[%s1911 + $0x128] sm:$0xf]
    %v1962 = vld [vmem:[%s1911 + $0x12c] sm:$0xff]
    %v1963 = vld [vmem:[%s1911 + $0x134] sm:$0xf]
    %v1964 = vld [vmem:[%s1911 + $0x138] sm:$0xff]
    %v1965 = vld [vmem:[%s1911 + $0x140] sm:$0xf]
    %v1966 = vld [vmem:[%s1911 + $0x144] sm:$0xff]
    %v1967 = vld [vmem:[%s1911 + $0x14c] sm:$0xf]
    %v1968 = vld [vmem:[%s1911 + $0x150] sm:$0xff]
    %v1969 = vld [vmem:[%s1911 + $0x158] sm:$0xf]
    %v1970 = vld [vmem:[%s1911 + $0x15c] sm:$0xff]
    %v1971 = vld [vmem:[%s1911 + $0x164] sm:$0xf]
    %v1972 = vld [vmem:[%s1911 + $0x168] sm:$0xff]
    %v1973 = vld [vmem:[%s1911 + $0x170] sm:$0xf]
    %v1974 = vld [vmem:[%s1911 + $0x174] sm:$0xff]
    %v1975 = vld [vmem:[%s1911 + $0x17c] sm:$0xf]
    %v1976 = vld [vmem:[%s1911 + $0x180] sm:$0xff]
    %v1977 = vld [vmem:[%s1911 + $0x188] sm:$0xf]
    %v1978 = vld [vmem:[%s1911 + $0x18c] sm:$0xff]
    %v1979 = vld [vmem:[%s1911 + $0x194] sm:$0xf]
    %v1980 = vld [vmem:[%s1911 + $0x198] sm:$0xff]
    %v1981 = vld [vmem:[%s1911 + $0x1a0] sm:$0xf]
    %v1982 = vld [vmem:[%s1911 + $0x1a4] sm:$0xff]
    %v1983 = vld [vmem:[%s1911 + $0x1ac] sm:$0xf]
    %v1984 = vld [vmem:[%s1911 + $0x1b0] sm:$0xff]
    %v1985 = vld [vmem:[%s1911 + $0x1b8] sm:$0xf]
    %v1986 = vld [vmem:[%s1911 + $0x1bc] sm:$0xff]
    %v1987 = vld [vmem:[%s1911 + $0x1c4] sm:$0xf]
    %v1988 = vld [vmem:[%s1911 + $0x1c8] sm:$0xff]
    %v1989 = vld [vmem:[%s1911 + $0x1d0] sm:$0xf]
    %v1990 = vld [vmem:[%s1911 + $0x1d4] sm:$0xff]
    %v1991 = vld [vmem:[%s1911 + $0x1dc] sm:$0xf]
    %v1992 = vld [vmem:[%s1911 + $0x1e0] sm:$0xff]
    %v1993 = vld [vmem:[%s1911 + $0x1e8] sm:$0xf]
    %v1994 = vld [vmem:[%s1911 + $0x1ec] sm:$0xff]
    %v1995 = vld [vmem:[%s1911 + $0x1f4] sm:$0xf]
    %v1996 = vld [vmem:[%s1911 + $0x1f8] sm:$0xff]
    %v1997 = vld [vmem:[%s1911 + $0x200] sm:$0xf]
    %v1998 = vld [vmem:[%s1911 + $0x204] sm:$0xff]
    %v1999 = vld [vmem:[%s1911 + $0x20c] sm:$0xf]
    %v2000 = vld [vmem:[%s1911 + $0x210] sm:$0xff]
    %v2001 = vld [vmem:[%s1911 + $0x218] sm:$0xf]
    %v2002 = vld [vmem:[%s1911 + $0x21c] sm:$0xff]
    %v2003 = vld [vmem:[%s1911 + $0x224] sm:$0xf]
    %v2096 = vunpack.c.l.b16 %v1912
    %v2097 = vunpack.c.h.b16 %v1912
    %v2098 = vunpack.c.l.b16 %v1913
    %v2099 = vunpack.c.l.b16 %v1914
    %v2100 = vunpack.c.h.b16 %v1914
    %v2101 = vunpack.c.l.b16 %v1915
    %v2102 = vunpack.c.l.b16 %v1916
    %v2103 = vunpack.c.h.b16 %v1916
    %v2104 = vunpack.c.l.b16 %v1917
    %v2105 = vunpack.c.l.b16 %v1918
    %v2106 = vunpack.c.h.b16 %v1918
    %v2107 = vunpack.c.l.b16 %v1919
    %v2108 = vunpack.c.l.b16 %v1920
    %v2109 = vunpack.c.h.b16 %v1920
    %v2110 = vunpack.c.l.b16 %v1921
    %v2111 = vunpack.c.l.b16 %v1922
    %v2112 = vunpack.c.h.b16 %v1922
    %v2113 = vunpack.c.l.b16 %v1923
    %v2114 = vunpack.c.l.b16 %v1924
    %v2115 = vunpack.c.h.b16 %v1924
    %v2116 = vunpack.c.l.b16 %v1925
    %v2117 = vunpack.c.l.b16 %v1926
    %v2118 = vunpack.c.h.b16 %v1926
    %v2119 = vunpack.c.l.b16 %v1927
    %v2120 = vunpack.c.l.b16 %v1928
    %v2121 = vunpack.c.h.b16 %v1928
    %v2122 = vunpack.c.l.b16 %v1929
    %v2123 = vunpack.c.l.b16 %v1930
    %v2124 = vunpack.c.h.b16 %v1930
    %v2125 = vunpack.c.l.b16 %v1931
    %v2126 = vunpack.c.l.b16 %v1932
    %v2127 = vunpack.c.h.b16 %v1932
    %v2128 = vunpack.c.l.b16 %v1933
    %v2129 = vunpack.c.l.b16 %v1934
    %v2130 = vunpack.c.h.b16 %v1934
    %v2131 = vunpack.c.l.b16 %v1935
    %v2132 = vunpack.c.l.b16 %v1936
    %v2133 = vunpack.c.h.b16 %v1936
    %v2134 = vunpack.c.l.b16 %v1937
    %v2135 = vunpack.c.l.b16 %v1938
    %v2136 = vunpack.c.h.b16 %v1938
    %v2137 = vunpack.c.l.b16 %v1939
    %v2138 = vunpack.c.l.b16 %v1940
    %v2139 = vunpack.c.h.b16 %v1940
    %v2140 = vunpack.c.l.b16 %v1941
    %v2141 = vunpack.c.l.b16 %v1942
    %v2142 = vunpack.c.h.b16 %v1942
    %v2143 = vunpack.c.l.b16 %v1943
    %v2144 = vunpack.c.l.b16 %v1944
    %v2145 = vunpack.c.h.b16 %v1944
    %v2146 = vunpack.c.l.b16 %v1945
    %v2147 = vunpack.c.l.b16 %v1946
    %v2148 = vunpack.c.h.b16 %v1946
    %v2149 = vunpack.c.l.b16 %v1947
    %v2150 = vunpack.c.l.b16 %v1948
    %v2151 = vunpack.c.h.b16 %v1948
    %v2152 = vunpack.c.l.b16 %v1949
    %v2153 = vunpack.c.l.b16 %v1950
    %v2154 = vunpack.c.h.b16 %v1950
    %v2155 = vunpack.c.l.b16 %v1951
    %v2156 = vunpack.c.l.b16 %v1952
    %v2157 = vunpack.c.h.b16 %v1952
    %v2158 = vunpack.c.l.b16 %v1953
    %v2159 = vunpack.c.l.b16 %v1954
    %v2160 = vunpack.c.h.b16 %v1954
    %v2161 = vunpack.c.l.b16 %v1955
    %v2162 = vunpack.c.l.b16 %v1956
    %v2163 = vunpack.c.h.b16 %v1956
    %v2164 = vunpack.c.l.b16 %v1957
    %v2165 = vunpack.c.l.b16 %v1958
    %v2166 = vunpack.c.h.b16 %v1958
    %v2167 = vunpack.c.l.b16 %v1959
    %v2168 = vunpack.c.l.b16 %v1960
    %v2169 = vunpack.c.h.b16 %v1960
    %v2170 = vunpack.c.l.b16 %v1961
    %v2171 = vunpack.c.l.b16 %v1962
    %v2172 = vunpack.c.h.b16 %v1962
    %v2173 = vunpack.c.l.b16 %v1963
    %v2174 = vunpack.c.l.b16 %v1964
    %v2175 = vunpack.c.h.b16 %v1964
    %v2176 = vunpack.c.l.b16 %v1965
    %v2177 = vunpack.c.l.b16 %v1966
    %v2178 = vunpack.c.h.b16 %v1966
    %v2179 = vunpack.c.l.b16 %v1967
    %v2180 = vunpack.c.l.b16 %v1968
    %v2181 = vunpack.c.h.b16 %v1968
    %v2182 = vunpack.c.l.b16 %v1969
    %v2183 = vunpack.c.l.b16 %v1970
    %v2184 = vunpack.c.h.b16 %v1970
    %v2185 = vunpack.c.l.b16 %v1971
    %v2186 = vunpack.c.l.b16 %v1972
    %v2187 = vunpack.c.h.b16 %v1972
    %v2188 = vunpack.c.l.b16 %v1973
    %v2189 = vunpack.c.l.b16 %v1974
    %v2190 = vunpack.c.h.b16 %v1974
    %v2191 = vunpack.c.l.b16 %v1975
    %v2192 = vunpack.c.l.b16 %v1976
    %v2193 = vunpack.c.h.b16 %v1976
    %v2194 = vunpack.c.l.b16 %v1977
    %v2195 = vunpack.c.l.b16 %v1978
    %v2196 = vunpack.c.h.b16 %v1978
    %v2197 = vunpack.c.l.b16 %v1979
    %v2198 = vunpack.c.l.b16 %v1980
    %v2199 = vunpack.c.h.b16 %v1980
    %v2200 = vunpack.c.l.b16 %v1981
    %v2201 = vunpack.c.l.b16 %v1982
    %v2202 = vunpack.c.h.b16 %v1982
    %v2203 = vunpack.c.l.b16 %v1983
    %v2204 = vunpack.c.l.b16 %v1984
    %v2205 = vunpack.c.h.b16 %v1984
    %v2206 = vunpack.c.l.b16 %v1985
    %v2207 = vunpack.c.l.b16 %v1986
    %v2208 = vunpack.c.h.b16 %v1986
    %v2209 = vunpack.c.l.b16 %v1987
    %v2210 = vunpack.c.l.b16 %v1988
    %v2211 = vunpack.c.h.b16 %v1988
    %v2212 = vunpack.c.l.b16 %v1989
    %v2213 = vunpack.c.l.b16 %v1990
    %v2214 = vunpack.c.h.b16 %v1990
    %v2215 = vunpack.c.l.b16 %v1991
    %v2216 = vunpack.c.l.b16 %v1992
    %v2217 = vunpack.c.h.b16 %v1992
    %v2218 = vunpack.c.l.b16 %v1993
    %v2219 = vunpack.c.l.b16 %v1994
    %v2220 = vunpack.c.h.b16 %v1994
    %v2221 = vunpack.c.l.b16 %v1995
    %v2222 = vunpack.c.l.b16 %v1996
    %v2223 = vunpack.c.h.b16 %v1996
    %v2224 = vunpack.c.l.b16 %v1997
    %v2225 = vunpack.c.l.b16 %v1998
    %v2226 = vunpack.c.h.b16 %v1998
    %v2227 = vunpack.c.l.b16 %v1999
    %v2228 = vunpack.c.l.b16 %v2000
    %v2229 = vunpack.c.h.b16 %v2000
    %v2230 = vunpack.c.l.b16 %v2001
    %v2231 = vunpack.c.l.b16 %v2002
    %v2232 = vunpack.c.h.b16 %v2002
    %v2233 = vunpack.c.l.b16 %v2003
    %v2234 = vpack.c.b16 %v2099, %v2096
    %v2235 = vpack.c.b16 %v2100, %v2097
    %v2236 = vpack.c.b16 %v2101, %v2098
    %v2237 = vpack.c.b16 %v2105, %v2102
    %v2238 = vpack.c.b16 %v2106, %v2103
    %v2239 = vpack.c.b16 %v2107, %v2104
    %v2240 = vpack.c.b16 %v2111, %v2108
    %v2241 = vpack.c.b16 %v2112, %v2109
    %v2242 = vpack.c.b16 %v2113, %v2110
    %v2243 = vpack.c.b16 %v2117, %v2114
    %v2244 = vpack.c.b16 %v2118, %v2115
    %v2245 = vpack.c.b16 %v2119, %v2116
    %v2246 = vpack.c.b16 %v2123, %v2120
    %v2247 = vpack.c.b16 %v2124, %v2121
    %v2248 = vpack.c.b16 %v2125, %v2122
    %v2249 = vpack.c.b16 %v2129, %v2126
    %v2250 = vpack.c.b16 %v2130, %v2127
    %v2251 = vpack.c.b16 %v2131, %v2128
    %v2252 = vpack.c.b16 %v2135, %v2132
    %v2253 = vpack.c.b16 %v2136, %v2133
    %v2254 = vpack.c.b16 %v2137, %v2134
    %v2255 = vpack.c.b16 %v2141, %v2138
    %v2256 = vpack.c.b16 %v2142, %v2139
    %v2257 = vpack.c.b16 %v2143, %v2140
    %v2258 = vpack.c.b16 %v2147, %v2144
    %v2259 = vpack.c.b16 %v2148, %v2145
    %v2260 = vpack.c.b16 %v2149, %v2146
    %v2261 = vpack.c.b16 %v2153, %v2150
    %v2262 = vpack.c.b16 %v2154, %v2151
    %v2263 = vpack.c.b16 %v2155, %v2152
    %v2264 = vpack.c.b16 %v2159, %v2156
    %v2265 = vpack.c.b16 %v2160, %v2157
    %v2266 = vpack.c.b16 %v2161, %v2158
    %v2267 = vpack.c.b16 %v2165, %v2162
    %v2268 = vpack.c.b16 %v2166, %v2163
    %v2269 = vpack.c.b16 %v2167, %v2164
    %v2270 = vpack.c.b16 %v2171, %v2168
    %v2271 = vpack.c.b16 %v2172, %v2169
    %v2272 = vpack.c.b16 %v2173, %v2170
    %v2273 = vpack.c.b16 %v2177, %v2174
    %v2274 = vpack.c.b16 %v2178, %v2175
    %v2275 = vpack.c.b16 %v2179, %v2176
    %v2276 = vpack.c.b16 %v2183, %v2180
    %v2277 = vpack.c.b16 %v2184, %v2181
    %v2278 = vpack.c.b16 %v2185, %v2182
    %v2279 = vpack.c.b16 %v2189, %v2186
    %v2280 = vpack.c.b16 %v2190, %v2187
    %v2281 = vpack.c.b16 %v2191, %v2188
    %v2282 = vpack.c.b16 %v2195, %v2192
    %v2283 = vpack.c.b16 %v2196, %v2193
    %v2284 = vpack.c.b16 %v2197, %v2194
    %v2285 = vpack.c.b16 %v2201, %v2198
    %v2286 = vpack.c.b16 %v2202, %v2199
    %v2287 = vpack.c.b16 %v2203, %v2200
    %v2288 = vpack.c.b16 %v2207, %v2204
    %v2289 = vpack.c.b16 %v2208, %v2205
    %v2290 = vpack.c.b16 %v2209, %v2206
    %v2291 = vpack.c.b16 %v2213, %v2210
    %v2292 = vpack.c.b16 %v2214, %v2211
    %v2293 = vpack.c.b16 %v2215, %v2212
    %v2294 = vpack.c.b16 %v2219, %v2216
    %v2295 = vpack.c.b16 %v2220, %v2217
    %v2296 = vpack.c.b16 %v2221, %v2218
    %v2297 = vpack.c.b16 %v2225, %v2222
    %v2298 = vpack.c.b16 %v2226, %v2223
    %v2299 = vpack.c.b16 %v2227, %v2224
    %v2300 = vpack.c.b16 %v2231, %v2228
    %v2301 = vpack.c.b16 %v2232, %v2229
    %v2302 = vpack.c.b16 %v2233, %v2230
    %v2373 = vsel %vm1093, %v1910, 0
    %2375 = vmatprep.subr.bf16.mxu0 %v2235
    %2376 = vmatpush1.bf16.msra.mxu0 %v2234
    %2377 = vmatprep.subr.bf16.mxu0 %v2238
    %2378 = vmatpush1.bf16.msra.mxu0 %v2237
    %2379 = vmatprep.subr.bf16.mxu0 %v2241
    %2380 = vmatpush1.bf16.msra.mxu0 %v2240
    %2381 = vmatprep.subr.bf16.mxu0 %v2244
    %2382 = vmatpush1.bf16.msra.mxu0 %v2243
    %2383 = vmatprep.subr.bf16.mxu0 %v2247
    %2384 = vmatpush1.bf16.msra.mxu0 %v2246
    %2385 = vmatprep.subr.bf16.mxu0 %v2250
    %2386 = vmatpush1.bf16.msra.mxu0 %v2249
    %2387 = vmatprep.subr.bf16.mxu0 %v2253
    %2388 = vmatpush1.bf16.msra.mxu0 %v2252
    %2389 = vmatprep.subr.bf16.mxu0 %v2256
    %2390 = vmatpush1.bf16.msra.mxu0 %v2255
    %2391 = vmatprep.subr.bf16.mxu0 %v2259
    %2392 = vmatpush1.bf16.msra.mxu0 %v2258
    %2393 = vmatprep.subr.bf16.mxu0 %v2262
    %2394 = vmatpush1.bf16.msra.mxu0 %v2261
    %2395 = vmatprep.subr.bf16.mxu0 %v2265
    %2396 = vmatpush1.bf16.msra.mxu0 %v2264
    %2397 = vmatprep.subr.bf16.mxu0 %v2268
    %2398 = vmatpush1.bf16.msra.mxu0 %v2267
    %2399 = vmatprep.subr.bf16.mxu0 %v2271
    %2400 = vmatpush1.bf16.msra.mxu0 %v2270
    %2401 = vmatprep.subr.bf16.mxu0 %v2274
    %2402 = vmatpush1.bf16.msra.mxu0 %v2273
    %2403 = vmatprep.subr.bf16.mxu0 %v2277
    %2404 = vmatpush1.bf16.msra.mxu0 %v2276
    %2405 = vmatprep.subr.bf16.mxu0 %v2280
    %2406 = vmatpush1.bf16.msra.mxu0 %v2279
    %2407 = vmatprep.mubr.bf16.mxu0 %v1909
    %2408 = vmatmul.mubr.bf16.gmra.mrb[0].mxu0 %v1908
    %v2409 = vpop.f32.mrb[0].mxu0
    %v2410 = vadd.f32 0.0, %v2409
    %v2411 = vpop.f32.mrb[0].mxu0
    %v2412 = vadd.f32 0.0, %v2411
    %v2413 = vpop.f32.mrb[0].mxu0
    %v2414 = vpop.f32.mrb[0].mxu0
    %2415 = vdwg.mxu0
    %2416 = vmatprep.subr.bf16.mxu0 %v2283
    %2417 = vmatpush1.bf16.msra.mxu0 %v2282
    %2418 = vmatprep.subr.bf16.mxu0 %v2286
    %2419 = vmatpush1.bf16.msra.mxu0 %v2285
    %2420 = vmatprep.subr.bf16.mxu0 %v2289
    %2421 = vmatpush1.bf16.msra.mxu0 %v2288
    %2422 = vmatprep.subr.bf16.mxu0 %v2292
    %2423 = vmatpush1.bf16.msra.mxu0 %v2291
    %2424 = vmatprep.subr.bf16.mxu0 %v2295
    %2425 = vmatpush1.bf16.msra.mxu0 %v2294
    %2426 = vmatprep.subr.bf16.mxu0 %v2298
    %2427 = vmatpush1.bf16.msra.mxu0 %v2297
    %2428 = vmatprep.subr.bf16.mxu0 %v2301
    %2429 = vmatpush1.bf16.msra.mxu0 %v2300
    %2430 = vmatprep.subr.bf16.mxu0 0
    %2431 = vmatpush1.bf16.msra.mxu0 0
    %2432 = vmatprep.subr.bf16.mxu0 0
    %2433 = vmatpush1.bf16.msra.mxu0 0
    %2434 = vmatprep.subr.bf16.mxu0 0
    %2435 = vmatpush1.bf16.msra.mxu0 0
    %2436 = vmatprep.subr.bf16.mxu0 0
    %2437 = vmatpush1.bf16.msra.mxu0 0
    %2438 = vmatprep.subr.bf16.mxu0 0
    %2439 = vmatpush1.bf16.msra.mxu0 0
    %2440 = vmatprep.subr.bf16.mxu0 0
    %2441 = vmatpush1.bf16.msra.mxu0 0
    %2442 = vmatprep.subr.bf16.mxu0 0
    %2443 = vmatpush1.bf16.msra.mxu0 0
    %2444 = vmatprep.subr.bf16.mxu0 0
    %2445 = vmatpush1.bf16.msra.mxu0 0
    %2446 = vmatprep.subr.bf16.mxu0 0
    %2447 = vmatpush1.bf16.msra.mxu0 0
    %2448 = vmatprep.mubr.bf16.mxu0 0
    %2449 = vmatmul.mubr.bf16.gmra.mrb[0].mxu0 %v2373
    %v2450 = vpop.f32.mrb[0].mxu0
    %v2451 = vadd.f32 %v2410, %v2450
    %v2452 = vpop.f32.mrb[0].mxu0
    %v2453 = vadd.f32 %v2412, %v2452
    %v2454 = vpop.f32.mrb[0].mxu0
    %v2455 = vpop.f32.mrb[0].mxu0
    %2456 = vdwg.mxu0
    %2457 = vmatprep.subr.bf16.mxu0 0
    %2458 = vmatpush1.bf16.msra.mxu0 %v2236
    %2459 = vmatprep.subr.bf16.mxu0 0
    %2460 = vmatpush1.bf16.msra.mxu0 %v2239
    %2461 = vmatprep.subr.bf16.mxu0 0
    %2462 = vmatpush1.bf16.msra.mxu0 %v2242
    %2463 = vmatprep.subr.bf16.mxu0 0
    %2464 = vmatpush1.bf16.msra.mxu0 %v2245
    %2465 = vmatprep.subr.bf16.mxu0 0
    %2466 = vmatpush1.bf16.msra.mxu0 %v2248
    %2467 = vmatprep.subr.bf16.mxu0 0
    %2468 = vmatpush1.bf16.msra.mxu0 %v2251
    %2469 = vmatprep.subr.bf16.mxu0 0
    %2470 = vmatpush1.bf16.msra.mxu0 %v2254
    %2471 = vmatprep.subr.bf16.mxu0 0
    %2472 = vmatpush1.bf16.msra.mxu0 %v2257
    %2473 = vmatprep.subr.bf16.mxu0 0
    %2474 = vmatpush1.bf16.msra.mxu0 %v2260
    %2475 = vmatprep.subr.bf16.mxu0 0
    %2476 = vmatpush1.bf16.msra.mxu0 %v2263
    %2477 = vmatprep.subr.bf16.mxu0 0
    %2478 = vmatpush1.bf16.msra.mxu0 %v2266
    %2479 = vmatprep.subr.bf16.mxu0 0
    %2480 = vmatpush1.bf16.msra.mxu0 %v2269
    %2481 = vmatprep.subr.bf16.mxu0 0
    %2482 = vmatpush1.bf16.msra.mxu0 %v2272
    %2483 = vmatprep.subr.bf16.mxu0 0
    %2484 = vmatpush1.bf16.msra.mxu0 %v2275
    %2485 = vmatprep.subr.bf16.mxu0 0
    %2486 = vmatpush1.bf16.msra.mxu0 %v2278
    %2487 = vmatprep.subr.bf16.mxu0 0
    %2488 = vmatpush1.bf16.msra.mxu0 %v2281
    %2489 = vmatprep.mubr.bf16.mxu0 %v1909
    %2490 = vmatmul.mubr.bf16.gmra.mrb[0].mxu0 %v1908
    %v2491 = vpop.f32.mrb[0].mxu0
    %v2492 = vadd.f32 0.0, %v2491
    %v2493 = vpop.f32.mrb[0].mxu0
    %v2494 = vpop.f32.mrb[0].mxu0
    %v2495 = vpop.f32.mrb[0].mxu0
    %2496 = vdwg.mxu0
    %2497 = vmatprep.subr.bf16.mxu0 0
    %2498 = vmatpush1.bf16.msra.mxu0 %v2284
    %2499 = vmatprep.subr.bf16.mxu0 0
    %2500 = vmatpush1.bf16.msra.mxu0 %v2287
    %2501 = vmatprep.subr.bf16.mxu0 0
    %2502 = vmatpush1.bf16.msra.mxu0 %v2290
    %2503 = vmatprep.subr.bf16.mxu0 0
    %2504 = vmatpush1.bf16.msra.mxu0 %v2293
    %2505 = vmatprep.subr.bf16.mxu0 0
    %2506 = vmatpush1.bf16.msra.mxu0 %v2296
    %2507 = vmatprep.subr.bf16.mxu0 0
    %2508 = vmatpush1.bf16.msra.mxu0 %v2299
    %2509 = vmatprep.subr.bf16.mxu0 0
    %2510 = vmatpush1.bf16.msra.mxu0 %v2302
    %2511 = vmatprep.subr.bf16.mxu0 0
    %2512 = vmatpush1.bf16.msra.mxu0 0
    %2513 = vmatprep.subr.bf16.mxu0 0
    %2514 = vmatpush1.bf16.msra.mxu0 0
    %2515 = vmatprep.subr.bf16.mxu0 0
    %2516 = vmatpush1.bf16.msra.mxu0 0
    %2517 = vmatprep.subr.bf16.mxu0 0
    %2518 = vmatpush1.bf16.msra.mxu0 0
    %2519 = vmatprep.subr.bf16.mxu0 0
    %2520 = vmatpush1.bf16.msra.mxu0 0
    %2521 = vmatprep.subr.bf16.mxu0 0
    %2522 = vmatpush1.bf16.msra.mxu0 0
    %2523 = vmatprep.subr.bf16.mxu0 0
    %2524 = vmatpush1.bf16.msra.mxu0 0
    %2525 = vmatprep.subr.bf16.mxu0 0
    %2526 = vmatpush1.bf16.msra.mxu0 0
    %2527 = vmatprep.subr.bf16.mxu0 0
    %2528 = vmatpush1.bf16.msra.mxu0 0
    %2529 = vmatprep.mubr.bf16.mxu0 0
    %2530 = vmatmul.mubr.bf16.gmra.mrb[0].mxu0 %v2373
    %v2531 = vpop.f32.mrb[0].mxu0
    %v2532 = vadd.f32 %v2492, %v2531
    %v2533 = vpop.f32.mrb[0].mxu0
    %v2534 = vpop.f32.mrb[0].mxu0
    %v2535 = vpop.f32.mrb[0].mxu0
    %2536 = vdwg.mxu0
    %v2537 = vadd.f32 %v1706, %v2451
    %v2538 = vadd.f32 %v1708, %v2453
    %v2539 = vadd.f32 %v1787, %v2532
    %s2540 = scalar_lea.vmem %s0, 6
    %v2541 = vld [vmem:[%s2540] sm:$0x1]
    %s2542 = scalar_lea.vmem %s0, 7
    %v2543 = vld [vmem:[%s2542] sm:$0x1]
    %v2544 = vadd.bf16 %v2541, %v2543
    %v2546 = vsel %vm293, %v2544, 0
    %2548 = vmatprep.subr.bf16.mxu0 %v255
    %2549 = vmatpush1.bf16.msra.mxu0 %v254
    %2550 = vmatprep.subr.bf16.mxu0 %v258
    %2551 = vmatpush1.bf16.msra.mxu0 %v257
    %2552 = vmatprep.subr.bf16.mxu0 %v261
    %2553 = vmatpush1.bf16.msra.mxu0 %v260
    %2554 = vmatprep.subr.bf16.mxu0 %v264
    %2555 = vmatpush1.bf16.msra.mxu0 %v263
    %2556 = vmatprep.subr.bf16.mxu0 %v267
    %2557 = vmatpush1.bf16.msra.mxu0 %v266
    %2558 = vmatprep.subr.bf16.mxu0 %v270
    %2559 = vmatpush1.bf16.msra.mxu0 %v269
    %2560 = vmatprep.subr.bf16.mxu0 %v305
    %2561 = vmatpush1.bf16.msra.mxu0 %v302
    %2562 = vmatprep.subr.bf16.mxu0 0
    %2563 = vmatpush1.bf16.msra.mxu0 0
    %2564 = vmatprep.subr.bf16.mxu0 0
    %2565 = vmatpush1.bf16.msra.mxu0 0
    %2566 = vmatprep.subr.bf16.mxu0 0
    %2567 = vmatpush1.bf16.msra.mxu0 0
    %2568 = vmatprep.subr.bf16.mxu0 0
    %2569 = vmatpush1.bf16.msra.mxu0 0
    %2570 = vmatprep.subr.bf16.mxu0 0
    %2571 = vmatpush1.bf16.msra.mxu0 0
    %2572 = vmatprep.subr.bf16.mxu0 0
    %2573 = vmatpush1.bf16.msra.mxu0 0
    %2574 = vmatprep.subr.bf16.mxu0 0
    %2575 = vmatpush1.bf16.msra.mxu0 0
    %2576 = vmatprep.subr.bf16.mxu0 0
    %2577 = vmatpush1.bf16.msra.mxu0 0
    %2578 = vmatprep.subr.bf16.mxu0 0
    %2579 = vmatpush1.bf16.msra.mxu0 0
    %2580 = vmatprep.mubr.bf16.mxu0 0
    %2581 = vmatmul.mubr.bf16.gmra.mrb[0].mxu0 %v2546
    %v2582 = vpop.f32.mrb[0].mxu0
    %v2583 = vadd.f32 %v177, %v2582
    %v2584 = vpop.f32.mrb[0].mxu0
    %v2585 = vadd.f32 %v181, %v2584
    %v2586 = vpop.f32.mrb[0].mxu0
    %v2587 = vpop.f32.mrb[0].mxu0
    %2588 = vdwg.mxu0
    %2589 = vmatprep.subr.bf16.mxu0 0
    %2590 = vmatpush1.bf16.msra.mxu0 %v256
    %2591 = vmatprep.subr.bf16.mxu0 0
    %2592 = vmatpush1.bf16.msra.mxu0 %v259
    %2593 = vmatprep.subr.bf16.mxu0 0
    %2594 = vmatpush1.bf16.msra.mxu0 %v262
    %2595 = vmatprep.subr.bf16.mxu0 0
    %2596 = vmatpush1.bf16.msra.mxu0 %v265
    %2597 = vmatprep.subr.bf16.mxu0 0
    %2598 = vmatpush1.bf16.msra.mxu0 %v268
    %2599 = vmatprep.subr.bf16.mxu0 0
    %2600 = vmatpush1.bf16.msra.mxu0 %v271
    %2601 = vmatprep.subr.bf16.mxu0 0
    %2602 = vmatpush1.bf16.msra.mxu0 %v308
    %2603 = vmatprep.subr.bf16.mxu0 0
    %2604 = vmatpush1.bf16.msra.mxu0 0
    %2605 = vmatprep.subr.bf16.mxu0 0
    %2606 = vmatpush1.bf16.msra.mxu0 0
    %2607 = vmatprep.subr.bf16.mxu0 0
    %2608 = vmatpush1.bf16.msra.mxu0 0
    %2609 = vmatprep.subr.bf16.mxu0 0
    %2610 = vmatpush1.bf16.msra.mxu0 0
    %2611 = vmatprep.subr.bf16.mxu0 0
    %2612 = vmatpush1.bf16.msra.mxu0 0
    %2613 = vmatprep.subr.bf16.mxu0 0
    %2614 = vmatpush1.bf16.msra.mxu0 0
    %2615 = vmatprep.subr.bf16.mxu0 0
    %2616 = vmatpush1.bf16.msra.mxu0 0
    %2617 = vmatprep.subr.bf16.mxu0 0
    %2618 = vmatpush1.bf16.msra.mxu0 0
    %2619 = vmatprep.subr.bf16.mxu0 0
    %2620 = vmatpush1.bf16.msra.mxu0 0
    %2621 = vmatprep.mubr.bf16.mxu0 0
    %2622 = vmatmul.mubr.bf16.gmra.mrb[0].mxu0 %v2546
    %v2623 = vpop.f32.mrb[0].mxu0
    %v2624 = vadd.f32 %v185, %v2623
    %v2625 = vpop.f32.mrb[0].mxu0
    %v2626 = vpop.f32.mrb[0].mxu0
    %v2627 = vpop.f32.mrb[0].mxu0
    %2628 = vdwg.mxu0
    %v2629 = vmul.f32 %v2583, 0.5
    %v2630 = vmul.f32 %v2585, 0.5
    %v2631 = vmul.f32 %v2624, 0.5
    %v2632 = vmul.f32 %v2583, 0.044715
    %v2633 = vmul.f32 %v2585, 0.044715
    %v2634 = vmul.f32 %v2624, 0.044715
    %v2635 = vmul.f32 %v2632, %v2583
    %v2636 = vmul.f32 %v2633, %v2585
    %v2637 = vmul.f32 %v2634, %v2624
    %v2638 = vmul.f32 %v2635, %v2583
    %v2639 = vmul.f32 %v2636, %v2585
    %v2640 = vmul.f32 %v2637, %v2624
    %v2641 = vadd.f32 %v2583, %v2638
    %v2642 = vadd.f32 %v2585, %v2639
    %v2643 = vadd.f32 %v2624, %v2640
    %v2644 = vmul.f32 %v2641, 0.7978846
    %v2645 = vmul.f32 %v2642, 0.7978846
    %v2646 = vmul.f32 %v2643, 0.7978846
    %v2647 = vtanh.pop %v2644
    %v2648 = vtanh.pop %v2645
    %v2649 = vtanh.pop %v2646
    %v2650 = vadd.f32 %v2647, 1.0
    %v2651 = vadd.f32 %v2648, 1.0
    %v2652 = vadd.f32 %v2649, 1.0
    %v2653 = vmul.f32 %v2629, %v2650
    %v2654 = vmul.f32 %v2630, %v2651
    %v2655 = vmul.f32 %v2631, %v2652
    %v2656 = vpack.c.bf16 %v2653, %v2653
    %v2657 = vpack.c.bf16 %v2654, %v2654
    %v2658 = vpack.c.bf16 %v2655, %v2655
    %s2659 = scalar_lea.vmem [#allocation7], 1656
    %v2660 = vld [vmem:[%s2659] sm:$0xff]
    %v2661 = vld [vmem:[%s2659 + $0x8] sm:$0xf]
    %v2662 = vld [vmem:[%s2659 + $0xc] sm:$0xff]
    %v2663 = vld [vmem:[%s2659 + $0x14] sm:$0xf]
    %v2664 = vld [vmem:[%s2659 + $0x18] sm:$0xff]
    %v2665 = vld [vmem:[%s2659 + $0x20] sm:$0xf]
    %v2666 = vld [vmem:[%s2659 + $0x24] sm:$0xff]
    %v2667 = vld [vmem:[%s2659 + $0x2c] sm:$0xf]
    %v2668 = vld [vmem:[%s2659 + $0x30] sm:$0xff]
    %v2669 = vld [vmem:[%s2659 + $0x38] sm:$0xf]
    %v2670 = vld [vmem:[%s2659 + $0x3c] sm:$0xff]
    %v2671 = vld [vmem:[%s2659 + $0x44] sm:$0xf]
    %v2672 = vld [vmem:[%s2659 + $0x48] sm:$0xff]
    %v2673 = vld [vmem:[%s2659 + $0x50] sm:$0xf]
    %v2674 = vld [vmem:[%s2659 + $0x54] sm:$0xff]
    %v2675 = vld [vmem:[%s2659 + $0x5c] sm:$0xf]
    %v2676 = vld [vmem:[%s2659 + $0x60] sm:$0xff]
    %v2677 = vld [vmem:[%s2659 + $0x68] sm:$0xf]
    %v2678 = vld [vmem:[%s2659 + $0x6c] sm:$0xff]
    %v2679 = vld [vmem:[%s2659 + $0x74] sm:$0xf]
    %v2680 = vld [vmem:[%s2659 + $0x78] sm:$0xff]
    %v2681 = vld [vmem:[%s2659 + $0x80] sm:$0xf]
    %v2682 = vld [vmem:[%s2659 + $0x84] sm:$0xff]
    %v2683 = vld [vmem:[%s2659 + $0x8c] sm:$0xf]
    %v2684 = vld [vmem:[%s2659 + $0x90] sm:$0xff]
    %v2685 = vld [vmem:[%s2659 + $0x98] sm:$0xf]
    %v2686 = vld [vmem:[%s2659 + $0x9c] sm:$0xff]
    %v2687 = vld [vmem:[%s2659 + $0xa4] sm:$0xf]
    %v2688 = vld [vmem:[%s2659 + $0xa8] sm:$0xff]
    %v2689 = vld [vmem:[%s2659 + $0xb0] sm:$0xf]
    %v2690 = vld [vmem:[%s2659 + $0xb4] sm:$0xff]
    %v2691 = vld [vmem:[%s2659 + $0xbc] sm:$0xf]
    %v2692 = vld [vmem:[%s2659 + $0xc0] sm:$0xff]
    %v2693 = vld [vmem:[%s2659 + $0xc8] sm:$0xf]
    %v2694 = vld [vmem:[%s2659 + $0xcc] sm:$0xff]
    %v2695 = vld [vmem:[%s2659 + $0xd4] sm:$0xf]
    %v2696 = vld [vmem:[%s2659 + $0xd8] sm:$0xff]
    %v2697 = vld [vmem:[%s2659 + $0xe0] sm:$0xf]
    %v2698 = vld [vmem:[%s2659 + $0xe4] sm:$0xff]
    %v2699 = vld [vmem:[%s2659 + $0xec] sm:$0xf]
    %v2700 = vld [vmem:[%s2659 + $0xf0] sm:$0xff]
    %v2701 = vld [vmem:[%s2659 + $0xf8] sm:$0xf]
    %v2702 = vld [vmem:[%s2659 + $0xfc] sm:$0xff]
    %v2703 = vld [vmem:[%s2659 + $0x104] sm:$0xf]
    %v2704 = vld [vmem:[%s2659 + $0x108] sm:$0xff]
    %v2705 = vld [vmem:[%s2659 + $0x110] sm:$0xf]
    %v2706 = vld [vmem:[%s2659 + $0x114] sm:$0xff]
    %v2707 = vld [vmem:[%s2659 + $0x11c] sm:$0xf]
    %v2708 = vld [vmem:[%s2659 + $0x120] sm:$0xff]
    %v2709 = vld [vmem:[%s2659 + $0x128] sm:$0xf]
    %v2710 = vld [vmem:[%s2659 + $0x12c] sm:$0xff]
    %v2711 = vld [vmem:[%s2659 + $0x134] sm:$0xf]
    %v2712 = vld [vmem:[%s2659 + $0x138] sm:$0xff]
    %v2713 = vld [vmem:[%s2659 + $0x140] sm:$0xf]
    %v2714 = vld [vmem:[%s2659 + $0x144] sm:$0xff]
    %v2715 = vld [vmem:[%s2659 + $0x14c] sm:$0xf]
    %v2716 = vld [vmem:[%s2659 + $0x150] sm:$0xff]
    %v2717 = vld [vmem:[%s2659 + $0x158] sm:$0xf]
    %v2718 = vld [vmem:[%s2659 + $0x15c] sm:$0xff]
    %v2719 = vld [vmem:[%s2659 + $0x164] sm:$0xf]
    %v2720 = vld [vmem:[%s2659 + $0x168] sm:$0xff]
    %v2721 = vld [vmem:[%s2659 + $0x170] sm:$0xf]
    %v2722 = vld [vmem:[%s2659 + $0x174] sm:$0xff]
    %v2723 = vld [vmem:[%s2659 + $0x17c] sm:$0xf]
    %v2724 = vld [vmem:[%s2659 + $0x180] sm:$0xff]
    %v2725 = vld [vmem:[%s2659 + $0x188] sm:$0xf]
    %v2726 = vld [vmem:[%s2659 + $0x18c] sm:$0xff]
    %v2727 = vld [vmem:[%s2659 + $0x194] sm:$0xf]
    %v2728 = vld [vmem:[%s2659 + $0x198] sm:$0xff]
    %v2729 = vld [vmem:[%s2659 + $0x1a0] sm:$0xf]
    %v2730 = vld [vmem:[%s2659 + $0x1a4] sm:$0xff]
    %v2731 = vld [vmem:[%s2659 + $0x1ac] sm:$0xf]
    %v2732 = vld [vmem:[%s2659 + $0x1b0] sm:$0xff]
    %v2733 = vld [vmem:[%s2659 + $0x1b8] sm:$0xf]
    %v2734 = vld [vmem:[%s2659 + $0x1bc] sm:$0xff]
    %v2735 = vld [vmem:[%s2659 + $0x1c4] sm:$0xf]
    %v2736 = vld [vmem:[%s2659 + $0x1c8] sm:$0xff]
    %v2737 = vld [vmem:[%s2659 + $0x1d0] sm:$0xf]
    %v2738 = vld [vmem:[%s2659 + $0x1d4] sm:$0xff]
    %v2739 = vld [vmem:[%s2659 + $0x1dc] sm:$0xf]
    %v2740 = vld [vmem:[%s2659 + $0x1e0] sm:$0xff]
    %v2741 = vld [vmem:[%s2659 + $0x1e8] sm:$0xf]
    %v2742 = vld [vmem:[%s2659 + $0x1ec] sm:$0xff]
    %v2743 = vld [vmem:[%s2659 + $0x1f4] sm:$0xf]
    %v2744 = vld [vmem:[%s2659 + $0x1f8] sm:$0xff]
    %v2745 = vld [vmem:[%s2659 + $0x200] sm:$0xf]
    %v2746 = vld [vmem:[%s2659 + $0x204] sm:$0xff]
    %v2747 = vld [vmem:[%s2659 + $0x20c] sm:$0xf]
    %v2748 = vld [vmem:[%s2659 + $0x210] sm:$0xff]
    %v2749 = vld [vmem:[%s2659 + $0x218] sm:$0xf]
    %v2750 = vld [vmem:[%s2659 + $0x21c] sm:$0xff]
    %v2751 = vld [vmem:[%s2659 + $0x224] sm:$0xf]
    %v2844 = vunpack.c.l.b16 %v2660
    %v2845 = vunpack.c.h.b16 %v2660
    %v2846 = vunpack.c.l.b16 %v2661
    %v2847 = vunpack.c.l.b16 %v2662
    %v2848 = vunpack.c.h.b16 %v2662
    %v2849 = vunpack.c.l.b16 %v2663
    %v2850 = vunpack.c.l.b16 %v2664
    %v2851 = vunpack.c.h.b16 %v2664
    %v2852 = vunpack.c.l.b16 %v2665
    %v2853 = vunpack.c.l.b16 %v2666
    %v2854 = vunpack.c.h.b16 %v2666
    %v2855 = vunpack.c.l.b16 %v2667
    %v2856 = vunpack.c.l.b16 %v2668
    %v2857 = vunpack.c.h.b16 %v2668
    %v2858 = vunpack.c.l.b16 %v2669
    %v2859 = vunpack.c.l.b16 %v2670
    %v2860 = vunpack.c.h.b16 %v2670
    %v2861 = vunpack.c.l.b16 %v2671
    %v2862 = vunpack.c.l.b16 %v2672
    %v2863 = vunpack.c.h.b16 %v2672
    %v2864 = vunpack.c.l.b16 %v2673
    %v2865 = vunpack.c.l.b16 %v2674
    %v2866 = vunpack.c.h.b16 %v2674
    %v2867 = vunpack.c.l.b16 %v2675
    %v2868 = vunpack.c.l.b16 %v2676
    %v2869 = vunpack.c.h.b16 %v2676
    %v2870 = vunpack.c.l.b16 %v2677
    %v2871 = vunpack.c.l.b16 %v2678
    %v2872 = vunpack.c.h.b16 %v2678
    %v2873 = vunpack.c.l.b16 %v2679
    %v2874 = vunpack.c.l.b16 %v2680
    %v2875 = vunpack.c.h.b16 %v2680
    %v2876 = vunpack.c.l.b16 %v2681
    %v2877 = vunpack.c.l.b16 %v2682
    %v2878 = vunpack.c.h.b16 %v2682
    %v2879 = vunpack.c.l.b16 %v2683
    %v2880 = vunpack.c.l.b16 %v2684
    %v2881 = vunpack.c.h.b16 %v2684
    %v2882 = vunpack.c.l.b16 %v2685
    %v2883 = vunpack.c.l.b16 %v2686
    %v2884 = vunpack.c.h.b16 %v2686
    %v2885 = vunpack.c.l.b16 %v2687
    %v2886 = vunpack.c.l.b16 %v2688
    %v2887 = vunpack.c.h.b16 %v2688
    %v2888 = vunpack.c.l.b16 %v2689
    %v2889 = vunpack.c.l.b16 %v2690
    %v2890 = vunpack.c.h.b16 %v2690
    %v2891 = vunpack.c.l.b16 %v2691
    %v2892 = vunpack.c.l.b16 %v2692
    %v2893 = vunpack.c.h.b16 %v2692
    %v2894 = vunpack.c.l.b16 %v2693
    %v2895 = vunpack.c.l.b16 %v2694
    %v2896 = vunpack.c.h.b16 %v2694
    %v2897 = vunpack.c.l.b16 %v2695
    %v2898 = vunpack.c.l.b16 %v2696
    %v2899 = vunpack.c.h.b16 %v2696
    %v2900 = vunpack.c.l.b16 %v2697
    %v2901 = vunpack.c.l.b16 %v2698
    %v2902 = vunpack.c.h.b16 %v2698
    %v2903 = vunpack.c.l.b16 %v2699
    %v2904 = vunpack.c.l.b16 %v2700
    %v2905 = vunpack.c.h.b16 %v2700
    %v2906 = vunpack.c.l.b16 %v2701
    %v2907 = vunpack.c.l.b16 %v2702
    %v2908 = vunpack.c.h.b16 %v2702
    %v2909 = vunpack.c.l.b16 %v2703
    %v2910 = vunpack.c.l.b16 %v2704
    %v2911 = vunpack.c.h.b16 %v2704
    %v2912 = vunpack.c.l.b16 %v2705
    %v2913 = vunpack.c.l.b16 %v2706
    %v2914 = vunpack.c.h.b16 %v2706
    %v2915 = vunpack.c.l.b16 %v2707
    %v2916 = vunpack.c.l.b16 %v2708
    %v2917 = vunpack.c.h.b16 %v2708
    %v2918 = vunpack.c.l.b16 %v2709
    %v2919 = vunpack.c.l.b16 %v2710
    %v2920 = vunpack.c.h.b16 %v2710
    %v2921 = vunpack.c.l.b16 %v2711
    %v2922 = vunpack.c.l.b16 %v2712
    %v2923 = vunpack.c.h.b16 %v2712
    %v2924 = vunpack.c.l.b16 %v2713
    %v2925 = vunpack.c.l.b16 %v2714
    %v2926 = vunpack.c.h.b16 %v2714
    %v2927 = vunpack.c.l.b16 %v2715
    %v2928 = vunpack.c.l.b16 %v2716
    %v2929 = vunpack.c.h.b16 %v2716
    %v2930 = vunpack.c.l.b16 %v2717
    %v2931 = vunpack.c.l.b16 %v2718
    %v2932 = vunpack.c.h.b16 %v2718
    %v2933 = vunpack.c.l.b16 %v2719
    %v2934 = vunpack.c.l.b16 %v2720
    %v2935 = vunpack.c.h.b16 %v2720
    %v2936 = vunpack.c.l.b16 %v2721
    %v2937 = vunpack.c.l.b16 %v2722
    %v2938 = vunpack.c.h.b16 %v2722
    %v2939 = vunpack.c.l.b16 %v2723
    %v2940 = vunpack.c.l.b16 %v2724
    %v2941 = vunpack.c.h.b16 %v2724
    %v2942 = vunpack.c.l.b16 %v2725
    %v2943 = vunpack.c.l.b16 %v2726
    %v2944 = vunpack.c.h.b16 %v2726
    %v2945 = vunpack.c.l.b16 %v2727
    %v2946 = vunpack.c.l.b16 %v2728
    %v2947 = vunpack.c.h.b16 %v2728
    %v2948 = vunpack.c.l.b16 %v2729
    %v2949 = vunpack.c.l.b16 %v2730
    %v2950 = vunpack.c.h.b16 %v2730
    %v2951 = vunpack.c.l.b16 %v2731
    %v2952 = vunpack.c.l.b16 %v2732
    %v2953 = vunpack.c.h.b16 %v2732
    %v2954 = vunpack.c.l.b16 %v2733
    %v2955 = vunpack.c.l.b16 %v2734
    %v2956 = vunpack.c.h.b16 %v2734
    %v2957 = vunpack.c.l.b16 %v2735
    %v2958 = vunpack.c.l.b16 %v2736
    %v2959 = vunpack.c.h.b16 %v2736
    %v2960 = vunpack.c.l.b16 %v2737
    %v2961 = vunpack.c.l.b16 %v2738
    %v2962 = vunpack.c.h.b16 %v2738
    %v2963 = vunpack.c.l.b16 %v2739
    %v2964 = vunpack.c.l.b16 %v2740
    %v2965 = vunpack.c.h.b16 %v2740
    %v2966 = vunpack.c.l.b16 %v2741
    %v2967 = vunpack.c.l.b16 %v2742
    %v2968 = vunpack.c.h.b16 %v2742
    %v2969 = vunpack.c.l.b16 %v2743
    %v2970 = vunpack.c.l.b16 %v2744
    %v2971 = vunpack.c.h.b16 %v2744
    %v2972 = vunpack.c.l.b16 %v2745
    %v2973 = vunpack.c.l.b16 %v2746
    %v2974 = vunpack.c.h.b16 %v2746
    %v2975 = vunpack.c.l.b16 %v2747
    %v2976 = vunpack.c.l.b16 %v2748
    %v2977 = vunpack.c.h.b16 %v2748
    %v2978 = vunpack.c.l.b16 %v2749
    %v2979 = vunpack.c.l.b16 %v2750
    %v2980 = vunpack.c.h.b16 %v2750
    %v2981 = vunpack.c.l.b16 %v2751
    %v2982 = vpack.c.b16 %v2847, %v2844
    %v2983 = vpack.c.b16 %v2848, %v2845
    %v2984 = vpack.c.b16 %v2849, %v2846
    %v2985 = vpack.c.b16 %v2853, %v2850
    %v2986 = vpack.c.b16 %v2854, %v2851
    %v2987 = vpack.c.b16 %v2855, %v2852
    %v2988 = vpack.c.b16 %v2859, %v2856
    %v2989 = vpack.c.b16 %v2860, %v2857
    %v2990 = vpack.c.b16 %v2861, %v2858
    %v2991 = vpack.c.b16 %v2865, %v2862
    %v2992 = vpack.c.b16 %v2866, %v2863
    %v2993 = vpack.c.b16 %v2867, %v2864
    %v2994 = vpack.c.b16 %v2871, %v2868
    %v2995 = vpack.c.b16 %v2872, %v2869
    %v2996 = vpack.c.b16 %v2873, %v2870
    %v2997 = vpack.c.b16 %v2877, %v2874
    %v2998 = vpack.c.b16 %v2878, %v2875
    %v2999 = vpack.c.b16 %v2879, %v2876
    %v3000 = vpack.c.b16 %v2883, %v2880
    %v3001 = vpack.c.b16 %v2884, %v2881
    %v3002 = vpack.c.b16 %v2885, %v2882
    %v3003 = vpack.c.b16 %v2889, %v2886
    %v3004 = vpack.c.b16 %v2890, %v2887
    %v3005 = vpack.c.b16 %v2891, %v2888
    %v3006 = vpack.c.b16 %v2895, %v2892
    %v3007 = vpack.c.b16 %v2896, %v2893
    %v3008 = vpack.c.b16 %v2897, %v2894
    %v3009 = vpack.c.b16 %v2901, %v2898
    %v3010 = vpack.c.b16 %v2902, %v2899
    %v3011 = vpack.c.b16 %v2903, %v2900
    %v3012 = vpack.c.b16 %v2907, %v2904
    %v3013 = vpack.c.b16 %v2908, %v2905
    %v3014 = vpack.c.b16 %v2909, %v2906
    %v3015 = vpack.c.b16 %v2913, %v2910
    %v3016 = vpack.c.b16 %v2914, %v2911
    %v3017 = vpack.c.b16 %v2915, %v2912
    %v3018 = vpack.c.b16 %v2919, %v2916
    %v3019 = vpack.c.b16 %v2920, %v2917
    %v3020 = vpack.c.b16 %v2921, %v2918
    %v3021 = vpack.c.b16 %v2925, %v2922
    %v3022 = vpack.c.b16 %v2926, %v2923
    %v3023 = vpack.c.b16 %v2927, %v2924
    %v3024 = vpack.c.b16 %v2931, %v2928
    %v3025 = vpack.c.b16 %v2932, %v2929
    %v3026 = vpack.c.b16 %v2933, %v2930
    %v3027 = vpack.c.b16 %v2937, %v2934
    %v3028 = vpack.c.b16 %v2938, %v2935
    %v3029 = vpack.c.b16 %v2939, %v2936
    %v3030 = vpack.c.b16 %v2943, %v2940
    %v3031 = vpack.c.b16 %v2944, %v2941
    %v3032 = vpack.c.b16 %v2945, %v2942
    %v3033 = vpack.c.b16 %v2949, %v2946
    %v3034 = vpack.c.b16 %v2950, %v2947
    %v3035 = vpack.c.b16 %v2951, %v2948
    %v3036 = vpack.c.b16 %v2955, %v2952
    %v3037 = vpack.c.b16 %v2956, %v2953
    %v3038 = vpack.c.b16 %v2957, %v2954
    %v3039 = vpack.c.b16 %v2961, %v2958
    %v3040 = vpack.c.b16 %v2962, %v2959
    %v3041 = vpack.c.b16 %v2963, %v2960
    %v3042 = vpack.c.b16 %v2967, %v2964
    %v3043 = vpack.c.b16 %v2968, %v2965
    %v3044 = vpack.c.b16 %v2969, %v2966
    %v3045 = vpack.c.b16 %v2973, %v2970
    %v3046 = vpack.c.b16 %v2974, %v2971
    %v3047 = vpack.c.b16 %v2975, %v2972
    %v3048 = vpack.c.b16 %v2979, %v2976
    %v3049 = vpack.c.b16 %v2980, %v2977
    %v3050 = vpack.c.b16 %v2981, %v2978
    %v3121 = vsel %vm1093, %v2658, 0
    %3123 = vmatprep.subr.bf16.mxu0 %v2983
    %3124 = vmatpush1.bf16.msra.mxu0 %v2982
    %3125 = vmatprep.subr.bf16.mxu0 %v2986
    %3126 = vmatpush1.bf16.msra.mxu0 %v2985
    %3127 = vmatprep.subr.bf16.mxu0 %v2989
    %3128 = vmatpush1.bf16.msra.mxu0 %v2988
    %3129 = vmatprep.subr.bf16.mxu0 %v2992
    %3130 = vmatpush1.bf16.msra.mxu0 %v2991
    %3131 = vmatprep.subr.bf16.mxu0 %v2995
    %3132 = vmatpush1.bf16.msra.mxu0 %v2994
    %3133 = vmatprep.subr.bf16.mxu0 %v2998
    %3134 = vmatpush1.bf16.msra.mxu0 %v2997
    %3135 = vmatprep.subr.bf16.mxu0 %v3001
    %3136 = vmatpush1.bf16.msra.mxu0 %v3000
    %3137 = vmatprep.subr.bf16.mxu0 %v3004
    %3138 = vmatpush1.bf16.msra.mxu0 %v3003
    %3139 = vmatprep.subr.bf16.mxu0 %v3007
    %3140 = vmatpush1.bf16.msra.mxu0 %v3006
    %3141 = vmatprep.subr.bf16.mxu0 %v3010
    %3142 = vmatpush1.bf16.msra.mxu0 %v3009
    %3143 = vmatprep.subr.bf16.mxu0 %v3013
    %3144 = vmatpush1.bf16.msra.mxu0 %v3012
    %3145 = vmatprep.subr.bf16.mxu0 %v3016
    %3146 = vmatpush1.bf16.msra.mxu0 %v3015
    %3147 = vmatprep.subr.bf16.mxu0 %v3019
    %3148 = vmatpush1.bf16.msra.mxu0 %v3018
    %3149 = vmatprep.subr.bf16.mxu0 %v3022
    %3150 = vmatpush1.bf16.msra.mxu0 %v3021
    %3151 = vmatprep.subr.bf16.mxu0 %v3025
    %3152 = vmatpush1.bf16.msra.mxu0 %v3024
    %3153 = vmatprep.subr.bf16.mxu0 %v3028
    %3154 = vmatpush1.bf16.msra.mxu0 %v3027
    %3155 = vmatprep.mubr.bf16.mxu0 %v2657
    %3156 = vmatmul.mubr.bf16.gmra.mrb[0].mxu0 %v2656
    %v3157 = vpop.f32.mrb[0].mxu0
    %v3158 = vadd.f32 0.0, %v3157
    %v3159 = vpop.f32.mrb[0].mxu0
    %v3160 = vadd.f32 0.0, %v3159
    %v3161 = vpop.f32.mrb[0].mxu0
    %v3162 = vpop.f32.mrb[0].mxu0
    %3163 = vdwg.mxu0
    %3164 = vmatprep.subr.bf16.mxu0 %v3031
    %3165 = vmatpush1.bf16.msra.mxu0 %v3030
    %3166 = vmatprep.subr.bf16.mxu0 %v3034
    %3167 = vmatpush1.bf16.msra.mxu0 %v3033
    %3168 = vmatprep.subr.bf16.mxu0 %v3037
    %3169 = vmatpush1.bf16.msra.mxu0 %v3036
    %3170 = vmatprep.subr.bf16.mxu0 %v3040
    %3171 = vmatpush1.bf16.msra.mxu0 %v3039
    %3172 = vmatprep.subr.bf16.mxu0 %v3043
    %3173 = vmatpush1.bf16.msra.mxu0 %v3042
    %3174 = vmatprep.subr.bf16.mxu0 %v3046
    %3175 = vmatpush1.bf16.msra.mxu0 %v3045
    %3176 = vmatprep.subr.bf16.mxu0 %v3049
    %3177 = vmatpush1.bf16.msra.mxu0 %v3048
    %3178 = vmatprep.subr.bf16.mxu0 0
    %3179 = vmatpush1.bf16.msra.mxu0 0
    %3180 = vmatprep.subr.bf16.mxu0 0
    %3181 = vmatpush1.bf16.msra.mxu0 0
    %3182 = vmatprep.subr.bf16.mxu0 0
    %3183 = vmatpush1.bf16.msra.mxu0 0
    %3184 = vmatprep.subr.bf16.mxu0 0
    %3185 = vmatpush1.bf16.msra.mxu0 0
    %3186 = vmatprep.subr.bf16.mxu0 0
    %3187 = vmatpush1.bf16.msra.mxu0 0
    %3188 = vmatprep.subr.bf16.mxu0 0
    %3189 = vmatpush1.bf16.msra.mxu0 0
    %3190 = vmatprep.subr.bf16.mxu0 0
    %3191 = vmatpush1.bf16.msra.mxu0 0
    %3192 = vmatprep.subr.bf16.mxu0 0
    %3193 = vmatpush1.bf16.msra.mxu0 0
    %3194 = vmatprep.subr.bf16.mxu0 0
    %3195 = vmatpush1.bf16.msra.mxu0 0
    %3196 = vmatprep.mubr.bf16.mxu0 0
    %3197 = vmatmul.mubr.bf16.gmra.mrb[0].mxu0 %v3121
    %v3198 = vpop.f32.mrb[0].mxu0
    %v3199 = vadd.f32 %v3158, %v3198
    %v3200 = vpop.f32.mrb[0].mxu0
    %v3201 = vadd.f32 %v3160, %v3200
    %v3202 = vpop.f32.mrb[0].mxu0
    %v3203 = vpop.f32.mrb[0].mxu0
    %3204 = vdwg.mxu0
    %3205 = vmatprep.subr.bf16.mxu0 0
    %3206 = vmatpush1.bf16.msra.mxu0 %v2984
    %3207 = vmatprep.subr.bf16.mxu0 0
    %3208 = vmatpush1.bf16.msra.mxu0 %v2987
    %3209 = vmatprep.subr.bf16.mxu0 0
    %3210 = vmatpush1.bf16.msra.mxu0 %v2990
    %3211 = vmatprep.subr.bf16.mxu0 0
    %3212 = vmatpush1.bf16.msra.mxu0 %v2993
    %3213 = vmatprep.subr.bf16.mxu0 0
    %3214 = vmatpush1.bf16.msra.mxu0 %v2996
    %3215 = vmatprep.subr.bf16.mxu0 0
    %3216 = vmatpush1.bf16.msra.mxu0 %v2999
    %3217 = vmatprep.subr.bf16.mxu0 0
    %3218 = vmatpush1.bf16.msra.mxu0 %v3002
    %3219 = vmatprep.subr.bf16.mxu0 0
    %3220 = vmatpush1.bf16.msra.mxu0 %v3005
    %3221 = vmatprep.subr.bf16.mxu0 0
    %3222 = vmatpush1.bf16.msra.mxu0 %v3008
    %3223 = vmatprep.subr.bf16.mxu0 0
    %3224 = vmatpush1.bf16.msra.mxu0 %v3011
    %3225 = vmatprep.subr.bf16.mxu0 0
    %3226 = vmatpush1.bf16.msra.mxu0 %v3014
    %3227 = vmatprep.subr.bf16.mxu0 0
    %3228 = vmatpush1.bf16.msra.mxu0 %v3017
    %3229 = vmatprep.subr.bf16.mxu0 0
    %3230 = vmatpush1.bf16.msra.mxu0 %v3020
    %3231 = vmatprep.subr.bf16.mxu0 0
    %3232 = vmatpush1.bf16.msra.mxu0 %v3023
    %3233 = vmatprep.subr.bf16.mxu0 0
    %3234 = vmatpush1.bf16.msra.mxu0 %v3026
    %3235 = vmatprep.subr.bf16.mxu0 0
    %3236 = vmatpush1.bf16.msra.mxu0 %v3029
    %3237 = vmatprep.mubr.bf16.mxu0 %v2657
    %3238 = vmatmul.mubr.bf16.gmra.mrb[0].mxu0 %v2656
    %v3239 = vpop.f32.mrb[0].mxu0
    %v3240 = vadd.f32 0.0, %v3239
    %v3241 = vpop.f32.mrb[0].mxu0
    %v3242 = vpop.f32.mrb[0].mxu0
    %v3243 = vpop.f32.mrb[0].mxu0
    %3244 = vdwg.mxu0
    %3245 = vmatprep.subr.bf16.mxu0 0
    %3246 = vmatpush1.bf16.msra.mxu0 %v3032
    %3247 = vmatprep.subr.bf16.mxu0 0
    %3248 = vmatpush1.bf16.msra.mxu0 %v3035
    %3249 = vmatprep.subr.bf16.mxu0 0
    %3250 = vmatpush1.bf16.msra.mxu0 %v3038
    %3251 = vmatprep.subr.bf16.mxu0 0
    %3252 = vmatpush1.bf16.msra.mxu0 %v3041
    %3253 = vmatprep.subr.bf16.mxu0 0
    %3254 = vmatpush1.bf16.msra.mxu0 %v3044
    %3255 = vmatprep.subr.bf16.mxu0 0
    %3256 = vmatpush1.bf16.msra.mxu0 %v3047
    %3257 = vmatprep.subr.bf16.mxu0 0
    %3258 = vmatpush1.bf16.msra.mxu0 %v3050
    %3259 = vmatprep.subr.bf16.mxu0 0
    %3260 = vmatpush1.bf16.msra.mxu0 0
    %3261 = vmatprep.subr.bf16.mxu0 0
    %3262 = vmatpush1.bf16.msra.mxu0 0
    %3263 = vmatprep.subr.bf16.mxu0 0
    %3264 = vmatpush1.bf16.msra.mxu0 0
    %3265 = vmatprep.subr.bf16.mxu0 0
    %3266 = vmatpush1.bf16.msra.mxu0 0
    %3267 = vmatprep.subr.bf16.mxu0 0
    %3268 = vmatpush1.bf16.msra.mxu0 0
    %3269 = vmatprep.subr.bf16.mxu0 0
    %3270 = vmatpush1.bf16.msra.mxu0 0
    %3271 = vmatprep.subr.bf16.mxu0 0
    %3272 = vmatpush1.bf16.msra.mxu0 0
    %3273 = vmatprep.subr.bf16.mxu0 0
    %3274 = vmatpush1.bf16.msra.mxu0 0
    %3275 = vmatprep.subr.bf16.mxu0 0
    %3276 = vmatpush1.bf16.msra.mxu0 0
    %3277 = vmatprep.mubr.bf16.mxu0 0
    %3278 = vmatmul.mubr.bf16.gmra.mrb[0].mxu0 %v3121
    %v3279 = vpop.f32.mrb[0].mxu0
    %v3280 = vadd.f32 %v3240, %v3279
    %v3281 = vpop.f32.mrb[0].mxu0
    %v3282 = vpop.f32.mrb[0].mxu0
    %v3283 = vpop.f32.mrb[0].mxu0
    %3284 = vdwg.mxu0
    %v3285 = vadd.f32 %v2537, %v3199
    %v3286 = vadd.f32 %v2538, %v3201
    %v3287 = vadd.f32 %v2539, %v3280
    %s3288 = scalar_lea.vmem %s0, 8
    %v3289 = vld [vmem:[%s3288] sm:$0x1]
    %s3290 = scalar_lea.vmem %s0, 9
    %v3291 = vld [vmem:[%s3290] sm:$0x1]
    %v3292 = vadd.bf16 %v3289, %v3291
    %v3294 = vsel %vm293, %v3292, 0
    %3296 = vmatprep.subr.bf16.mxu0 %v255
    %3297 = vmatpush1.bf16.msra.mxu0 %v254
    %3298 = vmatprep.subr.bf16.mxu0 %v258
    %3299 = vmatpush1.bf16.msra.mxu0 %v257
    %3300 = vmatprep.subr.bf16.mxu0 %v261
    %3301 = vmatpush1.bf16.msra.mxu0 %v260
    %3302 = vmatprep.subr.bf16.mxu0 %v264
    %3303 = vmatpush1.bf16.msra.mxu0 %v263
    %3304 = vmatprep.subr.bf16.mxu0 %v267
    %3305 = vmatpush1.bf16.msra.mxu0 %v266
    %3306 = vmatprep.subr.bf16.mxu0 %v270
    %3307 = vmatpush1.bf16.msra.mxu0 %v269
    %3308 = vmatprep.subr.bf16.mxu0 %v305
    %3309 = vmatpush1.bf16.msra.mxu0 %v302
    %3310 = vmatprep.subr.bf16.mxu0 0
    %3311 = vmatpush1.bf16.msra.mxu0 0
    %3312 = vmatprep.subr.bf16.mxu0 0
    %3313 = vmatpush1.bf16.msra.mxu0 0
    %3314 = vmatprep.subr.bf16.mxu0 0
    %3315 = vmatpush1.bf16.msra.mxu0 0
    %3316 = vmatprep.subr.bf16.mxu0 0
    %3317 = vmatpush1.bf16.msra.mxu0 0
    %3318 = vmatprep.subr.bf16.mxu0 0
    %3319 = vmatpush1.bf16.msra.mxu0 0
    %3320 = vmatprep.subr.bf16.mxu0 0
    %3321 = vmatpush1.bf16.msra.mxu0 0
    %3322 = vmatprep.subr.bf16.mxu0 0
    %3323 = vmatpush1.bf16.msra.mxu0 0
    %3324 = vmatprep.subr.bf16.mxu0 0
    %3325 = vmatpush1.bf16.msra.mxu0 0
    %3326 = vmatprep.subr.bf16.mxu0 0
    %3327 = vmatpush1.bf16.msra.mxu0 0
    %3328 = vmatprep.mubr.bf16.mxu0 0
    %3329 = vmatmul.mubr.bf16.gmra.mrb[0].mxu0 %v3294
    %v3330 = vpop.f32.mrb[0].mxu0
    %v3331 = vadd.f32 %v177, %v3330
    %v3332 = vpop.f32.mrb[0].mxu0
    %v3333 = vadd.f32 %v181, %v3332
    %v3334 = vpop.f32.mrb[0].mxu0
    %v3335 = vpop.f32.mrb[0].mxu0
    %3336 = vdwg.mxu0
    %3337 = vmatprep.subr.bf16.mxu0 0
    %3338 = vmatpush1.bf16.msra.mxu0 %v256
    %3339 = vmatprep.subr.bf16.mxu0 0
    %3340 = vmatpush1.bf16.msra.mxu0 %v259
    %3341 = vmatprep.subr.bf16.mxu0 0
    %3342 = vmatpush1.bf16.msra.mxu0 %v262
    %3343 = vmatprep.subr.bf16.mxu0 0
    %3344 = vmatpush1.bf16.msra.mxu0 %v265
    %3345 = vmatprep.subr.bf16.mxu0 0
    %3346 = vmatpush1.bf16.msra.mxu0 %v268
    %3347 = vmatprep.subr.bf16.mxu0 0
    %3348 = vmatpush1.bf16.msra.mxu0 %v271
    %3349 = vmatprep.subr.bf16.mxu0 0
    %3350 = vmatpush1.bf16.msra.mxu0 %v308
    %3351 = vmatprep.subr.bf16.mxu0 0
    %3352 = vmatpush1.bf16.msra.mxu0 0
    %3353 = vmatprep.subr.bf16.mxu0 0
    %3354 = vmatpush1.bf16.msra.mxu0 0
    %3355 = vmatprep.subr.bf16.mxu0 0
    %3356 = vmatpush1.bf16.msra.mxu0 0
    %3357 = vmatprep.subr.bf16.mxu0 0
    %3358 = vmatpush1.bf16.msra.mxu0 0
    %3359 = vmatprep.subr.bf16.mxu0 0
    %3360 = vmatpush1.bf16.msra.mxu0 0
    %3361 = vmatprep.subr.bf16.mxu0 0
    %3362 = vmatpush1.bf16.msra.mxu0 0
    %3363 = vmatprep.subr.bf16.mxu0 0
    %3364 = vmatpush1.bf16.msra.mxu0 0
    %3365 = vmatprep.subr.bf16.mxu0 0
    %3366 = vmatpush1.bf16.msra.mxu0 0
    %3367 = vmatprep.subr.bf16.mxu0 0
    %3368 = vmatpush1.bf16.msra.mxu0 0
    %3369 = vmatprep.mubr.bf16.mxu0 0
    %3370 = vmatmul.mubr.bf16.gmra.mrb[0].mxu0 %v3294
    %v3371 = vpop.f32.mrb[0].mxu0
    %v3372 = vadd.f32 %v185, %v3371
    %v3373 = vpop.f32.mrb[0].mxu0
    %v3374 = vpop.f32.mrb[0].mxu0
    %v3375 = vpop.f32.mrb[0].mxu0
    %3376 = vdwg.mxu0
    %v3377 = vmul.f32 %v3331, 0.5
    %v3378 = vmul.f32 %v3333, 0.5
    %v3379 = vmul.f32 %v3372, 0.5
    %v3380 = vmul.f32 %v3331, 0.044715
    %v3381 = vmul.f32 %v3333, 0.044715
    %v3382 = vmul.f32 %v3372, 0.044715
    %v3383 = vmul.f32 %v3380, %v3331
    %v3384 = vmul.f32 %v3381, %v3333
    %v3385 = vmul.f32 %v3382, %v3372
    %v3386 = vmul.f32 %v3383, %v3331
    %v3387 = vmul.f32 %v3384, %v3333
    %v3388 = vmul.f32 %v3385, %v3372
    %v3389 = vadd.f32 %v3331, %v3386
    %v3390 = vadd.f32 %v3333, %v3387
    %v3391 = vadd.f32 %v3372, %v3388
    %v3392 = vmul.f32 %v3389, 0.7978846
    %v3393 = vmul.f32 %v3390, 0.7978846
    %v3394 = vmul.f32 %v3391, 0.7978846
    %v3395 = vtanh.pop %v3392
    %v3396 = vtanh.pop %v3393
    %v3397 = vtanh.pop %v3394
    %v3398 = vadd.f32 %v3395, 1.0
    %v3399 = vadd.f32 %v3396, 1.0
    %v3400 = vadd.f32 %v3397, 1.0
    %v3401 = vmul.f32 %v3377, %v3398
    %v3402 = vmul.f32 %v3378, %v3399
    %v3403 = vmul.f32 %v3379, %v3400
    %v3404 = vpack.c.bf16 %v3401, %v3401
    %v3405 = vpack.c.bf16 %v3402, %v3402
    %v3406 = vpack.c.bf16 %v3403, %v3403
    %s3407 = scalar_lea.vmem [#allocation7], 2208
    %v3408 = vld [vmem:[%s3407] sm:$0xff]
    %v3409 = vld [vmem:[%s3407 + $0x8] sm:$0xf]
    %v3410 = vld [vmem:[%s3407 + $0xc] sm:$0xff]
    %v3411 = vld [vmem:[%s3407 + $0x14] sm:$0xf]
    %v3412 = vld [vmem:[%s3407 + $0x18] sm:$0xff]
    %v3413 = vld [vmem:[%s3407 + $0x20] sm:$0xf]
    %v3414 = vld [vmem:[%s3407 + $0x24] sm:$0xff]
    %v3415 = vld [vmem:[%s3407 + $0x2c] sm:$0xf]
    %v3416 = vld [vmem:[%s3407 + $0x30] sm:$0xff]
    %v3417 = vld [vmem:[%s3407 + $0x38] sm:$0xf]
    %v3418 = vld [vmem:[%s3407 + $0x3c] sm:$0xff]
    %v3419 = vld [vmem:[%s3407 + $0x44] sm:$0xf]
    %v3420 = vld [vmem:[%s3407 + $0x48] sm:$0xff]
    %v3421 = vld [vmem:[%s3407 + $0x50] sm:$0xf]
    %v3422 = vld [vmem:[%s3407 + $0x54] sm:$0xff]
    %v3423 = vld [vmem:[%s3407 + $0x5c] sm:$0xf]
    %v3424 = vld [vmem:[%s3407 + $0x60] sm:$0xff]
    %v3425 = vld [vmem:[%s3407 + $0x68] sm:$0xf]
    %v3426 = vld [vmem:[%s3407 + $0x6c] sm:$0xff]
    %v3427 = vld [vmem:[%s3407 + $0x74] sm:$0xf]
    %v3428 = vld [vmem:[%s3407 + $0x78] sm:$0xff]
    %v3429 = vld [vmem:[%s3407 + $0x80] sm:$0xf]
    %v3430 = vld [vmem:[%s3407 + $0x84] sm:$0xff]
    %v3431 = vld [vmem:[%s3407 + $0x8c] sm:$0xf]
    %v3432 = vld [vmem:[%s3407 + $0x90] sm:$0xff]
    %v3433 = vld [vmem:[%s3407 + $0x98] sm:$0xf]
    %v3434 = vld [vmem:[%s3407 + $0x9c] sm:$0xff]
    %v3435 = vld [vmem:[%s3407 + $0xa4] sm:$0xf]
    %v3436 = vld [vmem:[%s3407 + $0xa8] sm:$0xff]
    %v3437 = vld [vmem:[%s3407 + $0xb0] sm:$0xf]
    %v3438 = vld [vmem:[%s3407 + $0xb4] sm:$0xff]
    %v3439 = vld [vmem:[%s3407 + $0xbc] sm:$0xf]
    %v3440 = vld [vmem:[%s3407 + $0xc0] sm:$0xff]
    %v3441 = vld [vmem:[%s3407 + $0xc8] sm:$0xf]
    %v3442 = vld [vmem:[%s3407 + $0xcc] sm:$0xff]
    %v3443 = vld [vmem:[%s3407 + $0xd4] sm:$0xf]
    %v3444 = vld [vmem:[%s3407 + $0xd8] sm:$0xff]
    %v3445 = vld [vmem:[%s3407 + $0xe0] sm:$0xf]
    %v3446 = vld [vmem:[%s3407 + $0xe4] sm:$0xff]
    %v3447 = vld [vmem:[%s3407 + $0xec] sm:$0xf]
    %v3448 = vld [vmem:[%s3407 + $0xf0] sm:$0xff]
    %v3449 = vld [vmem:[%s3407 + $0xf8] sm:$0xf]
    %v3450 = vld [vmem:[%s3407 + $0xfc] sm:$0xff]
    %v3451 = vld [vmem:[%s3407 + $0x104] sm:$0xf]
    %v3452 = vld [vmem:[%s3407 + $0x108] sm:$0xff]
    %v3453 = vld [vmem:[%s3407 + $0x110] sm:$0xf]
    %v3454 = vld [vmem:[%s3407 + $0x114] sm:$0xff]
    %v3455 = vld [vmem:[%s3407 + $0x11c] sm:$0xf]
    %v3456 = vld [vmem:[%s3407 + $0x120] sm:$0xff]
    %v3457 = vld [vmem:[%s3407 + $0x128] sm:$0xf]
    %v3458 = vld [vmem:[%s3407 + $0x12c] sm:$0xff]
    %v3459 = vld [vmem:[%s3407 + $0x134] sm:$0xf]
    %v3460 = vld [vmem:[%s3407 + $0x138] sm:$0xff]
    %v3461 = vld [vmem:[%s3407 + $0x140] sm:$0xf]
    %v3462 = vld [vmem:[%s3407 + $0x144] sm:$0xff]
    %v3463 = vld [vmem:[%s3407 + $0x14c] sm:$0xf]
    %v3464 = vld [vmem:[%s3407 + $0x150] sm:$0xff]
    %v3465 = vld [vmem:[%s3407 + $0x158] sm:$0xf]
    %v3466 = vld [vmem:[%s3407 + $0x15c] sm:$0xff]
    %v3467 = vld [vmem:[%s3407 + $0x164] sm:$0xf]
    %v3468 = vld [vmem:[%s3407 + $0x168] sm:$0xff]
    %v3469 = vld [vmem:[%s3407 + $0x170] sm:$0xf]
    %v3470 = vld [vmem:[%s3407 + $0x174] sm:$0xff]
    %v3471 = vld [vmem:[%s3407 + $0x17c] sm:$0xf]
    %v3472 = vld [vmem:[%s3407 + $0x180] sm:$0xff]
    %v3473 = vld [vmem:[%s3407 + $0x188] sm:$0xf]
    %v3474 = vld [vmem:[%s3407 + $0x18c] sm:$0xff]
    %v3475 = vld [vmem:[%s3407 + $0x194] sm:$0xf]
    %v3476 = vld [vmem:[%s3407 + $0x198] sm:$0xff]
    %v3477 = vld [vmem:[%s3407 + $0x1a0] sm:$0xf]
    %v3478 = vld [vmem:[%s3407 + $0x1a4] sm:$0xff]
    %v3479 = vld [vmem:[%s3407 + $0x1ac] sm:$0xf]
    %v3480 = vld [vmem:[%s3407 + $0x1b0] sm:$0xff]
    %v3481 = vld [vmem:[%s3407 + $0x1b8] sm:$0xf]
    %v3482 = vld [vmem:[%s3407 + $0x1bc] sm:$0xff]
    %v3483 = vld [vmem:[%s3407 + $0x1c4] sm:$0xf]
    %v3484 = vld [vmem:[%s3407 + $0x1c8] sm:$0xff]
    %v3485 = vld [vmem:[%s3407 + $0x1d0] sm:$0xf]
    %v3486 = vld [vmem:[%s3407 + $0x1d4] sm:$0xff]
    %v3487 = vld [vmem:[%s3407 + $0x1dc] sm:$0xf]
    %v3488 = vld [vmem:[%s3407 + $0x1e0] sm:$0xff]
    %v3489 = vld [vmem:[%s3407 + $0x1e8] sm:$0xf]
    %v3490 = vld [vmem:[%s3407 + $0x1ec] sm:$0xff]
    %v3491 = vld [vmem:[%s3407 + $0x1f4] sm:$0xf]
    %v3492 = vld [vmem:[%s3407 + $0x1f8] sm:$0xff]
    %v3493 = vld [vmem:[%s3407 + $0x200] sm:$0xf]
    %v3494 = vld [vmem:[%s3407 + $0x204] sm:$0xff]
    %v3495 = vld [vmem:[%s3407 + $0x20c] sm:$0xf]
    %v3496 = vld [vmem:[%s3407 + $0x210] sm:$0xff]
    %v3497 = vld [vmem:[%s3407 + $0x218] sm:$0xf]
    %v3498 = vld [vmem:[%s3407 + $0x21c] sm:$0xff]
    %v3499 = vld [vmem:[%s3407 + $0x224] sm:$0xf]
    %v3592 = vunpack.c.l.b16 %v3408
    %v3593 = vunpack.c.h.b16 %v3408
    %v3594 = vunpack.c.l.b16 %v3409
    %v3595 = vunpack.c.l.b16 %v3410
    %v3596 = vunpack.c.h.b16 %v3410
    %v3597 = vunpack.c.l.b16 %v3411
    %v3598 = vunpack.c.l.b16 %v3412
    %v3599 = vunpack.c.h.b16 %v3412
    %v3600 = vunpack.c.l.b16 %v3413
    %v3601 = vunpack.c.l.b16 %v3414
    %v3602 = vunpack.c.h.b16 %v3414
    %v3603 = vunpack.c.l.b16 %v3415
    %v3604 = vunpack.c.l.b16 %v3416
    %v3605 = vunpack.c.h.b16 %v3416
    %v3606 = vunpack.c.l.b16 %v3417
    %v3607 = vunpack.c.l.b16 %v3418
    %v3608 = vunpack.c.h.b16 %v3418
    %v3609 = vunpack.c.l.b16 %v3419
    %v3610 = vunpack.c.l.b16 %v3420
    %v3611 = vunpack.c.h.b16 %v3420
    %v3612 = vunpack.c.l.b16 %v3421
    %v3613 = vunpack.c.l.b16 %v3422
    %v3614 = vunpack.c.h.b16 %v3422
    %v3615 = vunpack.c.l.b16 %v3423
    %v3616 = vunpack.c.l.b16 %v3424
    %v3617 = vunpack.c.h.b16 %v3424
    %v3618 = vunpack.c.l.b16 %v3425
    %v3619 = vunpack.c.l.b16 %v3426
    %v3620 = vunpack.c.h.b16 %v3426
    %v3621 = vunpack.c.l.b16 %v3427
    %v3622 = vunpack.c.l.b16 %v3428
    %v3623 = vunpack.c.h.b16 %v3428
    %v3624 = vunpack.c.l.b16 %v3429
    %v3625 = vunpack.c.l.b16 %v3430
    %v3626 = vunpack.c.h.b16 %v3430
    %v3627 = vunpack.c.l.b16 %v3431
    %v3628 = vunpack.c.l.b16 %v3432
    %v3629 = vunpack.c.h.b16 %v3432
    %v3630 = vunpack.c.l.b16 %v3433
    %v3631 = vunpack.c.l.b16 %v3434
    %v3632 = vunpack.c.h.b16 %v3434
    %v3633 = vunpack.c.l.b16 %v3435
    %v3634 = vunpack.c.l.b16 %v3436
    %v3635 = vunpack.c.h.b16 %v3436
    %v3636 = vunpack.c.l.b16 %v3437
    %v3637 = vunpack.c.l.b16 %v3438
    %v3638 = vunpack.c.h.b16 %v3438
    %v3639 = vunpack.c.l.b16 %v3439
    %v3640 = vunpack.c.l.b16 %v3440
    %v3641 = vunpack.c.h.b16 %v3440
    %v3642 = vunpack.c.l.b16 %v3441
    %v3643 = vunpack.c.l.b16 %v3442
    %v3644 = vunpack.c.h.b16 %v3442
    %v3645 = vunpack.c.l.b16 %v3443
    %v3646 = vunpack.c.l.b16 %v3444
    %v3647 = vunpack.c.h.b16 %v3444
    %v3648 = vunpack.c.l.b16 %v3445
    %v3649 = vunpack.c.l.b16 %v3446
    %v3650 = vunpack.c.h.b16 %v3446
    %v3651 = vunpack.c.l.b16 %v3447
    %v3652 = vunpack.c.l.b16 %v3448
    %v3653 = vunpack.c.h.b16 %v3448
    %v3654 = vunpack.c.l.b16 %v3449
    %v3655 = vunpack.c.l.b16 %v3450
    %v3656 = vunpack.c.h.b16 %v3450
    %v3657 = vunpack.c.l.b16 %v3451
    %v3658 = vunpack.c.l.b16 %v3452
    %v3659 = vunpack.c.h.b16 %v3452
    %v3660 = vunpack.c.l.b16 %v3453
    %v3661 = vunpack.c.l.b16 %v3454
    %v3662 = vunpack.c.h.b16 %v3454
    %v3663 = vunpack.c.l.b16 %v3455
    %v3664 = vunpack.c.l.b16 %v3456
    %v3665 = vunpack.c.h.b16 %v3456
    %v3666 = vunpack.c.l.b16 %v3457
    %v3667 = vunpack.c.l.b16 %v3458
    %v3668 = vunpack.c.h.b16 %v3458
    %v3669 = vunpack.c.l.b16 %v3459
    %v3670 = vunpack.c.l.b16 %v3460
    %v3671 = vunpack.c.h.b16 %v3460
    %v3672 = vunpack.c.l.b16 %v3461
    %v3673 = vunpack.c.l.b16 %v3462
    %v3674 = vunpack.c.h.b16 %v3462
    %v3675 = vunpack.c.l.b16 %v3463
    %v3676 = vunpack.c.l.b16 %v3464
    %v3677 = vunpack.c.h.b16 %v3464
    %v3678 = vunpack.c.l.b16 %v3465
    %v3679 = vunpack.c.l.b16 %v3466
    %v3680 = vunpack.c.h.b16 %v3466
    %v3681 = vunpack.c.l.b16 %v3467
    %v3682 = vunpack.c.l.b16 %v3468
    %v3683 = vunpack.c.h.b16 %v3468
    %v3684 = vunpack.c.l.b16 %v3469
    %v3685 = vunpack.c.l.b16 %v3470
    %v3686 = vunpack.c.h.b16 %v3470
    %v3687 = vunpack.c.l.b16 %v3471
    %v3688 = vunpack.c.l.b16 %v3472
    %v3689 = vunpack.c.h.b16 %v3472
    %v3690 = vunpack.c.l.b16 %v3473
    %v3691 = vunpack.c.l.b16 %v3474
    %v3692 = vunpack.c.h.b16 %v3474
    %v3693 = vunpack.c.l.b16 %v3475
    %v3694 = vunpack.c.l.b16 %v3476
    %v3695 = vunpack.c.h.b16 %v3476
    %v3696 = vunpack.c.l.b16 %v3477
    %v3697 = vunpack.c.l.b16 %v3478
    %v3698 = vunpack.c.h.b16 %v3478
    %v3699 = vunpack.c.l.b16 %v3479
    %v3700 = vunpack.c.l.b16 %v3480
    %v3701 = vunpack.c.h.b16 %v3480
    %v3702 = vunpack.c.l.b16 %v3481
    %v3703 = vunpack.c.l.b16 %v3482
    %v3704 = vunpack.c.h.b16 %v3482
    %v3705 = vunpack.c.l.b16 %v3483
    %v3706 = vunpack.c.l.b16 %v3484
    %v3707 = vunpack.c.h.b16 %v3484
    %v3708 = vunpack.c.l.b16 %v3485
    %v3709 = vunpack.c.l.b16 %v3486
    %v3710 = vunpack.c.h.b16 %v3486
    %v3711 = vunpack.c.l.b16 %v3487
    %v3712 = vunpack.c.l.b16 %v3488
    %v3713 = vunpack.c.h.b16 %v3488
    %v3714 = vunpack.c.l.b16 %v3489
    %v3715 = vunpack.c.l.b16 %v3490
    %v3716 = vunpack.c.h.b16 %v3490
    %v3717 = vunpack.c.l.b16 %v3491
    %v3718 = vunpack.c.l.b16 %v3492
    %v3719 = vunpack.c.h.b16 %v3492
    %v3720 = vunpack.c.l.b16 %v3493
    %v3721 = vunpack.c.l.b16 %v3494
    %v3722 = vunpack.c.h.b16 %v3494
    %v3723 = vunpack.c.l.b16 %v3495
    %v3724 = vunpack.c.l.b16 %v3496
    %v3725 = vunpack.c.h.b16 %v3496
    %v3726 = vunpack.c.l.b16 %v3497
    %v3727 = vunpack.c.l.b16 %v3498
    %v3728 = vunpack.c.h.b16 %v3498
    %v3729 = vunpack.c.l.b16 %v3499
    %v3730 = vpack.c.b16 %v3595, %v3592
    %v3731 = vpack.c.b16 %v3596, %v3593
    %v3732 = vpack.c.b16 %v3597, %v3594
    %v3733 = vpack.c.b16 %v3601, %v3598
    %v3734 = vpack.c.b16 %v3602, %v3599
    %v3735 = vpack.c.b16 %v3603, %v3600
    %v3736 = vpack.c.b16 %v3607, %v3604
    %v3737 = vpack.c.b16 %v3608, %v3605
    %v3738 = vpack.c.b16 %v3609, %v3606
    %v3739 = vpack.c.b16 %v3613, %v3610
    %v3740 = vpack.c.b16 %v3614, %v3611
    %v3741 = vpack.c.b16 %v3615, %v3612
    %v3742 = vpack.c.b16 %v3619, %v3616
    %v3743 = vpack.c.b16 %v3620, %v3617
    %v3744 = vpack.c.b16 %v3621, %v3618
    %v3745 = vpack.c.b16 %v3625, %v3622
    %v3746 = vpack.c.b16 %v3626, %v3623
    %v3747 = vpack.c.b16 %v3627, %v3624
    %v3748 = vpack.c.b16 %v3631, %v3628
    %v3749 = vpack.c.b16 %v3632, %v3629
    %v3750 = vpack.c.b16 %v3633, %v3630
    %v3751 = vpack.c.b16 %v3637, %v3634
    %v3752 = vpack.c.b16 %v3638, %v3635
    %v3753 = vpack.c.b16 %v3639, %v3636
    %v3754 = vpack.c.b16 %v3643, %v3640
    %v3755 = vpack.c.b16 %v3644, %v3641
    %v3756 = vpack.c.b16 %v3645, %v3642
    %v3757 = vpack.c.b16 %v3649, %v3646
    %v3758 = vpack.c.b16 %v3650, %v3647
    %v3759 = vpack.c.b16 %v3651, %v3648
    %v3760 = vpack.c.b16 %v3655, %v3652
    %v3761 = vpack.c.b16 %v3656, %v3653
    %v3762 = vpack.c.b16 %v3657, %v3654
    %v3763 = vpack.c.b16 %v3661, %v3658
    %v3764 = vpack.c.b16 %v3662, %v3659
    %v3765 = vpack.c.b16 %v3663, %v3660
    %v3766 = vpack.c.b16 %v3667, %v3664
    %v3767 = vpack.c.b16 %v3668, %v3665
    %v3768 = vpack.c.b16 %v3669, %v3666
    %v3769 = vpack.c.b16 %v3673, %v3670
    %v3770 = vpack.c.b16 %v3674, %v3671
    %v3771 = vpack.c.b16 %v3675, %v3672
    %v3772 = vpack.c.b16 %v3679, %v3676
    %v3773 = vpack.c.b16 %v3680, %v3677
    %v3774 = vpack.c.b16 %v3681, %v3678
    %v3775 = vpack.c.b16 %v3685, %v3682
    %v3776 = vpack.c.b16 %v3686, %v3683
    %v3777 = vpack.c.b16 %v3687, %v3684
    %v3778 = vpack.c.b16 %v3691, %v3688
    %v3779 = vpack.c.b16 %v3692, %v3689
    %v3780 = vpack.c.b16 %v3693, %v3690
    %v3781 = vpack.c.b16 %v3697, %v3694
    %v3782 = vpack.c.b16 %v3698, %v3695
    %v3783 = vpack.c.b16 %v3699, %v3696
    %v3784 = vpack.c.b16 %v3703, %v3700
    %v3785 = vpack.c.b16 %v3704, %v3701
    %v3786 = vpack.c.b16 %v3705, %v3702
    %v3787 = vpack.c.b16 %v3709, %v3706
    %v3788 = vpack.c.b16 %v3710, %v3707
    %v3789 = vpack.c.b16 %v3711, %v3708
    %v3790 = vpack.c.b16 %v3715, %v3712
    %v3791 = vpack.c.b16 %v3716, %v3713
    %v3792 = vpack.c.b16 %v3717, %v3714
    %v3793 = vpack.c.b16 %v3721, %v3718
    %v3794 = vpack.c.b16 %v3722, %v3719
    %v3795 = vpack.c.b16 %v3723, %v3720
    %v3796 = vpack.c.b16 %v3727, %v3724
    %v3797 = vpack.c.b16 %v3728, %v3725
    %v3798 = vpack.c.b16 %v3729, %v3726
    %v3869 = vsel %vm1093, %v3406, 0
    %3871 = vmatprep.subr.bf16.mxu0 %v3731
    %3872 = vmatpush1.bf16.msra.mxu0 %v3730
    %3873 = vmatprep.subr.bf16.mxu0 %v3734
    %3874 = vmatpush1.bf16.msra.mxu0 %v3733
    %3875 = vmatprep.subr.bf16.mxu0 %v3737
    %3876 = vmatpush1.bf16.msra.mxu0 %v3736
    %3877 = vmatprep.subr.bf16.mxu0 %v3740
    %3878 = vmatpush1.bf16.msra.mxu0 %v3739
    %3879 = vmatprep.subr.bf16.mxu0 %v3743
    %3880 = vmatpush1.bf16.msra.mxu0 %v3742
    %3881 = vmatprep.subr.bf16.mxu0 %v3746
    %3882 = vmatpush1.bf16.msra.mxu0 %v3745
    %3883 = vmatprep.subr.bf16.mxu0 %v3749
    %3884 = vmatpush1.bf16.msra.mxu0 %v3748
    %3885 = vmatprep.subr.bf16.mxu0 %v3752
    %3886 = vmatpush1.bf16.msra.mxu0 %v3751
    %3887 = vmatprep.subr.bf16.mxu0 %v3755
    %3888 = vmatpush1.bf16.msra.mxu0 %v3754
    %3889 = vmatprep.subr.bf16.mxu0 %v3758
    %3890 = vmatpush1.bf16.msra.mxu0 %v3757
    %3891 = vmatprep.subr.bf16.mxu0 %v3761
    %3892 = vmatpush1.bf16.msra.mxu0 %v3760
    %3893 = vmatprep.subr.bf16.mxu0 %v3764
    %3894 = vmatpush1.bf16.msra.mxu0 %v3763
    %3895 = vmatprep.subr.bf16.mxu0 %v3767
    %3896 = vmatpush1.bf16.msra.mxu0 %v3766
    %3897 = vmatprep.subr.bf16.mxu0 %v3770
    %3898 = vmatpush1.bf16.msra.mxu0 %v3769
    %3899 = vmatprep.subr.bf16.mxu0 %v3773
    %3900 = vmatpush1.bf16.msra.mxu0 %v3772
    %3901 = vmatprep.subr.bf16.mxu0 %v3776
    %3902 = vmatpush1.bf16.msra.mxu0 %v3775
    %3903 = vmatprep.mubr.bf16.mxu0 %v3405
    %3904 = vmatmul.mubr.bf16.gmra.mrb[0].mxu0 %v3404
    %v3905 = vpop.f32.mrb[0].mxu0
    %v3906 = vadd.f32 0.0, %v3905
    %v3907 = vpop.f32.mrb[0].mxu0
    %v3908 = vadd.f32 0.0, %v3907
    %v3909 = vpop.f32.mrb[0].mxu0
    %v3910 = vpop.f32.mrb[0].mxu0
    %3911 = vdwg.mxu0
    %3912 = vmatprep.subr.bf16.mxu0 %v3779
    %3913 = vmatpush1.bf16.msra.mxu0 %v3778
    %3914 = vmatprep.subr.bf16.mxu0 %v3782
    %3915 = vmatpush1.bf16.msra.mxu0 %v3781
    %3916 = vmatprep.subr.bf16.mxu0 %v3785
    %3917 = vmatpush1.bf16.msra.mxu0 %v3784
    %3918 = vmatprep.subr.bf16.mxu0 %v3788
    %3919 = vmatpush1.bf16.msra.mxu0 %v3787
    %3920 = vmatprep.subr.bf16.mxu0 %v3791
    %3921 = vmatpush1.bf16.msra.mxu0 %v3790
    %3922 = vmatprep.subr.bf16.mxu0 %v3794
    %3923 = vmatpush1.bf16.msra.mxu0 %v3793
    %3924 = vmatprep.subr.bf16.mxu0 %v3797
    %3925 = vmatpush1.bf16.msra.mxu0 %v3796
    %3926 = vmatprep.subr.bf16.mxu0 0
    %3927 = vmatpush1.bf16.msra.mxu0 0
    %3928 = vmatprep.subr.bf16.mxu0 0
    %3929 = vmatpush1.bf16.msra.mxu0 0
    %3930 = vmatprep.subr.bf16.mxu0 0
    %3931 = vmatpush1.bf16.msra.mxu0 0
    %3932 = vmatprep.subr.bf16.mxu0 0
    %3933 = vmatpush1.bf16.msra.mxu0 0
    %3934 = vmatprep.subr.bf16.mxu0 0
    %3935 = vmatpush1.bf16.msra.mxu0 0
    %3936 = vmatprep.subr.bf16.mxu0 0
    %3937 = vmatpush1.bf16.msra.mxu0 0
    %3938 = vmatprep.subr.bf16.mxu0 0
    %3939 = vmatpush1.bf16.msra.mxu0 0
    %3940 = vmatprep.subr.bf16.mxu0 0
    %3941 = vmatpush1.bf16.msra.mxu0 0
    %3942 = vmatprep.subr.bf16.mxu0 0
    %3943 = vmatpush1.bf16.msra.mxu0 0
    %3944 = vmatprep.mubr.bf16.mxu0 0
    %3945 = vmatmul.mubr.bf16.gmra.mrb[0].mxu0 %v3869
    %v3946 = vpop.f32.mrb[0].mxu0
    %v3947 = vadd.f32 %v3906, %v3946
    %v3948 = vpop.f32.mrb[0].mxu0
    %v3949 = vadd.f32 %v3908, %v3948
    %v3950 = vpop.f32.mrb[0].mxu0
    %v3951 = vpop.f32.mrb[0].mxu0
    %3952 = vdwg.mxu0
    %3953 = vmatprep.subr.bf16.mxu0 0
    %3954 = vmatpush1.bf16.msra.mxu0 %v3732
    %3955 = vmatprep.subr.bf16.mxu0 0
    %3956 = vmatpush1.bf16.msra.mxu0 %v3735
    %3957 = vmatprep.subr.bf16.mxu0 0
    %3958 = vmatpush1.bf16.msra.mxu0 %v3738
    %3959 = vmatprep.subr.bf16.mxu0 0
    %3960 = vmatpush1.bf16.msra.mxu0 %v3741
    %3961 = vmatprep.subr.bf16.mxu0 0
    %3962 = vmatpush1.bf16.msra.mxu0 %v3744
    %3963 = vmatprep.subr.bf16.mxu0 0
    %3964 = vmatpush1.bf16.msra.mxu0 %v3747
    %3965 = vmatprep.subr.bf16.mxu0 0
    %3966 = vmatpush1.bf16.msra.mxu0 %v3750
    %3967 = vmatprep.subr.bf16.mxu0 0
    %3968 = vmatpush1.bf16.msra.mxu0 %v3753
    %3969 = vmatprep.subr.bf16.mxu0 0
    %3970 = vmatpush1.bf16.msra.mxu0 %v3756
    %3971 = vmatprep.subr.bf16.mxu0 0
    %3972 = vmatpush1.bf16.msra.mxu0 %v3759
    %3973 = vmatprep.subr.bf16.mxu0 0
    %3974 = vmatpush1.bf16.msra.mxu0 %v3762
    %3975 = vmatprep.subr.bf16.mxu0 0
    %3976 = vmatpush1.bf16.msra.mxu0 %v3765
    %3977 = vmatprep.subr.bf16.mxu0 0
    %3978 = vmatpush1.bf16.msra.mxu0 %v3768
    %3979 = vmatprep.subr.bf16.mxu0 0
    %3980 = vmatpush1.bf16.msra.mxu0 %v3771
    %3981 = vmatprep.subr.bf16.mxu0 0
    %3982 = vmatpush1.bf16.msra.mxu0 %v3774
    %3983 = vmatprep.subr.bf16.mxu0 0
    %3984 = vmatpush1.bf16.msra.mxu0 %v3777
    %3985 = vmatprep.mubr.bf16.mxu0 %v3405
    %3986 = vmatmul.mubr.bf16.gmra.mrb[0].mxu0 %v3404
    %v3987 = vpop.f32.mrb[0].mxu0
    %v3988 = vadd.f32 0.0, %v3987
    %v3989 = vpop.f32.mrb[0].mxu0
    %v3990 = vpop.f32.mrb[0].mxu0
    %v3991 = vpop.f32.mrb[0].mxu0
    %3992 = vdwg.mxu0
    %3993 = vmatprep.subr.bf16.mxu0 0
    %3994 = vmatpush1.bf16.msra.mxu0 %v3780
    %3995 = vmatprep.subr.bf16.mxu0 0
    %3996 = vmatpush1.bf16.msra.mxu0 %v3783
    %3997 = vmatprep.subr.bf16.mxu0 0
    %3998 = vmatpush1.bf16.msra.mxu0 %v3786
    %3999 = vmatprep.subr.bf16.mxu0 0
    %4000 = vmatpush1.bf16.msra.mxu0 %v3789
    %4001 = vmatprep.subr.bf16.mxu0 0
    %4002 = vmatpush1.bf16.msra.mxu0 %v3792
    %4003 = vmatprep.subr.bf16.mxu0 0
    %4004 = vmatpush1.bf16.msra.mxu0 %v3795
    %4005 = vmatprep.subr.bf16.mxu0 0
    %4006 = vmatpush1.bf16.msra.mxu0 %v3798
    %4007 = vmatprep.subr.bf16.mxu0 0
    %4008 = vmatpush1.bf16.msra.mxu0 0
    %4009 = vmatprep.subr.bf16.mxu0 0
    %4010 = vmatpush1.bf16.msra.mxu0 0
    %4011 = vmatprep.subr.bf16.mxu0 0
    %4012 = vmatpush1.bf16.msra.mxu0 0
    %4013 = vmatprep.subr.bf16.mxu0 0
    %4014 = vmatpush1.bf16.msra.mxu0 0
    %4015 = vmatprep.subr.bf16.mxu0 0
    %4016 = vmatpush1.bf16.msra.mxu0 0
    %4017 = vmatprep.subr.bf16.mxu0 0
    %4018 = vmatpush1.bf16.msra.mxu0 0
    %4019 = vmatprep.subr.bf16.mxu0 0
    %4020 = vmatpush1.bf16.msra.mxu0 0
    %4021 = vmatprep.subr.bf16.mxu0 0
    %4022 = vmatpush1.bf16.msra.mxu0 0
    %4023 = vmatprep.subr.bf16.mxu0 0
    %4024 = vmatpush1.bf16.msra.mxu0 0
    %4025 = vmatprep.mubr.bf16.mxu0 0
    %4026 = vmatmul.mubr.bf16.gmra.mrb[0].mxu0 %v3869
    %v4027 = vpop.f32.mrb[0].mxu0
    %v4028 = vadd.f32 %v3988, %v4027
    %v4029 = vpop.f32.mrb[0].mxu0
    %v4030 = vpop.f32.mrb[0].mxu0
    %v4031 = vpop.f32.mrb[0].mxu0
    %4032 = vdwg.mxu0
    %v4033 = vadd.f32 %v3285, %v3947
    %v4034 = vadd.f32 %v3286, %v3949
    %v4035 = vadd.f32 %v3287, %v4028
    %v4036 = vld [vmem:[#allocation8] sm:$0x7]
    %v4038 = vlaneseq
    %v4039 = vshrl.u32 %v4038, 7
    %v4040 = vsub.s32 0, %v4039
    %v4041 = vrot.slane %v4036, %v4040
    %v4042 = vlaneseq
    %v4043 = vshrl.u32 %v4042, 7
    %v4044 = vsub.s32 1, %v4043
    %v4045 = vrot.slane %v4036, %v4044
    %v4046 = vlaneseq
    %v4047 = vshrl.u32 %v4046, 7
    %v4048 = vsub.s32 2, %v4047
    %v4049 = vrot.slane %v4036, %v4048
    %v4053 = vadd.f32 %v4033, %v4041
    %v4054 = vadd.f32 %v4034, %v4045
    %v4055 = vadd.f32 %v4035, %v4049
    %v4056 = vmul.f32 %v4053, 0.5
    %v4057 = vmul.f32 %v4054, 0.5
    %v4058 = vmul.f32 %v4055, 0.5
    %v4059 = vmul.f32 %v4053, 0.044715
    %v4060 = vmul.f32 %v4054, 0.044715
    %v4061 = vmul.f32 %v4055, 0.044715
    %v4062 = vmul.f32 %v4059, %v4053
    %v4063 = vmul.f32 %v4060, %v4054
    %v4064 = vmul.f32 %v4061, %v4055
    %v4065 = vmul.f32 %v4062, %v4053
    %v4066 = vmul.f32 %v4063, %v4054
    %v4067 = vmul.f32 %v4064, %v4055
    %v4068 = vadd.f32 %v4053, %v4065
    %v4069 = vadd.f32 %v4054, %v4066
    %v4070 = vadd.f32 %v4055, %v4067
    %v4071 = vmul.f32 %v4068, 0.7978846
    %v4072 = vmul.f32 %v4069, 0.7978846
    %v4073 = vmul.f32 %v4070, 0.7978846
    %v4074 = vtanh.pop %v4071
    %v4075 = vtanh.pop %v4072
    %v4076 = vtanh.pop %v4073
    %v4077 = vadd.f32 %v4074, 1.0
    %v4078 = vadd.f32 %v4075, 1.0
    %v4079 = vadd.f32 %v4076, 1.0
    %v4080 = vmul.f32 %v4056, %v4077
    %v4081 = vmul.f32 %v4057, %v4078
    %v4082 = vmul.f32 %v4058, %v4079
    %v4083 = vpack.c.bf16 %v4080, %v4080
    %v4084 = vpack.c.bf16 %v4081, %v4081
    %v4085 = vpack.c.bf16 %v4082, %v4082
    %v4086 = vld [vmem:[#allocation10] sm:$0xff]
    %v4087 = vld [vmem:[#allocation10 + $0x8] sm:$0xff]
    %v4088 = vld [vmem:[#allocation10 + $0x10] sm:$0xff]
    %v4089 = vld [vmem:[#allocation10 + $0x18] sm:$0xff]
    %v4090 = vld [vmem:[#allocation10 + $0x20] sm:$0xff]
    %v4091 = vld [vmem:[#allocation10 + $0x28] sm:$0xff]
    %v4092 = vld [vmem:[#allocation10 + $0x30] sm:$0xff]
    %v4093 = vld [vmem:[#allocation10 + $0x38] sm:$0xff]
    %v4094 = vld [vmem:[#allocation10 + $0x40] sm:$0xff]
    %v4095 = vld [vmem:[#allocation10 + $0x48] sm:$0xff]
    %v4096 = vld [vmem:[#allocation10 + $0x50] sm:$0xff]
    %v4097 = vld [vmem:[#allocation10 + $0x58] sm:$0xff]
    %v4098 = vld [vmem:[#allocation10 + $0x60] sm:$0xff]
    %v4099 = vld [vmem:[#allocation10 + $0x68] sm:$0xff]
    %v4100 = vld [vmem:[#allocation10 + $0x70] sm:$0xff]
    %v4101 = vld [vmem:[#allocation10 + $0x78] sm:$0xff]
    %v4102 = vld [vmem:[#allocation10 + $0x80] sm:$0xff]
    %v4103 = vld [vmem:[#allocation10 + $0x88] sm:$0xff]
    %v4104 = vld [vmem:[#allocation10 + $0x90] sm:$0xff]
    %v4105 = vld [vmem:[#allocation10 + $0x98] sm:$0xff]
    %v4106 = vld [vmem:[#allocation10 + $0xa0] sm:$0xff]
    %v4107 = vld [vmem:[#allocation10 + $0xa8] sm:$0xff]
    %v4108 = vld [vmem:[#allocation10 + $0xb0] sm:$0xff]
    %v4109 = vld [vmem:[#allocation10 + $0xb8] sm:$0xff]
    %v4110 = vld [vmem:[#allocation10 + $0xc0] sm:$0xff]
    %v4111 = vld [vmem:[#allocation10 + $0xc8] sm:$0xff]
    %v4112 = vld [vmem:[#allocation10 + $0xd0] sm:$0xff]
    %v4113 = vld [vmem:[#allocation10 + $0xd8] sm:$0xff]
    %v4114 = vld [vmem:[#allocation10 + $0xe0] sm:$0xff]
    %v4115 = vld [vmem:[#allocation10 + $0xe8] sm:$0xff]
    %v4116 = vld [vmem:[#allocation10 + $0xf0] sm:$0xff]
    %v4117 = vld [vmem:[#allocation10 + $0xf8] sm:$0xff]
    %v4118 = vld [vmem:[#allocation10 + $0x100] sm:$0xff]
    %v4119 = vld [vmem:[#allocation10 + $0x108] sm:$0xff]
    %v4120 = vld [vmem:[#allocation10 + $0x110] sm:$0xff]
    %v4121 = vld [vmem:[#allocation10 + $0x118] sm:$0xff]
    %v4122 = vld [vmem:[#allocation10 + $0x120] sm:$0xff]
    %v4123 = vld [vmem:[#allocation10 + $0x128] sm:$0xff]
    %v4124 = vld [vmem:[#allocation10 + $0x130] sm:$0xff]
    %v4125 = vld [vmem:[#allocation10 + $0x138] sm:$0xff]
    %v4126 = vld [vmem:[#allocation10 + $0x140] sm:$0xff]
    %v4127 = vld [vmem:[#allocation10 + $0x148] sm:$0xff]
    %v4128 = vld [vmem:[#allocation10 + $0x150] sm:$0xff]
    %v4129 = vld [vmem:[#allocation10 + $0x158] sm:$0xff]
    %v4130 = vld [vmem:[#allocation10 + $0x160] sm:$0xff]
    %v4131 = vld [vmem:[#allocation10 + $0x168] sm:$0xff]
    %v4132 = vld [vmem:[#allocation11] sm:$0x3]
    %v4134 = vlaneseq
    %v4135 = vshrl.u32 %v4134, 7
    %v4136 = vsub.s32 0, %v4135
    %v4137 = vrot.slane %v4132, %v4136
    %v4138 = vlaneseq
    %v4139 = vshrl.u32 %v4138, 7
    %v4140 = vsub.s32 1, %v4139
    %v4141 = vrot.slane %v4132, %v4140
    %v4190 = vunpack.c.l.b16 %v4086
    %v4191 = vunpack.c.h.b16 %v4086
    %v4192 = vunpack.c.l.b16 %v4087
    %v4193 = vunpack.c.h.b16 %v4087
    %v4194 = vunpack.c.l.b16 %v4088
    %v4195 = vunpack.c.h.b16 %v4088
    %v4196 = vunpack.c.l.b16 %v4089
    %v4197 = vunpack.c.h.b16 %v4089
    %v4198 = vunpack.c.l.b16 %v4090
    %v4199 = vunpack.c.h.b16 %v4090
    %v4200 = vunpack.c.l.b16 %v4091
    %v4201 = vunpack.c.h.b16 %v4091
    %v4202 = vunpack.c.l.b16 %v4092
    %v4203 = vunpack.c.h.b16 %v4092
    %v4204 = vunpack.c.l.b16 %v4093
    %v4205 = vunpack.c.h.b16 %v4093
    %v4206 = vunpack.c.l.b16 %v4094
    %v4207 = vunpack.c.h.b16 %v4094
    %v4208 = vunpack.c.l.b16 %v4095
    %v4209 = vunpack.c.h.b16 %v4095
    %v4210 = vunpack.c.l.b16 %v4096
    %v4211 = vunpack.c.h.b16 %v4096
    %v4212 = vunpack.c.l.b16 %v4097
    %v4213 = vunpack.c.h.b16 %v4097
    %v4214 = vunpack.c.l.b16 %v4098
    %v4215 = vunpack.c.h.b16 %v4098
    %v4216 = vunpack.c.l.b16 %v4099
    %v4217 = vunpack.c.h.b16 %v4099
    %v4218 = vunpack.c.l.b16 %v4100
    %v4219 = vunpack.c.h.b16 %v4100
    %v4220 = vunpack.c.l.b16 %v4101
    %v4221 = vunpack.c.h.b16 %v4101
    %v4222 = vunpack.c.l.b16 %v4102
    %v4223 = vunpack.c.h.b16 %v4102
    %v4224 = vunpack.c.l.b16 %v4103
    %v4225 = vunpack.c.h.b16 %v4103
    %v4226 = vunpack.c.l.b16 %v4104
    %v4227 = vunpack.c.h.b16 %v4104
    %v4228 = vunpack.c.l.b16 %v4105
    %v4229 = vunpack.c.h.b16 %v4105
    %v4230 = vunpack.c.l.b16 %v4106
    %v4231 = vunpack.c.h.b16 %v4106
    %v4232 = vunpack.c.l.b16 %v4107
    %v4233 = vunpack.c.h.b16 %v4107
    %v4234 = vunpack.c.l.b16 %v4108
    %v4235 = vunpack.c.h.b16 %v4108
    %v4236 = vunpack.c.l.b16 %v4109
    %v4237 = vunpack.c.h.b16 %v4109
    %v4238 = vunpack.c.l.b16 %v4110
    %v4239 = vunpack.c.h.b16 %v4110
    %v4240 = vunpack.c.l.b16 %v4111
    %v4241 = vunpack.c.h.b16 %v4111
    %v4242 = vunpack.c.l.b16 %v4112
    %v4243 = vunpack.c.h.b16 %v4112
    %v4244 = vunpack.c.l.b16 %v4113
    %v4245 = vunpack.c.h.b16 %v4113
    %v4246 = vunpack.c.l.b16 %v4114
    %v4247 = vunpack.c.h.b16 %v4114
    %v4248 = vunpack.c.l.b16 %v4115
    %v4249 = vunpack.c.h.b16 %v4115
    %v4250 = vunpack.c.l.b16 %v4116
    %v4251 = vunpack.c.h.b16 %v4116
    %v4252 = vunpack.c.l.b16 %v4117
    %v4253 = vunpack.c.h.b16 %v4117
    %v4254 = vunpack.c.l.b16 %v4118
    %v4255 = vunpack.c.h.b16 %v4118
    %v4256 = vunpack.c.l.b16 %v4119
    %v4257 = vunpack.c.h.b16 %v4119
    %v4258 = vunpack.c.l.b16 %v4120
    %v4259 = vunpack.c.h.b16 %v4120
    %v4260 = vunpack.c.l.b16 %v4121
    %v4261 = vunpack.c.h.b16 %v4121
    %v4262 = vunpack.c.l.b16 %v4122
    %v4263 = vunpack.c.h.b16 %v4122
    %v4264 = vunpack.c.l.b16 %v4123
    %v4265 = vunpack.c.h.b16 %v4123
    %v4266 = vunpack.c.l.b16 %v4124
    %v4267 = vunpack.c.h.b16 %v4124
    %v4268 = vunpack.c.l.b16 %v4125
    %v4269 = vunpack.c.h.b16 %v4125
    %v4270 = vunpack.c.l.b16 %v4126
    %v4271 = vunpack.c.h.b16 %v4126
    %v4272 = vunpack.c.l.b16 %v4127
    %v4273 = vunpack.c.h.b16 %v4127
    %v4274 = vunpack.c.l.b16 %v4128
    %v4275 = vunpack.c.h.b16 %v4128
    %v4276 = vunpack.c.l.b16 %v4129
    %v4277 = vunpack.c.h.b16 %v4129
    %v4278 = vunpack.c.l.b16 %v4130
    %v4279 = vunpack.c.h.b16 %v4130
    %v4280 = vunpack.c.l.b16 %v4131
    %v4281 = vunpack.c.h.b16 %v4131
    %v4282 = vpack.c.b16 %v4192, %v4190
    %v4283 = vpack.c.b16 %v4193, %v4191
    %v4284 = vpack.c.b16 %v4196, %v4194
    %v4285 = vpack.c.b16 %v4197, %v4195
    %v4286 = vpack.c.b16 %v4200, %v4198
    %v4287 = vpack.c.b16 %v4201, %v4199
    %v4288 = vpack.c.b16 %v4204, %v4202
    %v4289 = vpack.c.b16 %v4205, %v4203
    %v4290 = vpack.c.b16 %v4208, %v4206
    %v4291 = vpack.c.b16 %v4209, %v4207
    %v4292 = vpack.c.b16 %v4212, %v4210
    %v4293 = vpack.c.b16 %v4213, %v4211
    %v4294 = vpack.c.b16 %v4216, %v4214
    %v4295 = vpack.c.b16 %v4217, %v4215
    %v4296 = vpack.c.b16 %v4220, %v4218
    %v4297 = vpack.c.b16 %v4221, %v4219
    %v4298 = vpack.c.b16 %v4224, %v4222
    %v4299 = vpack.c.b16 %v4225, %v4223
    %v4300 = vpack.c.b16 %v4228, %v4226
    %v4301 = vpack.c.b16 %v4229, %v4227
    %v4302 = vpack.c.b16 %v4232, %v4230
    %v4303 = vpack.c.b16 %v4233, %v4231
    %v4304 = vpack.c.b16 %v4236, %v4234
    %v4305 = vpack.c.b16 %v4237, %v4235
    %v4306 = vpack.c.b16 %v4240, %v4238
    %v4307 = vpack.c.b16 %v4241, %v4239
    %v4308 = vpack.c.b16 %v4244, %v4242
    %v4309 = vpack.c.b16 %v4245, %v4243
    %v4310 = vpack.c.b16 %v4248, %v4246
    %v4311 = vpack.c.b16 %v4249, %v4247
    %v4312 = vpack.c.b16 %v4252, %v4250
    %v4313 = vpack.c.b16 %v4253, %v4251
    %v4314 = vpack.c.b16 %v4256, %v4254
    %v4315 = vpack.c.b16 %v4257, %v4255
    %v4316 = vpack.c.b16 %v4260, %v4258
    %v4317 = vpack.c.b16 %v4261, %v4259
    %v4318 = vpack.c.b16 %v4264, %v4262
    %v4319 = vpack.c.b16 %v4265, %v4263
    %v4320 = vpack.c.b16 %v4268, %v4266
    %v4321 = vpack.c.b16 %v4269, %v4267
    %v4322 = vpack.c.b16 %v4272, %v4270
    %v4323 = vpack.c.b16 %v4273, %v4271
    %v4324 = vpack.c.b16 %v4276, %v4274
    %v4325 = vpack.c.b16 %v4277, %v4275
    %v4326 = vpack.c.b16 %v4280, %v4278
    %v4327 = vpack.c.b16 %v4281, %v4279
    %v4375 = vsel %vm1093, %v4085, 0
    %4377 = vmatprep.subr.bf16.mxu0 %v4283
    %4378 = vmatpush1.bf16.msra.mxu0 %v4282
    %4379 = vmatprep.subr.bf16.mxu0 %v4285
    %4380 = vmatpush1.bf16.msra.mxu0 %v4284
    %4381 = vmatprep.subr.bf16.mxu0 %v4287
    %4382 = vmatpush1.bf16.msra.mxu0 %v4286
    %4383 = vmatprep.subr.bf16.mxu0 %v4289
    %4384 = vmatpush1.bf16.msra.mxu0 %v4288
    %4385 = vmatprep.subr.bf16.mxu0 %v4291
    %4386 = vmatpush1.bf16.msra.mxu0 %v4290
    %4387 = vmatprep.subr.bf16.mxu0 %v4293
    %4388 = vmatpush1.bf16.msra.mxu0 %v4292
    %4389 = vmatprep.subr.bf16.mxu0 %v4295
    %4390 = vmatpush1.bf16.msra.mxu0 %v4294
    %4391 = vmatprep.subr.bf16.mxu0 %v4297
    %4392 = vmatpush1.bf16.msra.mxu0 %v4296
    %4393 = vmatprep.subr.bf16.mxu0 %v4299
    %4394 = vmatpush1.bf16.msra.mxu0 %v4298
    %4395 = vmatprep.subr.bf16.mxu0 %v4301
    %4396 = vmatpush1.bf16.msra.mxu0 %v4300
    %4397 = vmatprep.subr.bf16.mxu0 %v4303
    %4398 = vmatpush1.bf16.msra.mxu0 %v4302
    %4399 = vmatprep.subr.bf16.mxu0 %v4305
    %4400 = vmatpush1.bf16.msra.mxu0 %v4304
    %4401 = vmatprep.subr.bf16.mxu0 %v4307
    %4402 = vmatpush1.bf16.msra.mxu0 %v4306
    %4403 = vmatprep.subr.bf16.mxu0 %v4309
    %4404 = vmatpush1.bf16.msra.mxu0 %v4308
    %4405 = vmatprep.subr.bf16.mxu0 %v4311
    %4406 = vmatpush1.bf16.msra.mxu0 %v4310
    %4407 = vmatprep.subr.bf16.mxu0 %v4313
    %4408 = vmatpush1.bf16.msra.mxu0 %v4312
    %4409 = vmatprep.mubr.bf16.mxu0 %v4084
    %4410 = vmatmul.mubr.bf16.gmra.mrb[0].mxu0 %v4083
    %v4411 = vpop.f32.mrb[0].mxu0
    %v4412 = vadd.f32 %v4137, %v4411
    %v4413 = vpop.f32.mrb[0].mxu0
    %v4414 = vadd.f32 %v4141, %v4413
    %v4415 = vpop.f32.mrb[0].mxu0
    %v4416 = vpop.f32.mrb[0].mxu0
    %4417 = vdwg.mxu0
    %4418 = vmatprep.subr.bf16.mxu0 %v4315
    %4419 = vmatpush1.bf16.msra.mxu0 %v4314
    %4420 = vmatprep.subr.bf16.mxu0 %v4317
    %4421 = vmatpush1.bf16.msra.mxu0 %v4316
    %4422 = vmatprep.subr.bf16.mxu0 %v4319
    %4423 = vmatpush1.bf16.msra.mxu0 %v4318
    %4424 = vmatprep.subr.bf16.mxu0 %v4321
    %4425 = vmatpush1.bf16.msra.mxu0 %v4320
    %4426 = vmatprep.subr.bf16.mxu0 %v4323
    %4427 = vmatpush1.bf16.msra.mxu0 %v4322
    %4428 = vmatprep.subr.bf16.mxu0 %v4325
    %4429 = vmatpush1.bf16.msra.mxu0 %v4324
    %4430 = vmatprep.subr.bf16.mxu0 %v4327
    %4431 = vmatpush1.bf16.msra.mxu0 %v4326
    %4432 = vmatprep.subr.bf16.mxu0 0
    %4433 = vmatpush1.bf16.msra.mxu0 0
    %4434 = vmatprep.subr.bf16.mxu0 0
    %4435 = vmatpush1.bf16.msra.mxu0 0
    %4436 = vmatprep.subr.bf16.mxu0 0
    %4437 = vmatpush1.bf16.msra.mxu0 0
    %4438 = vmatprep.subr.bf16.mxu0 0
    %4439 = vmatpush1.bf16.msra.mxu0 0
    %4440 = vmatprep.subr.bf16.mxu0 0
    %4441 = vmatpush1.bf16.msra.mxu0 0
    %4442 = vmatprep.subr.bf16.mxu0 0
    %4443 = vmatpush1.bf16.msra.mxu0 0
    %4444 = vmatprep.subr.bf16.mxu0 0
    %4445 = vmatpush1.bf16.msra.mxu0 0
    %4446 = vmatprep.subr.bf16.mxu0 0
    %4447 = vmatpush1.bf16.msra.mxu0 0
    %4448 = vmatprep.subr.bf16.mxu0 0
    %4449 = vmatpush1.bf16.msra.mxu0 0
    %4450 = vmatprep.mubr.bf16.mxu0 0
    %4451 = vmatmul.mubr.bf16.gmra.mrb[0].mxu0 %v4375
    %v4452 = vpop.f32.mrb[0].mxu0
    %v4453 = vadd.f32 %v4412, %v4452
    %v4454 = vpop.f32.mrb[0].mxu0
    %v4455 = vadd.f32 %v4414, %v4454
    %v4456 = vpop.f32.mrb[0].mxu0
    %v4457 = vpop.f32.mrb[0].mxu0
    %4458 = vdwg.mxu0
    %v4459 = vmul.f32 %v4453, 0.5
    %v4460 = vmul.f32 %v4455, 0.5
    %v4461 = vmul.f32 %v4453, 0.044715
    %v4462 = vmul.f32 %v4455, 0.044715
    %v4463 = vmul.f32 %v4461, %v4453
    %v4464 = vmul.f32 %v4462, %v4455
    %v4465 = vmul.f32 %v4463, %v4453
    %v4466 = vmul.f32 %v4464, %v4455
    %v4467 = vadd.f32 %v4453, %v4465
    %v4468 = vadd.f32 %v4455, %v4466
    %v4469 = vmul.f32 %v4467, 0.7978846
    %v4470 = vmul.f32 %v4468, 0.7978846
    %v4471 = vtanh.pop %v4469
    %v4472 = vtanh.pop %v4470
    %v4473 = vadd.f32 %v4471, 1.0
    %v4474 = vadd.f32 %v4472, 1.0
    %v4475 = vmul.f32 %v4459, %v4473
    %v4476 = vmul.f32 %v4460, %v4474
    %v4477 = vld [vmem:[%s7] sm:$0xff]
    %v4478 = vld [vmem:[%s7 + $0x8] sm:$0xff]
    %v4479 = vld [vmem:[%s7 + $0x10] sm:$0xff]
    %v4480 = vld [vmem:[%s7 + $0x18] sm:$0xff]
    %v4481 = vld [vmem:[%s7 + $0x20] sm:$0xff]
    %v4482 = vld [vmem:[%s7 + $0x28] sm:$0xff]
    %v4483 = vld [vmem:[%s7 + $0x30] sm:$0xff]
    %v4484 = vld [vmem:[%s7 + $0x38] sm:$0xff]
    %v4485 = vld [vmem:[%s7 + $0x40] sm:$0xff]
    %v4486 = vld [vmem:[%s7 + $0x48] sm:$0xff]
    %v4487 = vld [vmem:[%s7 + $0x50] sm:$0xff]
    %v4488 = vld [vmem:[%s7 + $0x58] sm:$0xff]
    %v4489 = vld [vmem:[%s7 + $0x60] sm:$0xff]
    %v4490 = vld [vmem:[%s7 + $0x68] sm:$0xff]
    %v4491 = vld [vmem:[%s7 + $0x70] sm:$0xff]
    %v4492 = vld [vmem:[%s7 + $0x78] sm:$0xff]
    %v4493 = vld [vmem:[%s7 + $0x80] sm:$0xff]
    %v4494 = vld [vmem:[%s7 + $0x88] sm:$0xff]
    %v4495 = vld [vmem:[%s7 + $0x90] sm:$0xff]
    %v4496 = vld [vmem:[%s7 + $0x98] sm:$0xff]
    %v4497 = vld [vmem:[%s7 + $0xa0] sm:$0xff]
    %v4498 = vld [vmem:[%s7 + $0xa8] sm:$0xff]
    %v4499 = vld [vmem:[%s7 + $0xb0] sm:$0xff]
    %v4500 = vld [vmem:[%s7 + $0xb8] sm:$0xff]
    %v4501 = vld [vmem:[%s7 + $0xc0] sm:$0xff]
    %v4502 = vld [vmem:[%s7 + $0xc8] sm:$0xff]
    %v4503 = vld [vmem:[%s7 + $0xd0] sm:$0xff]
    %v4504 = vld [vmem:[%s7 + $0xd8] sm:$0xff]
    %v4505 = vld [vmem:[%s7 + $0xe0] sm:$0xff]
    %v4506 = vld [vmem:[%s7 + $0xe8] sm:$0xff]
    %v4507 = vld [vmem:[%s7 + $0xf0] sm:$0xff]
    %v4508 = vld [vmem:[%s7 + $0xf8] sm:$0xff]
    %v4509 = vld [vmem:[#allocation13] sm:$0x1]
    %v4511 = vlaneseq
    %v4512 = vshrl.u32 %v4511, 7
    %v4513 = vsub.s32 0, %v4512
    %v4514 = vrot.slane %v4509, %v4513
    %4516 = vmatprep.subr.mxu0 0.0
    %4517 = vmatpush1.msra.mxu0 %v4477
    %4518 = vmatprep.subr.mxu0 0.0
    %4519 = vmatpush1.msra.mxu0 %v4478
    %4520 = vmatprep.subr.mxu0 0.0
    %4521 = vmatpush1.msra.mxu0 %v4479
    %4522 = vmatprep.subr.mxu0 0.0
    %4523 = vmatpush1.msra.mxu0 %v4480
    %4524 = vmatprep.subr.mxu0 0.0
    %4525 = vmatpush1.msra.mxu0 %v4481
    %4526 = vmatprep.subr.mxu0 0.0
    %4527 = vmatpush1.msra.mxu0 %v4482
    %4528 = vmatprep.subr.mxu0 0.0
    %4529 = vmatpush1.msra.mxu0 %v4483
    %4530 = vmatprep.subr.mxu0 0.0
    %4531 = vmatpush1.msra.mxu0 %v4484
    %4532 = vmatprep.subr.mxu0 0.0
    %4533 = vmatpush1.msra.mxu0 %v4485
    %4534 = vmatprep.subr.mxu0 0.0
    %4535 = vmatpush1.msra.mxu0 %v4486
    %4536 = vmatprep.subr.mxu0 0.0
    %4537 = vmatpush1.msra.mxu0 %v4487
    %4538 = vmatprep.subr.mxu0 0.0
    %4539 = vmatpush1.msra.mxu0 %v4488
    %4540 = vmatprep.subr.mxu0 0.0
    %4541 = vmatpush1.msra.mxu0 %v4489
    %4542 = vmatprep.subr.mxu0 0.0
    %4543 = vmatpush1.msra.mxu0 %v4490
    %4544 = vmatprep.subr.mxu0 0.0
    %4545 = vmatpush1.msra.mxu0 %v4491
    %4546 = vmatprep.subr.mxu0 0.0
    %4547 = vmatpush1.msra.mxu0 %v4492
    %4548 = vmatprep.subr.mxu0 0.0
    %4549 = vmatpush1.msra.mxu0 %v4493
    %4550 = vmatprep.subr.mxu0 0.0
    %4551 = vmatpush1.msra.mxu0 %v4494
    %4552 = vmatprep.subr.mxu0 0.0
    %4553 = vmatpush1.msra.mxu0 %v4495
    %4554 = vmatprep.subr.mxu0 0.0
    %4555 = vmatpush1.msra.mxu0 %v4496
    %4556 = vmatprep.subr.mxu0 0.0
    %4557 = vmatpush1.msra.mxu0 %v4497
    %4558 = vmatprep.subr.mxu0 0.0
    %4559 = vmatpush1.msra.mxu0 %v4498
    %4560 = vmatprep.subr.mxu0 0.0
    %4561 = vmatpush1.msra.mxu0 %v4499
    %4562 = vmatprep.subr.mxu0 0.0
    %4563 = vmatpush1.msra.mxu0 %v4500
    %4564 = vmatprep.subr.mxu0 0.0
    %4565 = vmatpush1.msra.mxu0 %v4501
    %4566 = vmatprep.subr.mxu0 0.0
    %4567 = vmatpush1.msra.mxu0 %v4502
    %4568 = vmatprep.subr.mxu0 0.0
    %4569 = vmatpush1.msra.mxu0 %v4503
    %4570 = vmatprep.subr.mxu0 0.0
    %4571 = vmatpush1.msra.mxu0 %v4504
    %4572 = vmatprep.subr.mxu0 0.0
    %4573 = vmatpush1.msra.mxu0 %v4505
    %4574 = vmatprep.subr.mxu0 0.0
    %4575 = vmatpush1.msra.mxu0 %v4506
    %4576 = vmatprep.subr.mxu0 0.0
    %4577 = vmatpush1.msra.mxu0 %v4507
    %4578 = vmatprep.subr.mxu0 0.0
    %4579 = vmatpush1.msra.mxu0 %v4508
    %4580 = vmatprep.mubr.f32.mxu0 %v4476
    %4581 = vmatmul.mubr.f32.gmra.mrb[0].mxu0 %v4475
    %v4582 = vpop.f32.mrb[0].mxu0
    %v4583 = vadd.f32 %v4514, %v4582
    %v4584 = vpop.f32.mrb[0].mxu0
    %4585 = vdwg.mxu0
    %vm4586 = vcmask 123904
    %4587 = vst.msk [vmem:[#allocation16] sm:$0x3] %vm4586, %v4583
    %v4588 = vld [vmem:[%s9] sm:$0xff]
    %v4589 = vld [vmem:[%s9 + $0x8] sm:$0xff]
    %v4590 = vld [vmem:[%s9 + $0x10] sm:$0xff]
    %v4591 = vld [vmem:[%s9 + $0x18] sm:$0xff]
    %v4592 = vld [vmem:[%s9 + $0x20] sm:$0xff]
    %v4593 = vld [vmem:[%s9 + $0x28] sm:$0xff]
    %v4594 = vld [vmem:[%s9 + $0x30] sm:$0xff]
    %v4595 = vld [vmem:[%s9 + $0x38] sm:$0xff]
    %v4596 = vld [vmem:[%s9 + $0x40] sm:$0xff]
    %v4597 = vld [vmem:[%s9 + $0x48] sm:$0xff]
    %v4598 = vld [vmem:[%s9 + $0x50] sm:$0xff]
    %v4599 = vld [vmem:[%s9 + $0x58] sm:$0xff]
    %v4600 = vld [vmem:[%s9 + $0x60] sm:$0xff]
    %v4601 = vld [vmem:[%s9 + $0x68] sm:$0xff]
    %v4602 = vld [vmem:[%s9 + $0x70] sm:$0xff]
    %v4603 = vld [vmem:[%s9 + $0x78] sm:$0xff]
    %v4604 = vld [vmem:[%s9 + $0x80] sm:$0xff]
    %v4605 = vld [vmem:[%s9 + $0x88] sm:$0xff]
    %v4606 = vld [vmem:[%s9 + $0x90] sm:$0xff]
    %v4607 = vld [vmem:[%s9 + $0x98] sm:$0xff]
    %v4608 = vld [vmem:[%s9 + $0xa0] sm:$0xff]
    %v4609 = vld [vmem:[%s9 + $0xa8] sm:$0xff]
    %v4610 = vld [vmem:[%s9 + $0xb0] sm:$0xff]
    %v4611 = vld [vmem:[%s9 + $0xb8] sm:$0xff]
    %v4612 = vld [vmem:[%s9 + $0xc0] sm:$0xff]
    %v4613 = vld [vmem:[%s9 + $0xc8] sm:$0xff]
    %v4614 = vld [vmem:[%s9 + $0xd0] sm:$0xff]
    %v4615 = vld [vmem:[%s9 + $0xd8] sm:$0xff]
    %v4616 = vld [vmem:[%s9 + $0xe0] sm:$0xff]
    %v4617 = vld [vmem:[%s9 + $0xe8] sm:$0xff]
    %v4618 = vld [vmem:[%s9 + $0xf0] sm:$0xff]
    %v4619 = vld [vmem:[%s9 + $0xf8] sm:$0xff]
    %v4620 = vld [vmem:[#allocation14] sm:$0x1]
    %v4622 = vlaneseq
    %v4623 = vshrl.u32 %v4622, 7
    %v4624 = vsub.s32 0, %v4623
    %v4625 = vrot.slane %v4620, %v4624
    %4627 = vmatprep.subr.mxu0 0.0
    %4628 = vmatpush1.msra.mxu0 %v4588
    %4629 = vmatprep.subr.mxu0 0.0
    %4630 = vmatpush1.msra.mxu0 %v4589
    %4631 = vmatprep.subr.mxu0 0.0
    %4632 = vmatpush1.msra.mxu0 %v4590
    %4633 = vmatprep.subr.mxu0 0.0
    %4634 = vmatpush1.msra.mxu0 %v4591
    %4635 = vmatprep.subr.mxu0 0.0
    %4636 = vmatpush1.msra.mxu0 %v4592
    %4637 = vmatprep.subr.mxu0 0.0
    %4638 = vmatpush1.msra.mxu0 %v4593
    %4639 = vmatprep.subr.mxu0 0.0
    %4640 = vmatpush1.msra.mxu0 %v4594
    %4641 = vmatprep.subr.mxu0 0.0
    %4642 = vmatpush1.msra.mxu0 %v4595
    %4643 = vmatprep.subr.mxu0 0.0
    %4644 = vmatpush1.msra.mxu0 %v4596
    %4645 = vmatprep.subr.mxu0 0.0
    %4646 = vmatpush1.msra.mxu0 %v4597
    %4647 = vmatprep.subr.mxu0 0.0
    %4648 = vmatpush1.msra.mxu0 %v4598
    %4649 = vmatprep.subr.mxu0 0.0
    %4650 = vmatpush1.msra.mxu0 %v4599
    %4651 = vmatprep.subr.mxu0 0.0
    %4652 = vmatpush1.msra.mxu0 %v4600
    %4653 = vmatprep.subr.mxu0 0.0
    %4654 = vmatpush1.msra.mxu0 %v4601
    %4655 = vmatprep.subr.mxu0 0.0
    %4656 = vmatpush1.msra.mxu0 %v4602
    %4657 = vmatprep.subr.mxu0 0.0
    %4658 = vmatpush1.msra.mxu0 %v4603
    %4659 = vmatprep.subr.mxu0 0.0
    %4660 = vmatpush1.msra.mxu0 %v4604
    %4661 = vmatprep.subr.mxu0 0.0
    %4662 = vmatpush1.msra.mxu0 %v4605
    %4663 = vmatprep.subr.mxu0 0.0
    %4664 = vmatpush1.msra.mxu0 %v4606
    %4665 = vmatprep.subr.mxu0 0.0
    %4666 = vmatpush1.msra.mxu0 %v4607
    %4667 = vmatprep.subr.mxu0 0.0
    %4668 = vmatpush1.msra.mxu0 %v4608
    %4669 = vmatprep.subr.mxu0 0.0
    %4670 = vmatpush1.msra.mxu0 %v4609
    %4671 = vmatprep.subr.mxu0 0.0
    %4672 = vmatpush1.msra.mxu0 %v4610
    %4673 = vmatprep.subr.mxu0 0.0
    %4674 = vmatpush1.msra.mxu0 %v4611
    %4675 = vmatprep.subr.mxu0 0.0
    %4676 = vmatpush1.msra.mxu0 %v4612
    %4677 = vmatprep.subr.mxu0 0.0
    %4678 = vmatpush1.msra.mxu0 %v4613
    %4679 = vmatprep.subr.mxu0 0.0
    %4680 = vmatpush1.msra.mxu0 %v4614
    %4681 = vmatprep.subr.mxu0 0.0
    %4682 = vmatpush1.msra.mxu0 %v4615
    %4683 = vmatprep.subr.mxu0 0.0
    %4684 = vmatpush1.msra.mxu0 %v4616
    %4685 = vmatprep.subr.mxu0 0.0
    %4686 = vmatpush1.msra.mxu0 %v4617
    %4687 = vmatprep.subr.mxu0 0.0
    %4688 = vmatpush1.msra.mxu0 %v4618
    %4689 = vmatprep.subr.mxu0 0.0
    %4690 = vmatpush1.msra.mxu0 %v4619
    %4691 = vmatprep.mubr.f32.mxu0 %v4476
    %4692 = vmatmul.mubr.f32.gmra.mrb[0].mxu0 %v4475
    %v4693 = vpop.f32.mrb[0].mxu0
    %v4694 = vadd.f32 %v4625, %v4693
    %v4695 = vpop.f32.mrb[0].mxu0
    %4696 = vdwg.mxu0
    %v4697 = vmul.f32 %v4694, 1.442695
    %v4698 = vpow.pop %v4697
    %4699 = vst.msk [vmem:[#allocation17] sm:$0x3] %vm4586, %v4698
    // Predicated region
    $region78: #{encoder_forward.1} parent=1 // pred_check
      _
    $region79: #{encoder_forward.1} parent=1 // pred_check_branch
      %4701 = sbr.rel (0) target = $region81
    $region80: #{encoder_forward.1} parent=1 // pred_region
      %s4703 = ssub.s32 32, 32
      %4704 = vsyncadd [#allocation4], %s4703
      %s4706 = sshll.u32 [#allocation16], 4
      %s4707 = int_to_ptr.vmem [resolvable:$true] %s4706
      %4709 = dma.vmem_to_hbm [thread:$0]  %s4707, 32, %s11, [#allocation4]
    $region81: #{encoder_forward.1} parent=1 // pred_fallthru
      _
    // Predicated region
    $region82: #{encoder_forward.1} parent=1 // pred_check
      _
    $region83: #{encoder_forward.1} parent=1 // pred_check_branch
      %4711 = sbr.rel (0) target = $region85
    $region84: #{encoder_forward.1} parent=1 // pred_region
      %s4713 = ssub.s32 32, 32
      %4714 = vsyncadd [#allocation18], %s4713
      %s4716 = sshll.u32 [#allocation17], 4
      %s4717 = int_to_ptr.vmem [resolvable:$true] %s4716
      %4719 = dma.vmem_to_hbm [thread:$0]  %s4717, 32, %s12, [#allocation18]
    $region85: #{encoder_forward.1} parent=1 // pred_fallthru
      _
    // Predicated region
    $region86: #{encoder_forward.1} parent=1 // pred_check
      _
    $region87: #{encoder_forward.1} parent=1 // pred_check_branch
      %4721 = sbr.rel (0) target = $region89
    $region88: #{encoder_forward.1} parent=1 // pred_region
      %4722 = dma.done [#allocation4], 32
    $region89: #{encoder_forward.1} parent=1 // pred_fallthru
      _
    // Predicated region
    $region90: #{encoder_forward.1} parent=1 // pred_check
      _
    $region91: #{encoder_forward.1} parent=1 // pred_check_branch
      %4724 = sbr.rel (0) target = $region93
    $region92: #{encoder_forward.1} parent=1 // pred_region
      %4725 = dma.done [#allocation18], 32
    $region93: #{encoder_forward.1} parent=1 // pred_fallthru
      _
    %4726 = vsyncpa [#allocation3], 1
    %4727 = vsyncpa [#allocation6], 1
    %4728 = vsyncpa [#allocation9], 1
    %4729 = vsyncpa [#allocation12], 1
    %4730 = vsyncpa [#allocation15], 1
    %4731 = vsyncpa [#allocation4], 1
    %4732 = vsyncpa [#allocation18], 1

</llo_original>
